<compile_context>
chip_gen: v6e
topology: v6e:2x2x1
jax: 0.10.0
libtpu: 0.0.40
codegen_flags: <defaults>
</compile_context>

<pallas_src>
import functools
import math

import jax
import jax.numpy as jnp
from jax.experimental import pallas as pl
from jax.experimental.pallas import tpu as pltpu


# ---------------------------------------------------------------------------
# helpers
# ---------------------------------------------------------------------------

def _vspec(shape):
    """Full-array VMEM block; index_map tolerates scalar-prefetch refs."""
    n = len(shape)
    return pl.BlockSpec(shape, lambda *args: (0,) * n)


def _apply_act(x, act):
    if act == "tanh":
        return jnp.tanh(x)
    if act == "relu":
        return jnp.maximum(x, 0.0)
    return x


# ---------------------------------------------------------------------------
# Kernel A: fused sequence tower
#   seq_trans (StackedDense) -> nn.TransformerEncoderLayer (post-norm, relu,
#   dropout=0) -> gather output at seq_length.
#   Processes the whole stacked batch (hist + trigger sequences) in one step.
# ---------------------------------------------------------------------------

def _tower_kernel(seq_len_ref, x_ref, *refs, nhead, d_model, n_seq, seq_acts):
    embed_ref, state_ref = refs[-2], refs[-1]
    w = refs[:-2]
    seq_layers = [(w[2 * i], w[2 * i + 1]) for i in range(n_seq)]
    (wqkv, bqkv, wo, bo, g1, be1, w1, b1, w2, b2, g2, be2) = w[2 * n_seq:]

    S, L, _ = x_ref.shape
    dh = d_model // nhead
    scale = 1.0 / math.sqrt(dh)
    f32 = jnp.float32
    eps = 1e-5
    lane_iota = jax.lax.broadcasted_iota(jnp.int32, (1, L), 1)

    for s in range(S):                                   # static unroll (tiny batch)
        x = x_ref[s].astype(f32)                         # (L, D)

        # fused seq_trans MLP
        for (sw, sb), act in zip(seq_layers, seq_acts):
            x = jnp.dot(x, sw[...], preferred_element_type=f32) + sb[...]
            x = _apply_act(x, act)
        embed_ref[s] = x.astype(embed_ref.dtype)

        # self-attention
        qkv = jnp.dot(x, wqkv[...], preferred_element_type=f32) + bqkv[...]
        head_outs = []
        for h in range(nhead):
            qh = qkv[:, h * dh:(h + 1) * dh] * scale
            kh = qkv[:, d_model + h * dh:d_model + (h + 1) * dh]
            vh = qkv[:, 2 * d_model + h * dh:2 * d_model + (h + 1) * dh]
            sc = jax.lax.dot_general(qh, kh, (((1,), (1,)), ((), ())),
                                     preferred_element_type=f32)       # (L, L)
            sc = sc - jnp.max(sc, axis=-1, keepdims=True)
            p = jnp.exp(sc)
            p = p * pl.reciprocal(jnp.sum(p, axis=-1, keepdims=True), approx=True)
            head_outs.append(jnp.dot(p, vh, preferred_element_type=f32))
        attn = jnp.concatenate(head_outs, axis=-1)                      # (L, D)
        attn = jnp.dot(attn, wo[...], preferred_element_type=f32) + bo[...]

        # residual + LayerNorm 1
        y = x + attn
        mu = jnp.mean(y, axis=-1, keepdims=True)
        var = jnp.mean(jnp.square(y - mu), axis=-1, keepdims=True)
        y = (y - mu) * jax.lax.rsqrt(var + eps) * g1[...] + be1[...]

        # feed-forward (relu)
        hmid = jnp.maximum(jnp.dot(y, w1[...], preferred_element_type=f32) + b1[...], 0.0)
        ff = jnp.dot(hmid, w2[...], preferred_element_type=f32) + b2[...]

        # residual + LayerNorm 2
        z = y + ff
        mu2 = jnp.mean(z, axis=-1, keepdims=True)
        var2 = jnp.mean(jnp.square(z - mu2), axis=-1, keepdims=True)
        z = (z - mu2) * jax.lax.rsqrt(var2 + eps) * g2[...] + be2[...]

        # gather transformer output at seq_len[s] via one-hot matmul (stays in VMEM)
        onehot = (lane_iota == seq_len_ref[s]).astype(f32)              # (1, L)
        state_ref[pl.ds(s, 1), :] = jnp.dot(
            onehot, z, preferred_element_type=f32).astype(state_ref.dtype)


def seq_tower(x, seq_len, seq_trans, seq_trans_acts, tp, *, nhead):
    """x: (S, L, D) stacked id+pos embedded sequences -> (embed (S,L,D), state (S,D))."""
    S, L, D = x.shape
    weights = []
    for (w, b) in seq_trans:
        weights += [w, b.reshape(1, -1)]
    weights += [tp["wqkv"], tp["bqkv"].reshape(1, -1),
                tp["wo"], tp["bo"].reshape(1, -1),
                tp["ln1_g"].reshape(1, -1), tp["ln1_b"].reshape(1, -1),
                tp["w1"], tp["b1"].reshape(1, -1),
                tp["w2"], tp["b2"].reshape(1, -1),
                tp["ln2_g"].reshape(1, -1), tp["ln2_b"].reshape(1, -1)]
    args = [x] + weights
    kernel = functools.partial(_tower_kernel, nhead=nhead, d_model=D,
                               n_seq=len(seq_trans), seq_acts=tuple(seq_trans_acts))
    return pl.pallas_call(
        kernel,
        grid_spec=pltpu.PrefetchScalarGridSpec(
            num_scalar_prefetch=1,
            grid=(1,),
            in_specs=[_vspec(a.shape) for a in args],
            out_specs=(_vspec((S, L, D)), _vspec((S, D))),
        ),
        out_shape=(jax.ShapeDtypeStruct((S, L, D), jnp.float32),
                   jax.ShapeDtypeStruct((S, D), jnp.float32)),
        compiler_params=pltpu.CompilerParams(dimension_semantics=("arbitrary",)),
    )(seq_len, x, *weights)


# ---------------------------------------------------------------------------
# Kernel B: fused "head"
#   target_trans MLP + HyperNetwork_FC (mlp_trans -> gather -> generate per-sample
#   W/b in VMEM -> apply) + row-dot with target embedding.
#   # TODO(synk): HyperNetwork_FC internals reconstructed from codebase conventions
#   # (mlp_trans(z) -> gather at seq_length -> generated per-sample weight/bias + bmm).
# ---------------------------------------------------------------------------

def _head_kernel(seq_len_ref, *refs, L, n_mlp, mlp_acts, n_hyper, hyper_acts):
    out_ref = refs[-1]
    r = refs[:-1]
    x_ref, z_ref, traw_ref = r[0], r[1], r[2]
    tw0, tb0, tw1, tb1 = r[3:7]
    off = 7
    mlp_layers = [(r[off + 2 * i], r[off + 2 * i + 1]) for i in range(n_mlp)]
    off += 2 * n_mlp
    hyper_layers = [(r[off + 4 * i], r[off + 4 * i + 1],
                     r[off + 4 * i + 2], r[off + 4 * i + 3]) for i in range(n_hyper)]

    f32 = jnp.float32
    B = x_ref.shape[0]
    BL = z_ref.shape[0]

    # target tower: StackedDense(D, [D, D], [Tanh, None])
    t = traw_ref[...].astype(f32)
    t = jnp.tanh(jnp.dot(t, tw0[...], preferred_element_type=f32) + tb0[...])
    t = jnp.dot(t, tw1[...], preferred_element_type=f32) + tb1[...]

    # hyper mlp_trans over the whole (B*L, D) slab in one matmul per layer
    z = z_ref[...].astype(f32)
    for (w, b), act in zip(mlp_layers, mlp_acts):
        z = jnp.dot(z, w[...], preferred_element_type=f32) + b[...]
        z = _apply_act(z, act)

    # gather rows b*L + seq_len[b] via a one-hot selection matmul (no concat/reshape)
    row_iota = jax.lax.broadcasted_iota(jnp.int32, (B, BL), 0)
    col_iota = jax.lax.broadcasted_iota(jnp.int32, (B, BL), 1)
    sel = jnp.zeros((B, BL), f32)
    for b in range(B):
        m = jnp.logical_and(row_iota == b, col_iota == (b * L + seq_len_ref[b]))
        sel = sel + m.astype(f32)
    zs = jnp.dot(sel, z, preferred_element_type=f32)                    # (B, D)

    # fused hyper layers: generate per-sample weight/bias and apply, all in VMEM
    xcur = x_ref[...].astype(f32)
    for (wg, wgb, bg, bgb), act in zip(hyper_layers, hyper_acts):
        din = xcur.shape[1]
        dout = bg.shape[1]
        gw = jnp.dot(zs, wg[...], preferred_element_type=f32) + wgb[...]   # (B, din*dout)
        y = jnp.dot(zs, bg[...], preferred_element_type=f32) + bgb[...]    # (B, dout)
        for i in range(din):        # y[b] += x[b, i] * W_b[i, :]  (static lane slices)
            y = y + xcur[:, i:i + 1] * gw[:, i * dout:(i + 1) * dout]
        y = _apply_act(y, act)
        xcur = y

    # fused row-dot with target embedding
    out_ref[...] = jnp.sum(xcur * t, axis=-1, keepdims=True).astype(out_ref.dtype)


def hyper_head(user_state, z_embed, seq_len, target_raw, params):
    """user_state: (B,D), z_embed: (B,L,D), seq_len: (B,) int32 -> (B,1)."""
    B, L, D = z_embed.shape
    hp = params["hyper"]
    tt = params["target_trans"]
    args = [user_state, z_embed.reshape(B * L, D), target_raw,
            tt[0][0], tt[0][1].reshape(1, -1),
            tt[1][0], tt[1][1].reshape(1, -1)]
    for (w, b) in hp["mlp_trans"]:
        args += [w, b.reshape(1, -1)]
    for (wg, wgb), (bg, bgb) in zip(hp["w_gen"], hp["b_gen"]):
        args += [wg, wgb.reshape(1, -1), bg, bgb.reshape(1, -1)]
    kernel = functools.partial(
        _head_kernel, L=L,
        n_mlp=len(hp["mlp_trans"]), mlp_acts=tuple(hp["mlp_trans_acts"]),
        n_hyper=len(hp["w_gen"]), hyper_acts=tuple(hp["acts"]))
    return pl.pallas_call(
        kernel,
        grid_spec=pltpu.PrefetchScalarGridSpec(
            num_scalar_prefetch=1,
            grid=(1,),
            in_specs=[_vspec(a.shape) for a in args],
            out_specs=_vspec((B, 1)),
        ),
        out_shape=jax.ShapeDtypeStruct((B, 1), jnp.float32),
        compiler_params=pltpu.CompilerParams(dimension_semantics=("arbitrary",)),
    )(seq_len, *args)


# ---------------------------------------------------------------------------
# Kernel C: fused stage-2 OOD branch
#   stage2_mlp_trans(user_state), stage2_mlp_trans(trigger_state), concat, classifier.
# ---------------------------------------------------------------------------

def _ood_kernel(us_ref, ts_ref, *refs, n_mlp, mlp_acts, n_cls, cls_acts):
    out_ref = refs[-1]
    r = refs[:-1]
    mlp_layers = [(r[2 * i], r[2 * i + 1]) for i in range(n_mlp)]
    off = 2 * n_mlp
    cls_layers = [(r[off + 2 * i], r[off + 2 * i + 1]) for i in range(n_cls)]
    f32 = jnp.float32

    def run_mlp(v):
        for (w, b), act in zip(mlp_layers, mlp_acts):
            v = jnp.dot(v, w[...], preferred_element_type=f32) + b[...]
            v = _apply_act(v, act)
        return v

    ue = run_mlp(us_ref[...].astype(f32))
    te = run_mlp(ts_ref[...].astype(f32))
    h = jnp.concatenate([ue, te], axis=-1)
    for (w, b), act in zip(cls_layers, cls_acts):
        h = jnp.dot(h, w[...], preferred_element_type=f32) + b[...]
        h = _apply_act(h, act)
    out_ref[...] = h.astype(out_ref.dtype)


def ood_head(user_state, trigger_state, params):
    B, _ = user_state.shape
    args = [user_state, trigger_state]
    for (w, b) in params["stage2_mlp_trans"]:
        args += [w, b.reshape(1, -1)]
    for (w, b) in params["stage2_ood"]:
        args += [w, b.reshape(1, -1)]
    kernel = functools.partial(
        _ood_kernel,
        n_mlp=len(params["stage2_mlp_trans"]),
        mlp_acts=tuple(params["stage2_mlp_trans_acts"]),
        n_cls=len(params["stage2_ood"]),
        cls_acts=tuple(params["stage2_ood_acts"]))
    return pl.pallas_call(
        kernel,
        grid=(1,),
        in_specs=[_vspec(a.shape) for a in args],
        out_specs=_vspec((B, 1)),
        out_shape=jax.ShapeDtypeStruct((B, 1), jnp.float32),
        compiler_params=pltpu.CompilerParams(dimension_semantics=("arbitrary",)),
    )(*args)


# ---------------------------------------------------------------------------
# Forward (plain-JAX glue: embedding gathers, stacking, routing)
# ---------------------------------------------------------------------------

def sasrec_forward(params, features, *, stage=2, pred=False,
                   train_ood_threshold=0.99, fig1=False):
    nhead = params["nhead"]
    click_seq = features["clk_sequence"]          # (B, L) int32, 0 = padding
    trigger_seq = features["trigger_sequence"]    # (B, L) int32
    target_id = features["target_id"]             # (B,)  int32
    B, L = click_seq.shape
    id_emb, pos_emb = params["id_emb"], params["pos_emb"]

    positions = jnp.arange(L, dtype=jnp.int32)[None, :]
    seq_length = jnp.maximum(
        jnp.sum((click_seq != 0).astype(jnp.int32), axis=1) - 1, 0).astype(jnp.int32)
    trigger_seq_length = jnp.maximum(
        jnp.sum((trigger_seq != 0).astype(jnp.int32), axis=1) - 1, 0).astype(jnp.int32)

    # embedding lookups stay in plain JAX (gather glue)
    target_raw = id_emb[target_id]                                  # (B, D)
    hist_in = id_emb[click_seq] + pos_emb[positions]                # (B, L, D)
    trig_in = id_emb[trigger_seq] + pos_emb[positions]              # (B, L, D)

    # both sequence towers share weights -> one fused kernel on the stacked batch
    stacked = jnp.concatenate([hist_in, trig_in], axis=0)           # (2B, L, D)
    stacked_len = jnp.concatenate([seq_length, trigger_seq_length], axis=0)
    embed, state = seq_tower(stacked, stacked_len, params["seq_trans"],
                             params["seq_trans_acts"], params["transformer"],
                             nhead=nhead)
    hist_embed, trigger_embed = embed[:B], embed[B:]
    user_state, trigger_user_state = state[:B], state[B:]

    if stage == 1:
        return hyper_head(user_state, hist_embed, seq_length, target_raw, params)

    if stage == 2:
        output_trig = hyper_head(user_state, trigger_embed, trigger_seq_length,
                                 target_raw, params)
        ood_pred = ood_head(user_state, trigger_user_state, params)
        if not pred:
            return output_trig, ood_pred

        # pred=True: rows with sigmoid(ood) < threshold are re-routed to the
        # hist-based embedding (equivalent to output[request_index] = ... in torch).
        output_hist = hyper_head(user_state, hist_embed, seq_length, target_raw, params)
        request_index = (jax.nn.sigmoid(ood_pred) < train_ood_threshold).reshape(-1)
        request_num = jnp.sum(request_index.astype(jnp.int32))
        total_num = B
        output = jnp.where(request_index[:, None], output_hist, output_trig)
        if fig1:
            return output_hist, ood_pred, request_num, total_num, output_trig
        return output, ood_pred, request_num, total_num

    raise ValueError("unsupported stage")


# ---------------------------------------------------------------------------
# Deterministic parameter construction
# ---------------------------------------------------------------------------

def _linear_init(key, din, dout, scale=0.02):
    kw, kb = jax.random.split(key)
    w = jax.random.normal(kw, (din, dout), jnp.float32) * scale
    b = jax.random.normal(kb, (dout,), jnp.float32) * scale
    return w, b


def init_params(key, *, D=32, nhead=2, vocab=100, mlp_layers=2, classifier=(32,),
                max_pos=1024):
    keys = jax.random.split(key, 32)
    it = iter(keys)
    p = {"D": D, "nhead": nhead}
    p["id_emb"] = jax.random.normal(next(it), (vocab, D), jnp.float32) * 0.02
    p["pos_emb"] = jax.random.normal(next(it), (max_pos, D), jnp.float32) * 0.02

    p["target_trans"] = [_linear_init(next(it), D, D), _linear_init(next(it), D, D)]
    p["target_trans_acts"] = ["tanh", None]
    p["seq_trans"] = [_linear_init(next(it), D, D)]
    p["seq_trans_acts"] = ["tanh"]

    p["transformer"] = {
        "wqkv": jax.random.normal(next(it), (D, 3 * D), jnp.float32) * 0.02,
        "bqkv": jnp.zeros((3 * D,), jnp.float32),
        "wo": jax.random.normal(next(it), (D, D), jnp.float32) * 0.02,
        "bo": jnp.zeros((D,), jnp.float32),
        "ln1_g": jnp.ones((D,), jnp.float32), "ln1_b": jnp.zeros((D,), jnp.float32),
        "w1": jax.random.normal(next(it), (D, 4 * D), jnp.float32) * 0.02,
        "b1": jnp.zeros((4 * D,), jnp.float32),
        "w2": jax.random.normal(next(it), (4 * D, D), jnp.float32) * 0.02,
        "b2": jnp.zeros((D,), jnp.float32),
        "ln2_g": jnp.ones((D,), jnp.float32), "ln2_b": jnp.zeros((D,), jnp.float32),
    }

    p["hyper"] = {
        "mlp_trans": [_linear_init(next(it), D, D) for _ in range(mlp_layers)],
        "mlp_trans_acts": ["tanh"] * (mlp_layers - 1) + [None],
        "w_gen": [_linear_init(next(it), D, D * D) for _ in range(mlp_layers)],
        "b_gen": [_linear_init(next(it), D, D) for _ in range(mlp_layers)],
        "acts": ["tanh"] * (mlp_layers - 1) + [None],
    }

    p["stage2_mlp_trans"] = [_linear_init(next(it), D, D) for _ in range(mlp_layers)]
    p["stage2_mlp_trans_acts"] = ["tanh"] * (mlp_layers - 1) + [None]

    dims = [2 * D] + list(classifier) + [1]
    p["stage2_ood"] = [_linear_init(next(it), dims[i], dims[i + 1])
                       for i in range(len(dims) - 1)]
    p["stage2_ood_acts"] = ["tanh"] * len(classifier) + [None]
    return p


# ---------------------------------------------------------------------------

if __name__ == "__main__":
    key = jax.random.PRNGKey(0)
    kp, kd = jax.random.split(key)
    B, L, D, vocab = 2, 8, 32, 100

    params = init_params(kp, D=D, nhead=2, vocab=vocab, mlp_layers=2, classifier=(32,))

    k1, k2, k3 = jax.random.split(kd, 3)
    click_seq = jax.random.randint(k1, (B, L), 1, vocab).astype(jnp.int32)
    click_seq = click_seq.at[:, L - 2:].set(0)        # padding to exercise mask logic
    trigger_seq = jax.random.randint(k2, (B, L), 1, vocab).astype(jnp.int32)
    trigger_seq = trigger_seq.at[:, L - 3:].set(0)
    target_id = jax.random.randint(k3, (B,), 1, vocab).astype(jnp.int32)

    features = {
        "target_id": target_id,
        "clk_sequence": click_seq,
        "trigger_sequence": trigger_seq,
    }

    out1 = sasrec_forward(params, features, stage=1)                     # (B, 1)
    out2, ood = sasrec_forward(params, features, stage=2)                # (B, 1), (B, 1)
    out_p, ood_p, req_num, total = sasrec_forward(params, features, stage=2, pred=True)
    jax.block_until_ready((out1, out2, ood, out_p, ood_p, req_num))

    assert out1.shape == (B, 1) and out2.shape == (B, 1) and ood.shape == (B, 1)
    assert out_p.shape == (B, 1) and int(total) == B
    print("KERNEL_OK")
</pallas_src>

<mosaic_0001>
module attributes {stable_mosaic.version = 11 : i64} {
  func.func @_tower_kernel(%arg0: i32, %arg1: memref<4xi32, #tpu.memory_space<smem>>, %arg2: memref<4x8x32xf32, #tpu.memory_space<vmem>>, %arg3: memref<32x32xf32, #tpu.memory_space<vmem>>, %arg4: memref<1x32xf32, #tpu.memory_space<vmem>>, %arg5: memref<32x96xf32, #tpu.memory_space<vmem>>, %arg6: memref<1x96xf32, #tpu.memory_space<vmem>>, %arg7: memref<32x32xf32, #tpu.memory_space<vmem>>, %arg8: memref<1x32xf32, #tpu.memory_space<vmem>>, %arg9: memref<1x32xf32, #tpu.memory_space<vmem>>, %arg10: memref<1x32xf32, #tpu.memory_space<vmem>>, %arg11: memref<32x128xf32, #tpu.memory_space<vmem>>, %arg12: memref<1x128xf32, #tpu.memory_space<vmem>>, %arg13: memref<128x32xf32, #tpu.memory_space<vmem>>, %arg14: memref<1x32xf32, #tpu.memory_space<vmem>>, %arg15: memref<1x32xf32, #tpu.memory_space<vmem>>, %arg16: memref<1x32xf32, #tpu.memory_space<vmem>>, %arg17: memref<4x8x32xf32, #tpu.memory_space<vmem>>, %arg18: memref<4x32xf32, #tpu.memory_space<vmem>>) attributes {dimension_semantics = [#tpu.dimension_semantics<arbitrary>], iteration_bounds = array<i64: 1>, scalar_prefetch = 1 : i64, scratch_operands = 0 : i64, tpu.core_type = #tpu.core_type<tc>, window_params = [{pipeline_mode = #tpu.pipeline_mode<synchronous>, transform_indices = @transform_0, window_bounds = array<i64: 4, 8, 32>}, {pipeline_mode = #tpu.pipeline_mode<synchronous>, transform_indices = @transform_1, window_bounds = array<i64: 32, 32>}, {pipeline_mode = #tpu.pipeline_mode<synchronous>, transform_indices = @transform_2, window_bounds = array<i64: 1, 32>}, {pipeline_mode = #tpu.pipeline_mode<synchronous>, transform_indices = @transform_3, window_bounds = array<i64: 32, 96>}, {pipeline_mode = #tpu.pipeline_mode<synchronous>, transform_indices = @transform_4, window_bounds = array<i64: 1, 96>}, {pipeline_mode = #tpu.pipeline_mode<synchronous>, transform_indices = @transform_5, window_bounds = array<i64: 32, 32>}, {pipeline_mode = #tpu.pipeline_mode<synchronous>, transform_indices = @transform_6, window_bounds = array<i64: 1, 32>}, {pipeline_mode = #tpu.pipeline_mode<synchronous>, transform_indices = @transform_7, window_bounds = array<i64: 1, 32>}, {pipeline_mode = #tpu.pipeline_mode<synchronous>, transform_indices = @transform_8, window_bounds = array<i64: 1, 32>}, {pipeline_mode = #tpu.pipeline_mode<synchronous>, transform_indices = @transform_9, window_bounds = array<i64: 32, 128>}, {pipeline_mode = #tpu.pipeline_mode<synchronous>, transform_indices = @transform_10, window_bounds = array<i64: 1, 128>}, {pipeline_mode = #tpu.pipeline_mode<synchronous>, transform_indices = @transform_11, window_bounds = array<i64: 128, 32>}, {pipeline_mode = #tpu.pipeline_mode<synchronous>, transform_indices = @transform_12, window_bounds = array<i64: 1, 32>}, {pipeline_mode = #tpu.pipeline_mode<synchronous>, transform_indices = @transform_13, window_bounds = array<i64: 1, 32>}, {pipeline_mode = #tpu.pipeline_mode<synchronous>, transform_indices = @transform_14, window_bounds = array<i64: 1, 32>}, {pipeline_mode = #tpu.pipeline_mode<synchronous>, transform_indices = @transform_15, window_bounds = array<i64: 4, 8, 32>}, {pipeline_mode = #tpu.pipeline_mode<synchronous>, transform_indices = @transform_16, window_bounds = array<i64: 4, 32>}]} {
    %0 = tpu.iota {dimensions = array<i32: 1>} : vector<1x8xi32>
    %c0 = arith.constant 0 : index
    %c0_0 = arith.constant 0 : index
    %c0_1 = arith.constant 0 : index
    %1 = vector.load %arg2[%c0, %c0_0, %c0_1] : memref<4x8x32xf32, #tpu.memory_space<vmem>>, vector<1x8x32xf32>
    %2 = vector.shape_cast %1 : vector<1x8x32xf32> to vector<8x32xf32>
    %c0_2 = arith.constant 0 : index
    %c0_3 = arith.constant 0 : index
    %3 = vector.load %arg3[%c0_2, %c0_3] : memref<32x32xf32, #tpu.memory_space<vmem>>, vector<32x32xf32>
    %cst = arith.constant dense<0.000000e+00> : vector<8x32xf32>
    %4 = tpu.matmul %2, %3, %cst {dimension_numbers = #tpu.dot_dimension_numbers<[1], [0], [0], [1], [0, 0, 1, 1], [], []>} : vector<8x32xf32>, vector<32x32xf32>, vector<8x32xf32> -> vector<8x32xf32>
    %c0_4 = arith.constant 0 : index
    %c0_5 = arith.constant 0 : index
    %5 = vector.load %arg4[%c0_4, %c0_5] : memref<1x32xf32, #tpu.memory_space<vmem>>, vector<1x32xf32>
    %6 = vector.broadcast %5 : vector<1x32xf32> to vector<8x32xf32>
    %7 = arith.addf %4, %6 : vector<8x32xf32>
    %8 = math.tanh %7 : vector<8x32xf32>
    %c0_6 = arith.constant 0 : index
    %c0_7 = arith.constant 0 : index
    %c0_8 = arith.constant 0 : index
    %9 = vector.load %arg17[%c0_6, %c0_7, %c0_8] : memref<4x8x32xf32, #tpu.memory_space<vmem>>, vector<1x8x32xf32>
    %10 = vector.shape_cast %9 : vector<1x8x32xf32> to vector<8x32xf32>
    %11 = vector.shape_cast %8 : vector<8x32xf32> to vector<1x8x32xf32>
    tpu.vector_store %arg17[%c0_6, %c0_7, %c0_8], %11 {strides = array<i32>} : memref<4x8x32xf32, #tpu.memory_space<vmem>>, vector<1x8x32xf32>,
    %c0_9 = arith.constant 0 : index
    %c0_10 = arith.constant 0 : index
    %12 = vector.load %arg5[%c0_9, %c0_10] : memref<32x96xf32, #tpu.memory_space<vmem>>, vector<32x96xf32>
    %cst_11 = arith.constant dense<0.000000e+00> : vector<8x96xf32>
    %13 = tpu.matmul %8, %12, %cst_11 {dimension_numbers = #tpu.dot_dimension_numbers<[1], [0], [0], [1], [0, 0, 1, 1], [], []>} : vector<8x32xf32>, vector<32x96xf32>, vector<8x96xf32> -> vector<8x96xf32>
    %c0_12 = arith.constant 0 : index
    %c0_13 = arith.constant 0 : index
    %14 = vector.load %arg6[%c0_12, %c0_13] : memref<1x96xf32, #tpu.memory_space<vmem>>, vector<1x96xf32>
    %15 = vector.broadcast %14 : vector<1x96xf32> to vector<8x96xf32>
    %16 = arith.addf %13, %15 : vector<8x96xf32>
    %17 = vector.extract_strided_slice %16 {offsets = [0, 0], sizes = [8, 16], strides = [1, 1]} : vector<8x96xf32> to vector<8x16xf32>
    %cst_14 = arith.constant 2.500000e-01 : f32
    %18 = vector.broadcast %cst_14 : f32 to vector<8x16xf32>
    %19 = arith.mulf %17, %18 : vector<8x16xf32>
    %20 = vector.extract_strided_slice %16 {offsets = [0, 32], sizes = [8, 16], strides = [1, 1]} : vector<8x96xf32> to vector<8x16xf32>
    %21 = vector.extract_strided_slice %16 {offsets = [0, 64], sizes = [8, 16], strides = [1, 1]} : vector<8x96xf32> to vector<8x16xf32>
    %cst_15 = arith.constant dense<0.000000e+00> : vector<8x8xf32>
    %22 = tpu.matmul %19, %20, %cst_15 {dimension_numbers = #tpu.dot_dimension_numbers<[1], [1], [0], [0], [0, 0, 1, 0], [], []>} : vector<8x16xf32>, vector<8x16xf32>, vector<8x8xf32> -> vector<8x8xf32>
    %cst_16 = arith.constant dense<0xFF800000> : vector<8xf32>
    %23 = vector.multi_reduction <maximumf>, %22, %cst_16 [1] : vector<8x8xf32> to vector<8xf32>
    %24 = vector.shape_cast %23 : vector<8xf32> to vector<8x1xf32>
    %25 = vector.broadcast %24 : vector<8x1xf32> to vector<8x8xf32>
    %26 = arith.subf %22, %25 : vector<8x8xf32>
    %27 = math.exp %26 : vector<8x8xf32>
    %cst_17 = arith.constant dense<0.000000e+00> : vector<8xf32>
    %28 = vector.multi_reduction <add>, %27, %cst_17 [1] : vector<8x8xf32> to vector<8xf32>
    %29 = vector.shape_cast %28 : vector<8xf32> to vector<8x1xf32>
    %30 = tpu.reciprocal %29 {approx = true} : vector<8x1xf32> -> vector<8x1xf32>
    %31 = vector.broadcast %30 : vector<8x1xf32> to vector<8x8xf32>
    %32 = arith.mulf %27, %31 : vector<8x8xf32>
    %cst_18 = arith.constant dense<0.000000e+00> : vector<8x16xf32>
    %33 = tpu.matmul %32, %21, %cst_18 {dimension_numbers = #tpu.dot_dimension_numbers<[1], [0], [0], [1], [0, 0, 1, 1], [], []>} : vector<8x8xf32>, vector<8x16xf32>, vector<8x16xf32> -> vector<8x16xf32>
    %34 = vector.extract_strided_slice %16 {offsets = [0, 16], sizes = [8, 16], strides = [1, 1]} : vector<8x96xf32> to vector<8x16xf32>
    %cst_19 = arith.constant 2.500000e-01 : f32
    %35 = vector.broadcast %cst_19 : f32 to vector<8x16xf32>
    %36 = arith.mulf %34, %35 : vector<8x16xf32>
    %37 = vector.extract_strided_slice %16 {offsets = [0, 48], sizes = [8, 16], strides = [1, 1]} : vector<8x96xf32> to vector<8x16xf32>
    %38 = vector.extract_strided_slice %16 {offsets = [0, 80], sizes = [8, 16], strides = [1, 1]} : vector<8x96xf32> to vector<8x16xf32>
    %cst_20 = arith.constant dense<0.000000e+00> : vector<8x8xf32>
    %39 = tpu.matmul %36, %37, %cst_20 {dimension_numbers = #tpu.dot_dimension_numbers<[1], [1], [0], [0], [0, 0, 1, 0], [], []>} : vector<8x16xf32>, vector<8x16xf32>, vector<8x8xf32> -> vector<8x8xf32>
    %cst_21 = arith.constant dense<0xFF800000> : vector<8xf32>
    %40 = vector.multi_reduction <maximumf>, %39, %cst_21 [1] : vector<8x8xf32> to vector<8xf32>
    %41 = vector.shape_cast %40 : vector<8xf32> to vector<8x1xf32>
    %42 = vector.broadcast %41 : vector<8x1xf32> to vector<8x8xf32>
    %43 = arith.subf %39, %42 : vector<8x8xf32>
    %44 = math.exp %43 : vector<8x8xf32>
    %cst_22 = arith.constant dense<0.000000e+00> : vector<8xf32>
    %45 = vector.multi_reduction <add>, %44, %cst_22 [1] : vector<8x8xf32> to vector<8xf32>
    %46 = vector.shape_cast %45 : vector<8xf32> to vector<8x1xf32>
    %47 = tpu.reciprocal %46 {approx = true} : vector<8x1xf32> -> vector<8x1xf32>
    %48 = vector.broadcast %47 : vector<8x1xf32> to vector<8x8xf32>
    %49 = arith.mulf %44, %48 : vector<8x8xf32>
    %cst_23 = arith.constant dense<0.000000e+00> : vector<8x16xf32>
    %50 = tpu.matmul %49, %38, %cst_23 {dimension_numbers = #tpu.dot_dimension_numbers<[1], [0], [0], [1], [0, 0, 1, 1], [], []>} : vector<8x8xf32>, vector<8x16xf32>, vector<8x16xf32> -> vector<8x16xf32>
    %51 = tpu.concatenate %33, %50 in 1 : vector<8x16xf32>, vector<8x16xf32> -> vector<8x32xf32>
    %c0_24 = arith.constant 0 : index
    %c0_25 = arith.constant 0 : index
    %52 = vector.load %arg7[%c0_24, %c0_25] : memref<32x32xf32, #tpu.memory_space<vmem>>, vector<32x32xf32>
    %cst_26 = arith.constant dense<0.000000e+00> : vector<8x32xf32>
    %53 = tpu.matmul %51, %52, %cst_26 {dimension_numbers = #tpu.dot_dimension_numbers<[1], [0], [0], [1], [0, 0, 1, 1], [], []>} : vector<8x32xf32>, vector<32x32xf32>, vector<8x32xf32> -> vector<8x32xf32>
    %c0_27 = arith.constant 0 : index
    %c0_28 = arith.constant 0 : index
    %54 = vector.load %arg8[%c0_27, %c0_28] : memref<1x32xf32, #tpu.memory_space<vmem>>, vector<1x32xf32>
    %55 = vector.broadcast %54 : vector<1x32xf32> to vector<8x32xf32>
    %56 = arith.addf %53, %55 : vector<8x32xf32>
    %57 = arith.addf %8, %56 : vector<8x32xf32>
    %cst_29 = arith.constant dense<0.000000e+00> : vector<8xf32>
    %58 = vector.multi_reduction <add>, %57, %cst_29 [1] : vector<8x32xf32> to vector<8xf32>
    %59 = vector.shape_cast %58 : vector<8xf32> to vector<8x1xf32>
    %cst_30 = arith.constant 3.200000e+01 : f32
    %60 = vector.broadcast %cst_30 : f32 to vector<8x1xf32>
    %61 = arith.divf %59, %60 : vector<8x1xf32>
    %62 = vector.broadcast %61 : vector<8x1xf32> to vector<8x32xf32>
    %63 = arith.subf %57, %62 : vector<8x32xf32>
    %64 = arith.mulf %63, %63 : vector<8x32xf32>
    %cst_31 = arith.constant dense<0.000000e+00> : vector<8xf32>
    %65 = vector.multi_reduction <add>, %64, %cst_31 [1] : vector<8x32xf32> to vector<8xf32>
    %66 = vector.shape_cast %65 : vector<8xf32> to vector<8x1xf32>
    %cst_32 = arith.constant 3.200000e+01 : f32
    %67 = vector.broadcast %cst_32 : f32 to vector<8x1xf32>
    %68 = arith.divf %66, %67 : vector<8x1xf32>
    %69 = vector.broadcast %61 : vector<8x1xf32> to vector<8x32xf32>
    %70 = arith.subf %57, %69 : vector<8x32xf32>
    %cst_33 = arith.constant 9.99999974E-6 : f32
    %71 = vector.broadcast %cst_33 : f32 to vector<8x1xf32>
    %72 = arith.addf %68, %71 : vector<8x1xf32>
    %73 = math.rsqrt %72 : vector<8x1xf32>
    %74 = vector.broadcast %73 : vector<8x1xf32> to vector<8x32xf32>
    %75 = arith.mulf %70, %74 : vector<8x32xf32>
    %c0_34 = arith.constant 0 : index
    %c0_35 = arith.constant 0 : index
    %76 = vector.load %arg9[%c0_34, %c0_35] : memref<1x32xf32, #tpu.memory_space<vmem>>, vector<1x32xf32>
    %77 = vector.broadcast %76 : vector<1x32xf32> to vector<8x32xf32>
    %78 = arith.mulf %75, %77 : vector<8x32xf32>
    %c0_36 = arith.constant 0 : index
    %c0_37 = arith.constant 0 : index
    %79 = vector.load %arg10[%c0_36, %c0_37] : memref<1x32xf32, #tpu.memory_space<vmem>>, vector<1x32xf32>
    %80 = vector.broadcast %79 : vector<1x32xf32> to vector<8x32xf32>
    %81 = arith.addf %78, %80 : vector<8x32xf32>
    %c0_38 = arith.constant 0 : index
    %c0_39 = arith.constant 0 : index
    %82 = vector.load %arg11[%c0_38, %c0_39] : memref<32x128xf32, #tpu.memory_space<vmem>>, vector<32x128xf32>
    %cst_40 = arith.constant dense<0.000000e+00> : vector<8x128xf32>
    %83 = tpu.matmul %81, %82, %cst_40 {dimension_numbers = #tpu.dot_dimension_numbers<[1], [0], [0], [1], [0, 0, 1, 1], [], []>} : vector<8x32xf32>, vector<32x128xf32>, vector<8x128xf32> -> vector<8x128xf32>
    %c0_41 = arith.constant 0 : index
    %c0_42 = arith.constant 0 : index
    %84 = vector.load %arg12[%c0_41, %c0_42] : memref<1x128xf32, #tpu.memory_space<vmem>>, vector<1x128xf32>
    %85 = vector.broadcast %84 : vector<1x128xf32> to vector<8x128xf32>
    %86 = arith.addf %83, %85 : vector<8x128xf32>
    %cst_43 = arith.constant 0.000000e+00 : f32
    %87 = vector.broadcast %cst_43 : f32 to vector<8x128xf32>
    %88 = arith.maximumf %86, %87 : vector<8x128xf32>
    %c0_44 = arith.constant 0 : index
    %c0_45 = arith.constant 0 : index
    %89 = vector.load %arg13[%c0_44, %c0_45] : memref<128x32xf32, #tpu.memory_space<vmem>>, vector<128x32xf32>
    %cst_46 = arith.constant dense<0.000000e+00> : vector<8x32xf32>
    %90 = tpu.matmul %88, %89, %cst_46 {dimension_numbers = #tpu.dot_dimension_numbers<[1], [0], [0], [1], [0, 0, 1, 1], [], []>} : vector<8x128xf32>, vector<128x32xf32>, vector<8x32xf32> -> vector<8x32xf32>
    %c0_47 = arith.constant 0 : index
    %c0_48 = arith.constant 0 : index
    %91 = vector.load %arg14[%c0_47, %c0_48] : memref<1x32xf32, #tpu.memory_space<vmem>>, vector<1x32xf32>
    %92 = vector.broadcast %91 : vector<1x32xf32> to vector<8x32xf32>
    %93 = arith.addf %90, %92 : vector<8x32xf32>
    %94 = arith.addf %81, %93 : vector<8x32xf32>
    %cst_49 = arith.constant dense<0.000000e+00> : vector<8xf32>
    %95 = vector.multi_reduction <add>, %94, %cst_49 [1] : vector<8x32xf32> to vector<8xf32>
    %96 = vector.shape_cast %95 : vector<8xf32> to vector<8x1xf32>
    %cst_50 = arith.constant 3.200000e+01 : f32
    %97 = vector.broadcast %cst_50 : f32 to vector<8x1xf32>
    %98 = arith.divf %96, %97 : vector<8x1xf32>
    %99 = vector.broadcast %98 : vector<8x1xf32> to vector<8x32xf32>
    %100 = arith.subf %94, %99 : vector<8x32xf32>
    %101 = arith.mulf %100, %100 : vector<8x32xf32>
    %cst_51 = arith.constant dense<0.000000e+00> : vector<8xf32>
    %102 = vector.multi_reduction <add>, %101, %cst_51 [1] : vector<8x32xf32> to vector<8xf32>
    %103 = vector.shape_cast %102 : vector<8xf32> to vector<8x1xf32>
    %cst_52 = arith.constant 3.200000e+01 : f32
    %104 = vector.broadcast %cst_52 : f32 to vector<8x1xf32>
    %105 = arith.divf %103, %104 : vector<8x1xf32>
    %106 = vector.broadcast %98 : vector<8x1xf32> to vector<8x32xf32>
    %107 = arith.subf %94, %106 : vector<8x32xf32>
    %cst_53 = arith.constant 9.99999974E-6 : f32
    %108 = vector.broadcast %cst_53 : f32 to vector<8x1xf32>
    %109 = arith.addf %105, %108 : vector<8x1xf32>
    %110 = math.rsqrt %109 : vector<8x1xf32>
    %111 = vector.broadcast %110 : vector<8x1xf32> to vector<8x32xf32>
    %112 = arith.mulf %107, %111 : vector<8x32xf32>
    %c0_54 = arith.constant 0 : index
    %c0_55 = arith.constant 0 : index
    %113 = vector.load %arg15[%c0_54, %c0_55] : memref<1x32xf32, #tpu.memory_space<vmem>>, vector<1x32xf32>
    %114 = vector.broadcast %113 : vector<1x32xf32> to vector<8x32xf32>
    %115 = arith.mulf %112, %114 : vector<8x32xf32>
    %c0_56 = arith.constant 0 : index
    %c0_57 = arith.constant 0 : index
    %116 = vector.load %arg16[%c0_56, %c0_57] : memref<1x32xf32, #tpu.memory_space<vmem>>, vector<1x32xf32>
    %117 = vector.broadcast %116 : vector<1x32xf32> to vector<8x32xf32>
    %118 = arith.addf %115, %117 : vector<8x32xf32>
    %c0_58 = arith.constant 0 : index
    %119 = memref.load %arg1[%c0_58] : memref<4xi32, #tpu.memory_space<smem>>
    %120 = vector.broadcast %119 : i32 to vector<1x8xi32>
    %121 = arith.cmpi eq, %0, %120 : vector<1x8xi32>
    %122 = arith.extui %121 : vector<1x8xi1> to vector<1x8xi32>
    %123 = arith.sitofp %122 : vector<1x8xi32> to vector<1x8xf32>
    %cst_59 = arith.constant dense<0.000000e+00> : vector<1x32xf32>
    %124 = tpu.matmul %123, %118, %cst_59 {dimension_numbers = #tpu.dot_dimension_numbers<[1], [0], [0], [1], [0, 0, 1, 1], [], []>} : vector<1x8xf32>, vector<8x32xf32>, vector<1x32xf32> -> vector<1x32xf32>
    %c0_60 = arith.constant 0 : index
    %c0_61 = arith.constant 0 : index
    %125 = vector.load %arg18[%c0_60, %c0_61] : memref<4x32xf32, #tpu.memory_space<vmem>>, vector<1x32xf32>
    tpu.vector_store %arg18[%c0_60, %c0_61], %124 {strides = array<i32>} : memref<4x32xf32, #tpu.memory_space<vmem>>, vector<1x32xf32>,
    %c1 = arith.constant 1 : index
    %c0_62 = arith.constant 0 : index
    %c0_63 = arith.constant 0 : index
    %126 = vector.load %arg2[%c1, %c0_62, %c0_63] : memref<4x8x32xf32, #tpu.memory_space<vmem>>, vector<1x8x32xf32>
    %127 = vector.shape_cast %126 : vector<1x8x32xf32> to vector<8x32xf32>
    %c0_64 = arith.constant 0 : index
    %c0_65 = arith.constant 0 : index
    %128 = vector.load %arg3[%c0_64, %c0_65] : memref<32x32xf32, #tpu.memory_space<vmem>>, vector<32x32xf32>
    %cst_66 = arith.constant dense<0.000000e+00> : vector<8x32xf32>
    %129 = tpu.matmul %127, %128, %cst_66 {dimension_numbers = #tpu.dot_dimension_numbers<[1], [0], [0], [1], [0, 0, 1, 1], [], []>} : vector<8x32xf32>, vector<32x32xf32>, vector<8x32xf32> -> vector<8x32xf32>
    %c0_67 = arith.constant 0 : index
    %c0_68 = arith.constant 0 : index
    %130 = vector.load %arg4[%c0_67, %c0_68] : memref<1x32xf32, #tpu.memory_space<vmem>>, vector<1x32xf32>
    %131 = vector.broadcast %130 : vector<1x32xf32> to vector<8x32xf32>
    %132 = arith.addf %129, %131 : vector<8x32xf32>
    %133 = math.tanh %132 : vector<8x32xf32>
    %c1_69 = arith.constant 1 : index
    %c0_70 = arith.constant 0 : index
    %c0_71 = arith.constant 0 : index
    %134 = vector.load %arg17[%c1_69, %c0_70, %c0_71] : memref<4x8x32xf32, #tpu.memory_space<vmem>>, vector<1x8x32xf32>
    %135 = vector.shape_cast %134 : vector<1x8x32xf32> to vector<8x32xf32>
    %136 = vector.shape_cast %133 : vector<8x32xf32> to vector<1x8x32xf32>
    tpu.vector_store %arg17[%c1_69, %c0_70, %c0_71], %136 {strides = array<i32>} : memref<4x8x32xf32, #tpu.memory_space<vmem>>, vector<1x8x32xf32>,
    %c0_72 = arith.constant 0 : index
    %c0_73 = arith.constant 0 : index
    %137 = vector.load %arg5[%c0_72, %c0_73] : memref<32x96xf32, #tpu.memory_space<vmem>>, vector<32x96xf32>
    %cst_74 = arith.constant dense<0.000000e+00> : vector<8x96xf32>
    %138 = tpu.matmul %133, %137, %cst_74 {dimension_numbers = #tpu.dot_dimension_numbers<[1], [0], [0], [1], [0, 0, 1, 1], [], []>} : vector<8x32xf32>, vector<32x96xf32>, vector<8x96xf32> -> vector<8x96xf32>
    %c0_75 = arith.constant 0 : index
    %c0_76 = arith.constant 0 : index
    %139 = vector.load %arg6[%c0_75, %c0_76] : memref<1x96xf32, #tpu.memory_space<vmem>>, vector<1x96xf32>
    %140 = vector.broadcast %139 : vector<1x96xf32> to vector<8x96xf32>
    %141 = arith.addf %138, %140 : vector<8x96xf32>
    %142 = vector.extract_strided_slice %141 {offsets = [0, 0], sizes = [8, 16], strides = [1, 1]} : vector<8x96xf32> to vector<8x16xf32>
    %cst_77 = arith.constant 2.500000e-01 : f32
    %143 = vector.broadcast %cst_77 : f32 to vector<8x16xf32>
    %144 = arith.mulf %142, %143 : vector<8x16xf32>
    %145 = vector.extract_strided_slice %141 {offsets = [0, 32], sizes = [8, 16], strides = [1, 1]} : vector<8x96xf32> to vector<8x16xf32>
    %146 = vector.extract_strided_slice %141 {offsets = [0, 64], sizes = [8, 16], strides = [1, 1]} : vector<8x96xf32> to vector<8x16xf32>
    %cst_78 = arith.constant dense<0.000000e+00> : vector<8x8xf32>
    %147 = tpu.matmul %144, %145, %cst_78 {dimension_numbers = #tpu.dot_dimension_numbers<[1], [1], [0], [0], [0, 0, 1, 0], [], []>} : vector<8x16xf32>, vector<8x16xf32>, vector<8x8xf32> -> vector<8x8xf32>
    %cst_79 = arith.constant dense<0xFF800000> : vector<8xf32>
    %148 = vector.multi_reduction <maximumf>, %147, %cst_79 [1] : vector<8x8xf32> to vector<8xf32>
    %149 = vector.shape_cast %148 : vector<8xf32> to vector<8x1xf32>
    %150 = vector.broadcast %149 : vector<8x1xf32> to vector<8x8xf32>
    %151 = arith.subf %147, %150 : vector<8x8xf32>
    %152 = math.exp %151 : vector<8x8xf32>
    %cst_80 = arith.constant dense<0.000000e+00> : vector<8xf32>
    %153 = vector.multi_reduction <add>, %152, %cst_80 [1] : vector<8x8xf32> to vector<8xf32>
    %154 = vector.shape_cast %153 : vector<8xf32> to vector<8x1xf32>
    %155 = tpu.reciprocal %154 {approx = true} : vector<8x1xf32> -> vector<8x1xf32>
    %156 = vector.broadcast %155 : vector<8x1xf32> to vector<8x8xf32>
    %157 = arith.mulf %152, %156 : vector<8x8xf32>
    %cst_81 = arith.constant dense<0.000000e+00> : vector<8x16xf32>
    %158 = tpu.matmul %157, %146, %cst_81 {dimension_numbers = #tpu.dot_dimension_numbers<[1], [0], [0], [1], [0, 0, 1, 1], [], []>} : vector<8x8xf32>, vector<8x16xf32>, vector<8x16xf32> -> vector<8x16xf32>
    %159 = vector.extract_strided_slice %141 {offsets = [0, 16], sizes = [8, 16], strides = [1, 1]} : vector<8x96xf32> to vector<8x16xf32>
    %cst_82 = arith.constant 2.500000e-01 : f32
    %160 = vector.broadcast %cst_82 : f32 to vector<8x16xf32>
    %161 = arith.mulf %159, %160 : vector<8x16xf32>
    %162 = vector.extract_strided_slice %141 {offsets = [0, 48], sizes = [8, 16], strides = [1, 1]} : vector<8x96xf32> to vector<8x16xf32>
    %163 = vector.extract_strided_slice %141 {offsets = [0, 80], sizes = [8, 16], strides = [1, 1]} : vector<8x96xf32> to vector<8x16xf32>
    %cst_83 = arith.constant dense<0.000000e+00> : vector<8x8xf32>
    %164 = tpu.matmul %161, %162, %cst_83 {dimension_numbers = #tpu.dot_dimension_numbers<[1], [1], [0], [0], [0, 0, 1, 0], [], []>} : vector<8x16xf32>, vector<8x16xf32>, vector<8x8xf32> -> vector<8x8xf32>
    %cst_84 = arith.constant dense<0xFF800000> : vector<8xf32>
    %165 = vector.multi_reduction <maximumf>, %164, %cst_84 [1] : vector<8x8xf32> to vector<8xf32>
    %166 = vector.shape_cast %165 : vector<8xf32> to vector<8x1xf32>
    %167 = vector.broadcast %166 : vector<8x1xf32> to vector<8x8xf32>
    %168 = arith.subf %164, %167 : vector<8x8xf32>
    %169 = math.exp %168 : vector<8x8xf32>
    %cst_85 = arith.constant dense<0.000000e+00> : vector<8xf32>
    %170 = vector.multi_reduction <add>, %169, %cst_85 [1] : vector<8x8xf32> to vector<8xf32>
    %171 = vector.shape_cast %170 : vector<8xf32> to vector<8x1xf32>
    %172 = tpu.reciprocal %171 {approx = true} : vector<8x1xf32> -> vector<8x1xf32>
    %173 = vector.broadcast %172 : vector<8x1xf32> to vector<8x8xf32>
    %174 = arith.mulf %169, %173 : vector<8x8xf32>
    %cst_86 = arith.constant dense<0.000000e+00> : vector<8x16xf32>
    %175 = tpu.matmul %174, %163, %cst_86 {dimension_numbers = #tpu.dot_dimension_numbers<[1], [0], [0], [1], [0, 0, 1, 1], [], []>} : vector<8x8xf32>, vector<8x16xf32>, vector<8x16xf32> -> vector<8x16xf32>
    %176 = tpu.concatenate %158, %175 in 1 : vector<8x16xf32>, vector<8x16xf32> -> vector<8x32xf32>
    %c0_87 = arith.constant 0 : index
    %c0_88 = arith.constant 0 : index
    %177 = vector.load %arg7[%c0_87, %c0_88] : memref<32x32xf32, #tpu.memory_space<vmem>>, vector<32x32xf32>
    %cst_89 = arith.constant dense<0.000000e+00> : vector<8x32xf32>
    %178 = tpu.matmul %176, %177, %cst_89 {dimension_numbers = #tpu.dot_dimension_numbers<[1], [0], [0], [1], [0, 0, 1, 1], [], []>} : vector<8x32xf32>, vector<32x32xf32>, vector<8x32xf32> -> vector<8x32xf32>
    %c0_90 = arith.constant 0 : index
    %c0_91 = arith.constant 0 : index
    %179 = vector.load %arg8[%c0_90, %c0_91] : memref<1x32xf32, #tpu.memory_space<vmem>>, vector<1x32xf32>
    %180 = vector.broadcast %179 : vector<1x32xf32> to vector<8x32xf32>
    %181 = arith.addf %178, %180 : vector<8x32xf32>
    %182 = arith.addf %133, %181 : vector<8x32xf32>
    %cst_92 = arith.constant dense<0.000000e+00> : vector<8xf32>
    %183 = vector.multi_reduction <add>, %182, %cst_92 [1] : vector<8x32xf32> to vector<8xf32>
    %184 = vector.shape_cast %183 : vector<8xf32> to vector<8x1xf32>
    %cst_93 = arith.constant 3.200000e+01 : f32
    %185 = vector.broadcast %cst_93 : f32 to vector<8x1xf32>
    %186 = arith.divf %184, %185 : vector<8x1xf32>
    %187 = vector.broadcast %186 : vector<8x1xf32> to vector<8x32xf32>
    %188 = arith.subf %182, %187 : vector<8x32xf32>
    %189 = arith.mulf %188, %188 : vector<8x32xf32>
    %cst_94 = arith.constant dense<0.000000e+00> : vector<8xf32>
    %190 = vector.multi_reduction <add>, %189, %cst_94 [1] : vector<8x32xf32> to vector<8xf32>
    %191 = vector.shape_cast %190 : vector<8xf32> to vector<8x1xf32>
    %cst_95 = arith.constant 3.200000e+01 : f32
    %192 = vector.broadcast %cst_95 : f32 to vector<8x1xf32>
    %193 = arith.divf %191, %192 : vector<8x1xf32>
    %194 = vector.broadcast %186 : vector<8x1xf32> to vector<8x32xf32>
    %195 = arith.subf %182, %194 : vector<8x32xf32>
    %cst_96 = arith.constant 9.99999974E-6 : f32
    %196 = vector.broadcast %cst_96 : f32 to vector<8x1xf32>
    %197 = arith.addf %193, %196 : vector<8x1xf32>
    %198 = math.rsqrt %197 : vector<8x1xf32>
    %199 = vector.broadcast %198 : vector<8x1xf32> to vector<8x32xf32>
    %200 = arith.mulf %195, %199 : vector<8x32xf32>
    %c0_97 = arith.constant 0 : index
    %c0_98 = arith.constant 0 : index
    %201 = vector.load %arg9[%c0_97, %c0_98] : memref<1x32xf32, #tpu.memory_space<vmem>>, vector<1x32xf32>
    %202 = vector.broadcast %201 : vector<1x32xf32> to vector<8x32xf32>
    %203 = arith.mulf %200, %202 : vector<8x32xf32>
    %c0_99 = arith.constant 0 : index
    %c0_100 = arith.constant 0 : index
    %204 = vector.load %arg10[%c0_99, %c0_100] : memref<1x32xf32, #tpu.memory_space<vmem>>, vector<1x32xf32>
    %205 = vector.broadcast %204 : vector<1x32xf32> to vector<8x32xf32>
    %206 = arith.addf %203, %205 : vector<8x32xf32>
    %c0_101 = arith.constant 0 : index
    %c0_102 = arith.constant 0 : index
    %207 = vector.load %arg11[%c0_101, %c0_102] : memref<32x128xf32, #tpu.memory_space<vmem>>, vector<32x128xf32>
    %cst_103 = arith.constant dense<0.000000e+00> : vector<8x128xf32>
    %208 = tpu.matmul %206, %207, %cst_103 {dimension_numbers = #tpu.dot_dimension_numbers<[1], [0], [0], [1], [0, 0, 1, 1], [], []>} : vector<8x32xf32>, vector<32x128xf32>, vector<8x128xf32> -> vector<8x128xf32>
    %c0_104 = arith.constant 0 : index
    %c0_105 = arith.constant 0 : index
    %209 = vector.load %arg12[%c0_104, %c0_105] : memref<1x128xf32, #tpu.memory_space<vmem>>, vector<1x128xf32>
    %210 = vector.broadcast %209 : vector<1x128xf32> to vector<8x128xf32>
    %211 = arith.addf %208, %210 : vector<8x128xf32>
    %cst_106 = arith.constant 0.000000e+00 : f32
    %212 = vector.broadcast %cst_106 : f32 to vector<8x128xf32>
    %213 = arith.maximumf %211, %212 : vector<8x128xf32>
    %c0_107 = arith.constant 0 : index
    %c0_108 = arith.constant 0 : index
    %214 = vector.load %arg13[%c0_107, %c0_108] : memref<128x32xf32, #tpu.memory_space<vmem>>, vector<128x32xf32>
    %cst_109 = arith.constant dense<0.000000e+00> : vector<8x32xf32>
    %215 = tpu.matmul %213, %214, %cst_109 {dimension_numbers = #tpu.dot_dimension_numbers<[1], [0], [0], [1], [0, 0, 1, 1], [], []>} : vector<8x128xf32>, vector<128x32xf32>, vector<8x32xf32> -> vector<8x32xf32>
    %c0_110 = arith.constant 0 : index
    %c0_111 = arith.constant 0 : index
    %216 = vector.load %arg14[%c0_110, %c0_111] : memref<1x32xf32, #tpu.memory_space<vmem>>, vector<1x32xf32>
    %217 = vector.broadcast %216 : vector<1x32xf32> to vector<8x32xf32>
    %218 = arith.addf %215, %217 : vector<8x32xf32>
    %219 = arith.addf %206, %218 : vector<8x32xf32>
    %cst_112 = arith.constant dense<0.000000e+00> : vector<8xf32>
    %220 = vector.multi_reduction <add>, %219, %cst_112 [1] : vector<8x32xf32> to vector<8xf32>
    %221 = vector.shape_cast %220 : vector<8xf32> to vector<8x1xf32>
    %cst_113 = arith.constant 3.200000e+01 : f32
    %222 = vector.broadcast %cst_113 : f32 to vector<8x1xf32>
    %223 = arith.divf %221, %222 : vector<8x1xf32>
    %224 = vector.broadcast %223 : vector<8x1xf32> to vector<8x32xf32>
    %225 = arith.subf %219, %224 : vector<8x32xf32>
    %226 = arith.mulf %225, %225 : vector<8x32xf32>
    %cst_114 = arith.constant dense<0.000000e+00> : vector<8xf32>
    %227 = vector.multi_reduction <add>, %226, %cst_114 [1] : vector<8x32xf32> to vector<8xf32>
    %228 = vector.shape_cast %227 : vector<8xf32> to vector<8x1xf32>
    %cst_115 = arith.constant 3.200000e+01 : f32
    %229 = vector.broadcast %cst_115 : f32 to vector<8x1xf32>
    %230 = arith.divf %228, %229 : vector<8x1xf32>
    %231 = vector.broadcast %223 : vector<8x1xf32> to vector<8x32xf32>
    %232 = arith.subf %219, %231 : vector<8x32xf32>
    %cst_116 = arith.constant 9.99999974E-6 : f32
    %233 = vector.broadcast %cst_116 : f32 to vector<8x1xf32>
    %234 = arith.addf %230, %233 : vector<8x1xf32>
    %235 = math.rsqrt %234 : vector<8x1xf32>
    %236 = vector.broadcast %235 : vector<8x1xf32> to vector<8x32xf32>
    %237 = arith.mulf %232, %236 : vector<8x32xf32>
    %c0_117 = arith.constant 0 : index
    %c0_118 = arith.constant 0 : index
    %238 = vector.load %arg15[%c0_117, %c0_118] : memref<1x32xf32, #tpu.memory_space<vmem>>, vector<1x32xf32>
    %239 = vector.broadcast %238 : vector<1x32xf32> to vector<8x32xf32>
    %240 = arith.mulf %237, %239 : vector<8x32xf32>
    %c0_119 = arith.constant 0 : index
    %c0_120 = arith.constant 0 : index
    %241 = vector.load %arg16[%c0_119, %c0_120] : memref<1x32xf32, #tpu.memory_space<vmem>>, vector<1x32xf32>
    %242 = vector.broadcast %241 : vector<1x32xf32> to vector<8x32xf32>
    %243 = arith.addf %240, %242 : vector<8x32xf32>
    %c1_121 = arith.constant 1 : index
    %244 = memref.load %arg1[%c1_121] : memref<4xi32, #tpu.memory_space<smem>>
    %245 = vector.broadcast %244 : i32 to vector<1x8xi32>
    %246 = arith.cmpi eq, %0, %245 : vector<1x8xi32>
    %247 = arith.extui %246 : vector<1x8xi1> to vector<1x8xi32>
    %248 = arith.sitofp %247 : vector<1x8xi32> to vector<1x8xf32>
    %cst_122 = arith.constant dense<0.000000e+00> : vector<1x32xf32>
    %249 = tpu.matmul %248, %243, %cst_122 {dimension_numbers = #tpu.dot_dimension_numbers<[1], [0], [0], [1], [0, 0, 1, 1], [], []>} : vector<1x8xf32>, vector<8x32xf32>, vector<1x32xf32> -> vector<1x32xf32>
    %c1_123 = arith.constant 1 : index
    %c0_124 = arith.constant 0 : index
    %250 = vector.load %arg18[%c1_123, %c0_124] : memref<4x32xf32, #tpu.memory_space<vmem>>, vector<1x32xf32>
    tpu.vector_store %arg18[%c1_123, %c0_124], %249 {strides = array<i32>} : memref<4x32xf32, #tpu.memory_space<vmem>>, vector<1x32xf32>,
    %c2 = arith.constant 2 : index
    %c0_125 = arith.constant 0 : index
    %c0_126 = arith.constant 0 : index
    %251 = vector.load %arg2[%c2, %c0_125, %c0_126] : memref<4x8x32xf32, #tpu.memory_space<vmem>>, vector<1x8x32xf32>
    %252 = vector.shape_cast %251 : vector<1x8x32xf32> to vector<8x32xf32>
    %c0_127 = arith.constant 0 : index
    %c0_128 = arith.constant 0 : index
    %253 = vector.load %arg3[%c0_127, %c0_128] : memref<32x32xf32, #tpu.memory_space<vmem>>, vector<32x32xf32>
    %cst_129 = arith.constant dense<0.000000e+00> : vector<8x32xf32>
    %254 = tpu.matmul %252, %253, %cst_129 {dimension_numbers = #tpu.dot_dimension_numbers<[1], [0], [0], [1], [0, 0, 1, 1], [], []>} : vector<8x32xf32>, vector<32x32xf32>, vector<8x32xf32> -> vector<8x32xf32>
    %c0_130 = arith.constant 0 : index
    %c0_131 = arith.constant 0 : index
    %255 = vector.load %arg4[%c0_130, %c0_131] : memref<1x32xf32, #tpu.memory_space<vmem>>, vector<1x32xf32>
    %256 = vector.broadcast %255 : vector<1x32xf32> to vector<8x32xf32>
    %257 = arith.addf %254, %256 : vector<8x32xf32>
    %258 = math.tanh %257 : vector<8x32xf32>
    %c2_132 = arith.constant 2 : index
    %c0_133 = arith.constant 0 : index
    %c0_134 = arith.constant 0 : index
    %259 = vector.load %arg17[%c2_132, %c0_133, %c0_134] : memref<4x8x32xf32, #tpu.memory_space<vmem>>, vector<1x8x32xf32>
    %260 = vector.shape_cast %259 : vector<1x8x32xf32> to vector<8x32xf32>
    %261 = vector.shape_cast %258 : vector<8x32xf32> to vector<1x8x32xf32>
    tpu.vector_store %arg17[%c2_132, %c0_133, %c0_134], %261 {strides = array<i32>} : memref<4x8x32xf32, #tpu.memory_space<vmem>>, vector<1x8x32xf32>,
    %c0_135 = arith.constant 0 : index
    %c0_136 = arith.constant 0 : index
    %262 = vector.load %arg5[%c0_135, %c0_136] : memref<32x96xf32, #tpu.memory_space<vmem>>, vector<32x96xf32>
    %cst_137 = arith.constant dense<0.000000e+00> : vector<8x96xf32>
    %263 = tpu.matmul %258, %262, %cst_137 {dimension_numbers = #tpu.dot_dimension_numbers<[1], [0], [0], [1], [0, 0, 1, 1], [], []>} : vector<8x32xf32>, vector<32x96xf32>, vector<8x96xf32> -> vector<8x96xf32>
    %c0_138 = arith.constant 0 : index
    %c0_139 = arith.constant 0 : index
    %264 = vector.load %arg6[%c0_138, %c0_139] : memref<1x96xf32, #tpu.memory_space<vmem>>, vector<1x96xf32>
    %265 = vector.broadcast %264 : vector<1x96xf32> to vector<8x96xf32>
    %266 = arith.addf %263, %265 : vector<8x96xf32>
    %267 = vector.extract_strided_slice %266 {offsets = [0, 0], sizes = [8, 16], strides = [1, 1]} : vector<8x96xf32> to vector<8x16xf32>
    %cst_140 = arith.constant 2.500000e-01 : f32
    %268 = vector.broadcast %cst_140 : f32 to vector<8x16xf32>
    %269 = arith.mulf %267, %268 : vector<8x16xf32>
    %270 = vector.extract_strided_slice %266 {offsets = [0, 32], sizes = [8, 16], strides = [1, 1]} : vector<8x96xf32> to vector<8x16xf32>
    %271 = vector.extract_strided_slice %266 {offsets = [0, 64], sizes = [8, 16], strides = [1, 1]} : vector<8x96xf32> to vector<8x16xf32>
    %cst_141 = arith.constant dense<0.000000e+00> : vector<8x8xf32>
    %272 = tpu.matmul %269, %270, %cst_141 {dimension_numbers = #tpu.dot_dimension_numbers<[1], [1], [0], [0], [0, 0, 1, 0], [], []>} : vector<8x16xf32>, vector<8x16xf32>, vector<8x8xf32> -> vector<8x8xf32>
    %cst_142 = arith.constant dense<0xFF800000> : vector<8xf32>
    %273 = vector.multi_reduction <maximumf>, %272, %cst_142 [1] : vector<8x8xf32> to vector<8xf32>
    %274 = vector.shape_cast %273 : vector<8xf32> to vector<8x1xf32>
    %275 = vector.broadcast %274 : vector<8x1xf32> to vector<8x8xf32>
    %276 = arith.subf %272, %275 : vector<8x8xf32>
    %277 = math.exp %276 : vector<8x8xf32>
    %cst_143 = arith.constant dense<0.000000e+00> : vector<8xf32>
    %278 = vector.multi_reduction <add>, %277, %cst_143 [1] : vector<8x8xf32> to vector<8xf32>
    %279 = vector.shape_cast %278 : vector<8xf32> to vector<8x1xf32>
    %280 = tpu.reciprocal %279 {approx = true} : vector<8x1xf32> -> vector<8x1xf32>
    %281 = vector.broadcast %280 : vector<8x1xf32> to vector<8x8xf32>
    %282 = arith.mulf %277, %281 : vector<8x8xf32>
    %cst_144 = arith.constant dense<0.000000e+00> : vector<8x16xf32>
    %283 = tpu.matmul %282, %271, %cst_144 {dimension_numbers = #tpu.dot_dimension_numbers<[1], [0], [0], [1], [0, 0, 1, 1], [], []>} : vector<8x8xf32>, vector<8x16xf32>, vector<8x16xf32> -> vector<8x16xf32>
    %284 = vector.extract_strided_slice %266 {offsets = [0, 16], sizes = [8, 16], strides = [1, 1]} : vector<8x96xf32> to vector<8x16xf32>
    %cst_145 = arith.constant 2.500000e-01 : f32
    %285 = vector.broadcast %cst_145 : f32 to vector<8x16xf32>
    %286 = arith.mulf %284, %285 : vector<8x16xf32>
    %287 = vector.extract_strided_slice %266 {offsets = [0, 48], sizes = [8, 16], strides = [1, 1]} : vector<8x96xf32> to vector<8x16xf32>
    %288 = vector.extract_strided_slice %266 {offsets = [0, 80], sizes = [8, 16], strides = [1, 1]} : vector<8x96xf32> to vector<8x16xf32>
    %cst_146 = arith.constant dense<0.000000e+00> : vector<8x8xf32>
    %289 = tpu.matmul %286, %287, %cst_146 {dimension_numbers = #tpu.dot_dimension_numbers<[1], [1], [0], [0], [0, 0, 1, 0], [], []>} : vector<8x16xf32>, vector<8x16xf32>, vector<8x8xf32> -> vector<8x8xf32>
    %cst_147 = arith.constant dense<0xFF800000> : vector<8xf32>
    %290 = vector.multi_reduction <maximumf>, %289, %cst_147 [1] : vector<8x8xf32> to vector<8xf32>
    %291 = vector.shape_cast %290 : vector<8xf32> to vector<8x1xf32>
    %292 = vector.broadcast %291 : vector<8x1xf32> to vector<8x8xf32>
    %293 = arith.subf %289, %292 : vector<8x8xf32>
    %294 = math.exp %293 : vector<8x8xf32>
    %cst_148 = arith.constant dense<0.000000e+00> : vector<8xf32>
    %295 = vector.multi_reduction <add>, %294, %cst_148 [1] : vector<8x8xf32> to vector<8xf32>
    %296 = vector.shape_cast %295 : vector<8xf32> to vector<8x1xf32>
    %297 = tpu.reciprocal %296 {approx = true} : vector<8x1xf32> -> vector<8x1xf32>
    %298 = vector.broadcast %297 : vector<8x1xf32> to vector<8x8xf32>
    %299 = arith.mulf %294, %298 : vector<8x8xf32>
    %cst_149 = arith.constant dense<0.000000e+00> : vector<8x16xf32>
    %300 = tpu.matmul %299, %288, %cst_149 {dimension_numbers = #tpu.dot_dimension_numbers<[1], [0], [0], [1], [0, 0, 1, 1], [], []>} : vector<8x8xf32>, vector<8x16xf32>, vector<8x16xf32> -> vector<8x16xf32>
    %301 = tpu.concatenate %283, %300 in 1 : vector<8x16xf32>, vector<8x16xf32> -> vector<8x32xf32>
    %c0_150 = arith.constant 0 : index
    %c0_151 = arith.constant 0 : index
    %302 = vector.load %arg7[%c0_150, %c0_151] : memref<32x32xf32, #tpu.memory_space<vmem>>, vector<32x32xf32>
    %cst_152 = arith.constant dense<0.000000e+00> : vector<8x32xf32>
    %303 = tpu.matmul %301, %302, %cst_152 {dimension_numbers = #tpu.dot_dimension_numbers<[1], [0], [0], [1], [0, 0, 1, 1], [], []>} : vector<8x32xf32>, vector<32x32xf32>, vector<8x32xf32> -> vector<8x32xf32>
    %c0_153 = arith.constant 0 : index
    %c0_154 = arith.constant 0 : index
    %304 = vector.load %arg8[%c0_153, %c0_154] : memref<1x32xf32, #tpu.memory_space<vmem>>, vector<1x32xf32>
    %305 = vector.broadcast %304 : vector<1x32xf32> to vector<8x32xf32>
    %306 = arith.addf %303, %305 : vector<8x32xf32>
    %307 = arith.addf %258, %306 : vector<8x32xf32>
    %cst_155 = arith.constant dense<0.000000e+00> : vector<8xf32>
    %308 = vector.multi_reduction <add>, %307, %cst_155 [1] : vector<8x32xf32> to vector<8xf32>
    %309 = vector.shape_cast %308 : vector<8xf32> to vector<8x1xf32>
    %cst_156 = arith.constant 3.200000e+01 : f32
    %310 = vector.broadcast %cst_156 : f32 to vector<8x1xf32>
    %311 = arith.divf %309, %310 : vector<8x1xf32>
    %312 = vector.broadcast %311 : vector<8x1xf32> to vector<8x32xf32>
    %313 = arith.subf %307, %312 : vector<8x32xf32>
    %314 = arith.mulf %313, %313 : vector<8x32xf32>
    %cst_157 = arith.constant dense<0.000000e+00> : vector<8xf32>
    %315 = vector.multi_reduction <add>, %314, %cst_157 [1] : vector<8x32xf32> to vector<8xf32>
    %316 = vector.shape_cast %315 : vector<8xf32> to vector<8x1xf32>
    %cst_158 = arith.constant 3.200000e+01 : f32
    %317 = vector.broadcast %cst_158 : f32 to vector<8x1xf32>
    %318 = arith.divf %316, %317 : vector<8x1xf32>
    %319 = vector.broadcast %311 : vector<8x1xf32> to vector<8x32xf32>
    %320 = arith.subf %307, %319 : vector<8x32xf32>
    %cst_159 = arith.constant 9.99999974E-6 : f32
    %321 = vector.broadcast %cst_159 : f32 to vector<8x1xf32>
    %322 = arith.addf %318, %321 : vector<8x1xf32>
    %323 = math.rsqrt %322 : vector<8x1xf32>
    %324 = vector.broadcast %323 : vector<8x1xf32> to vector<8x32xf32>
    %325 = arith.mulf %320, %324 : vector<8x32xf32>
    %c0_160 = arith.constant 0 : index
    %c0_161 = arith.constant 0 : index
    %326 = vector.load %arg9[%c0_160, %c0_161] : memref<1x32xf32, #tpu.memory_space<vmem>>, vector<1x32xf32>
    %327 = vector.broadcast %326 : vector<1x32xf32> to vector<8x32xf32>
    %328 = arith.mulf %325, %327 : vector<8x32xf32>
    %c0_162 = arith.constant 0 : index
    %c0_163 = arith.constant 0 : index
    %329 = vector.load %arg10[%c0_162, %c0_163] : memref<1x32xf32, #tpu.memory_space<vmem>>, vector<1x32xf32>
    %330 = vector.broadcast %329 : vector<1x32xf32> to vector<8x32xf32>
    %331 = arith.addf %328, %330 : vector<8x32xf32>
    %c0_164 = arith.constant 0 : index
    %c0_165 = arith.constant 0 : index
    %332 = vector.load %arg11[%c0_164, %c0_165] : memref<32x128xf32, #tpu.memory_space<vmem>>, vector<32x128xf32>
    %cst_166 = arith.constant dense<0.000000e+00> : vector<8x128xf32>
    %333 = tpu.matmul %331, %332, %cst_166 {dimension_numbers = #tpu.dot_dimension_numbers<[1], [0], [0], [1], [0, 0, 1, 1], [], []>} : vector<8x32xf32>, vector<32x128xf32>, vector<8x128xf32> -> vector<8x128xf32>
    %c0_167 = arith.constant 0 : index
    %c0_168 = arith.constant 0 : index
    %334 = vector.load %arg12[%c0_167, %c0_168] : memref<1x128xf32, #tpu.memory_space<vmem>>, vector<1x128xf32>
    %335 = vector.broadcast %334 : vector<1x128xf32> to vector<8x128xf32>
    %336 = arith.addf %333, %335 : vector<8x128xf32>
    %cst_169 = arith.constant 0.000000e+00 : f32
    %337 = vector.broadcast %cst_169 : f32 to vector<8x128xf32>
    %338 = arith.maximumf %336, %337 : vector<8x128xf32>
    %c0_170 = arith.constant 0 : index
    %c0_171 = arith.constant 0 : index
    %339 = vector.load %arg13[%c0_170, %c0_171] : memref<128x32xf32, #tpu.memory_space<vmem>>, vector<128x32xf32>
    %cst_172 = arith.constant dense<0.000000e+00> : vector<8x32xf32>
    %340 = tpu.matmul %338, %339, %cst_172 {dimension_numbers = #tpu.dot_dimension_numbers<[1], [0], [0], [1], [0, 0, 1, 1], [], []>} : vector<8x128xf32>, vector<128x32xf32>, vector<8x32xf32> -> vector<8x32xf32>
    %c0_173 = arith.constant 0 : index
    %c0_174 = arith.constant 0 : index
    %341 = vector.load %arg14[%c0_173, %c0_174] : memref<1x32xf32, #tpu.memory_space<vmem>>, vector<1x32xf32>
    %342 = vector.broadcast %341 : vector<1x32xf32> to vector<8x32xf32>
    %343 = arith.addf %340, %342 : vector<8x32xf32>
    %344 = arith.addf %331, %343 : vector<8x32xf32>
    %cst_175 = arith.constant dense<0.000000e+00> : vector<8xf32>
    %345 = vector.multi_reduction <add>, %344, %cst_175 [1] : vector<8x32xf32> to vector<8xf32>
    %346 = vector.shape_cast %345 : vector<8xf32> to vector<8x1xf32>
    %cst_176 = arith.constant 3.200000e+01 : f32
    %347 = vector.broadcast %cst_176 : f32 to vector<8x1xf32>
    %348 = arith.divf %346, %347 : vector<8x1xf32>
    %349 = vector.broadcast %348 : vector<8x1xf32> to vector<8x32xf32>
    %350 = arith.subf %344, %349 : vector<8x32xf32>
    %351 = arith.mulf %350, %350 : vector<8x32xf32>
    %cst_177 = arith.constant dense<0.000000e+00> : vector<8xf32>
    %352 = vector.multi_reduction <add>, %351, %cst_177 [1] : vector<8x32xf32> to vector<8xf32>
    %353 = vector.shape_cast %352 : vector<8xf32> to vector<8x1xf32>
    %cst_178 = arith.constant 3.200000e+01 : f32
    %354 = vector.broadcast %cst_178 : f32 to vector<8x1xf32>
    %355 = arith.divf %353, %354 : vector<8x1xf32>
    %356 = vector.broadcast %348 : vector<8x1xf32> to vector<8x32xf32>
    %357 = arith.subf %344, %356 : vector<8x32xf32>
    %cst_179 = arith.constant 9.99999974E-6 : f32
    %358 = vector.broadcast %cst_179 : f32 to vector<8x1xf32>
    %359 = arith.addf %355, %358 : vector<8x1xf32>
    %360 = math.rsqrt %359 : vector<8x1xf32>
    %361 = vector.broadcast %360 : vector<8x1xf32> to vector<8x32xf32>
    %362 = arith.mulf %357, %361 : vector<8x32xf32>
    %c0_180 = arith.constant 0 : index
    %c0_181 = arith.constant 0 : index
    %363 = vector.load %arg15[%c0_180, %c0_181] : memref<1x32xf32, #tpu.memory_space<vmem>>, vector<1x32xf32>
    %364 = vector.broadcast %363 : vector<1x32xf32> to vector<8x32xf32>
    %365 = arith.mulf %362, %364 : vector<8x32xf32>
    %c0_182 = arith.constant 0 : index
    %c0_183 = arith.constant 0 : index
    %366 = vector.load %arg16[%c0_182, %c0_183] : memref<1x32xf32, #tpu.memory_space<vmem>>, vector<1x32xf32>
    %367 = vector.broadcast %366 : vector<1x32xf32> to vector<8x32xf32>
    %368 = arith.addf %365, %367 : vector<8x32xf32>
    %c2_184 = arith.constant 2 : index
    %369 = memref.load %arg1[%c2_184] : memref<4xi32, #tpu.memory_space<smem>>
    %370 = vector.broadcast %369 : i32 to vector<1x8xi32>
    %371 = arith.cmpi eq, %0, %370 : vector<1x8xi32>
    %372 = arith.extui %371 : vector<1x8xi1> to vector<1x8xi32>
    %373 = arith.sitofp %372 : vector<1x8xi32> to vector<1x8xf32>
    %cst_185 = arith.constant dense<0.000000e+00> : vector<1x32xf32>
    %374 = tpu.matmul %373, %368, %cst_185 {dimension_numbers = #tpu.dot_dimension_numbers<[1], [0], [0], [1], [0, 0, 1, 1], [], []>} : vector<1x8xf32>, vector<8x32xf32>, vector<1x32xf32> -> vector<1x32xf32>
    %c2_186 = arith.constant 2 : index
    %c0_187 = arith.constant 0 : index
    %375 = vector.load %arg18[%c2_186, %c0_187] : memref<4x32xf32, #tpu.memory_space<vmem>>, vector<1x32xf32>
    tpu.vector_store %arg18[%c2_186, %c0_187], %374 {strides = array<i32>} : memref<4x32xf32, #tpu.memory_space<vmem>>, vector<1x32xf32>,
    %c3 = arith.constant 3 : index
    %c0_188 = arith.constant 0 : index
    %c0_189 = arith.constant 0 : index
    %376 = vector.load %arg2[%c3, %c0_188, %c0_189] : memref<4x8x32xf32, #tpu.memory_space<vmem>>, vector<1x8x32xf32>
    %377 = vector.shape_cast %376 : vector<1x8x32xf32> to vector<8x32xf32>
    %c0_190 = arith.constant 0 : index
    %c0_191 = arith.constant 0 : index
    %378 = vector.load %arg3[%c0_190, %c0_191] : memref<32x32xf32, #tpu.memory_space<vmem>>, vector<32x32xf32>
    %cst_192 = arith.constant dense<0.000000e+00> : vector<8x32xf32>
    %379 = tpu.matmul %377, %378, %cst_192 {dimension_numbers = #tpu.dot_dimension_numbers<[1], [0], [0], [1], [0, 0, 1, 1], [], []>} : vector<8x32xf32>, vector<32x32xf32>, vector<8x32xf32> -> vector<8x32xf32>
    %c0_193 = arith.constant 0 : index
    %c0_194 = arith.constant 0 : index
    %380 = vector.load %arg4[%c0_193, %c0_194] : memref<1x32xf32, #tpu.memory_space<vmem>>, vector<1x32xf32>
    %381 = vector.broadcast %380 : vector<1x32xf32> to vector<8x32xf32>
    %382 = arith.addf %379, %381 : vector<8x32xf32>
    %383 = math.tanh %382 : vector<8x32xf32>
    %c3_195 = arith.constant 3 : index
    %c0_196 = arith.constant 0 : index
    %c0_197 = arith.constant 0 : index
    %384 = vector.load %arg17[%c3_195, %c0_196, %c0_197] : memref<4x8x32xf32, #tpu.memory_space<vmem>>, vector<1x8x32xf32>
    %385 = vector.shape_cast %384 : vector<1x8x32xf32> to vector<8x32xf32>
    %386 = vector.shape_cast %383 : vector<8x32xf32> to vector<1x8x32xf32>
    tpu.vector_store %arg17[%c3_195, %c0_196, %c0_197], %386 {strides = array<i32>} : memref<4x8x32xf32, #tpu.memory_space<vmem>>, vector<1x8x32xf32>,
    %c0_198 = arith.constant 0 : index
    %c0_199 = arith.constant 0 : index
    %387 = vector.load %arg5[%c0_198, %c0_199] : memref<32x96xf32, #tpu.memory_space<vmem>>, vector<32x96xf32>
    %cst_200 = arith.constant dense<0.000000e+00> : vector<8x96xf32>
    %388 = tpu.matmul %383, %387, %cst_200 {dimension_numbers = #tpu.dot_dimension_numbers<[1], [0], [0], [1], [0, 0, 1, 1], [], []>} : vector<8x32xf32>, vector<32x96xf32>, vector<8x96xf32> -> vector<8x96xf32>
    %c0_201 = arith.constant 0 : index
    %c0_202 = arith.constant 0 : index
    %389 = vector.load %arg6[%c0_201, %c0_202] : memref<1x96xf32, #tpu.memory_space<vmem>>, vector<1x96xf32>
    %390 = vector.broadcast %389 : vector<1x96xf32> to vector<8x96xf32>
    %391 = arith.addf %388, %390 : vector<8x96xf32>
    %392 = vector.extract_strided_slice %391 {offsets = [0, 0], sizes = [8, 16], strides = [1, 1]} : vector<8x96xf32> to vector<8x16xf32>
    %cst_203 = arith.constant 2.500000e-01 : f32
    %393 = vector.broadcast %cst_203 : f32 to vector<8x16xf32>
    %394 = arith.mulf %392, %393 : vector<8x16xf32>
    %395 = vector.extract_strided_slice %391 {offsets = [0, 32], sizes = [8, 16], strides = [1, 1]} : vector<8x96xf32> to vector<8x16xf32>
    %396 = vector.extract_strided_slice %391 {offsets = [0, 64], sizes = [8, 16], strides = [1, 1]} : vector<8x96xf32> to vector<8x16xf32>
    %cst_204 = arith.constant dense<0.000000e+00> : vector<8x8xf32>
    %397 = tpu.matmul %394, %395, %cst_204 {dimension_numbers = #tpu.dot_dimension_numbers<[1], [1], [0], [0], [0, 0, 1, 0], [], []>} : vector<8x16xf32>, vector<8x16xf32>, vector<8x8xf32> -> vector<8x8xf32>
    %cst_205 = arith.constant dense<0xFF800000> : vector<8xf32>
    %398 = vector.multi_reduction <maximumf>, %397, %cst_205 [1] : vector<8x8xf32> to vector<8xf32>
    %399 = vector.shape_cast %398 : vector<8xf32> to vector<8x1xf32>
    %400 = vector.broadcast %399 : vector<8x1xf32> to vector<8x8xf32>
    %401 = arith.subf %397, %400 : vector<8x8xf32>
    %402 = math.exp %401 : vector<8x8xf32>
    %cst_206 = arith.constant dense<0.000000e+00> : vector<8xf32>
    %403 = vector.multi_reduction <add>, %402, %cst_206 [1] : vector<8x8xf32> to vector<8xf32>
    %404 = vector.shape_cast %403 : vector<8xf32> to vector<8x1xf32>
    %405 = tpu.reciprocal %404 {approx = true} : vector<8x1xf32> -> vector<8x1xf32>
    %406 = vector.broadcast %405 : vector<8x1xf32> to vector<8x8xf32>
    %407 = arith.mulf %402, %406 : vector<8x8xf32>
    %cst_207 = arith.constant dense<0.000000e+00> : vector<8x16xf32>
    %408 = tpu.matmul %407, %396, %cst_207 {dimension_numbers = #tpu.dot_dimension_numbers<[1], [0], [0], [1], [0, 0, 1, 1], [], []>} : vector<8x8xf32>, vector<8x16xf32>, vector<8x16xf32> -> vector<8x16xf32>
    %409 = vector.extract_strided_slice %391 {offsets = [0, 16], sizes = [8, 16], strides = [1, 1]} : vector<8x96xf32> to vector<8x16xf32>
    %cst_208 = arith.constant 2.500000e-01 : f32
    %410 = vector.broadcast %cst_208 : f32 to vector<8x16xf32>
    %411 = arith.mulf %409, %410 : vector<8x16xf32>
    %412 = vector.extract_strided_slice %391 {offsets = [0, 48], sizes = [8, 16], strides = [1, 1]} : vector<8x96xf32> to vector<8x16xf32>
    %413 = vector.extract_strided_slice %391 {offsets = [0, 80], sizes = [8, 16], strides = [1, 1]} : vector<8x96xf32> to vector<8x16xf32>
    %cst_209 = arith.constant dense<0.000000e+00> : vector<8x8xf32>
    %414 = tpu.matmul %411, %412, %cst_209 {dimension_numbers = #tpu.dot_dimension_numbers<[1], [1], [0], [0], [0, 0, 1, 0], [], []>} : vector<8x16xf32>, vector<8x16xf32>, vector<8x8xf32> -> vector<8x8xf32>
    %cst_210 = arith.constant dense<0xFF800000> : vector<8xf32>
    %415 = vector.multi_reduction <maximumf>, %414, %cst_210 [1] : vector<8x8xf32> to vector<8xf32>
    %416 = vector.shape_cast %415 : vector<8xf32> to vector<8x1xf32>
    %417 = vector.broadcast %416 : vector<8x1xf32> to vector<8x8xf32>
    %418 = arith.subf %414, %417 : vector<8x8xf32>
    %419 = math.exp %418 : vector<8x8xf32>
    %cst_211 = arith.constant dense<0.000000e+00> : vector<8xf32>
    %420 = vector.multi_reduction <add>, %419, %cst_211 [1] : vector<8x8xf32> to vector<8xf32>
    %421 = vector.shape_cast %420 : vector<8xf32> to vector<8x1xf32>
    %422 = tpu.reciprocal %421 {approx = true} : vector<8x1xf32> -> vector<8x1xf32>
    %423 = vector.broadcast %422 : vector<8x1xf32> to vector<8x8xf32>
    %424 = arith.mulf %419, %423 : vector<8x8xf32>
    %cst_212 = arith.constant dense<0.000000e+00> : vector<8x16xf32>
    %425 = tpu.matmul %424, %413, %cst_212 {dimension_numbers = #tpu.dot_dimension_numbers<[1], [0], [0], [1], [0, 0, 1, 1], [], []>} : vector<8x8xf32>, vector<8x16xf32>, vector<8x16xf32> -> vector<8x16xf32>
    %426 = tpu.concatenate %408, %425 in 1 : vector<8x16xf32>, vector<8x16xf32> -> vector<8x32xf32>
    %c0_213 = arith.constant 0 : index
    %c0_214 = arith.constant 0 : index
    %427 = vector.load %arg7[%c0_213, %c0_214] : memref<32x32xf32, #tpu.memory_space<vmem>>, vector<32x32xf32>
    %cst_215 = arith.constant dense<0.000000e+00> : vector<8x32xf32>
    %428 = tpu.matmul %426, %427, %cst_215 {dimension_numbers = #tpu.dot_dimension_numbers<[1], [0], [0], [1], [0, 0, 1, 1], [], []>} : vector<8x32xf32>, vector<32x32xf32>, vector<8x32xf32> -> vector<8x32xf32>
    %c0_216 = arith.constant 0 : index
    %c0_217 = arith.constant 0 : index
    %429 = vector.load %arg8[%c0_216, %c0_217] : memref<1x32xf32, #tpu.memory_space<vmem>>, vector<1x32xf32>
    %430 = vector.broadcast %429 : vector<1x32xf32> to vector<8x32xf32>
    %431 = arith.addf %428, %430 : vector<8x32xf32>
    %432 = arith.addf %383, %431 : vector<8x32xf32>
    %cst_218 = arith.constant dense<0.000000e+00> : vector<8xf32>
    %433 = vector.multi_reduction <add>, %432, %cst_218 [1] : vector<8x32xf32> to vector<8xf32>
    %434 = vector.shape_cast %433 : vector<8xf32> to vector<8x1xf32>
    %cst_219 = arith.constant 3.200000e+01 : f32
    %435 = vector.broadcast %cst_219 : f32 to vector<8x1xf32>
    %436 = arith.divf %434, %435 : vector<8x1xf32>
    %437 = vector.broadcast %436 : vector<8x1xf32> to vector<8x32xf32>
    %438 = arith.subf %432, %437 : vector<8x32xf32>
    %439 = arith.mulf %438, %438 : vector<8x32xf32>
    %cst_220 = arith.constant dense<0.000000e+00> : vector<8xf32>
    %440 = vector.multi_reduction <add>, %439, %cst_220 [1] : vector<8x32xf32> to vector<8xf32>
    %441 = vector.shape_cast %440 : vector<8xf32> to vector<8x1xf32>
    %cst_221 = arith.constant 3.200000e+01 : f32
    %442 = vector.broadcast %cst_221 : f32 to vector<8x1xf32>
    %443 = arith.divf %441, %442 : vector<8x1xf32>
    %444 = vector.broadcast %436 : vector<8x1xf32> to vector<8x32xf32>
    %445 = arith.subf %432, %444 : vector<8x32xf32>
    %cst_222 = arith.constant 9.99999974E-6 : f32
    %446 = vector.broadcast %cst_222 : f32 to vector<8x1xf32>
    %447 = arith.addf %443, %446 : vector<8x1xf32>
    %448 = math.rsqrt %447 : vector<8x1xf32>
    %449 = vector.broadcast %448 : vector<8x1xf32> to vector<8x32xf32>
    %450 = arith.mulf %445, %449 : vector<8x32xf32>
    %c0_223 = arith.constant 0 : index
    %c0_224 = arith.constant 0 : index
    %451 = vector.load %arg9[%c0_223, %c0_224] : memref<1x32xf32, #tpu.memory_space<vmem>>, vector<1x32xf32>
    %452 = vector.broadcast %451 : vector<1x32xf32> to vector<8x32xf32>
    %453 = arith.mulf %450, %452 : vector<8x32xf32>
    %c0_225 = arith.constant 0 : index
    %c0_226 = arith.constant 0 : index
    %454 = vector.load %arg10[%c0_225, %c0_226] : memref<1x32xf32, #tpu.memory_space<vmem>>, vector<1x32xf32>
    %455 = vector.broadcast %454 : vector<1x32xf32> to vector<8x32xf32>
    %456 = arith.addf %453, %455 : vector<8x32xf32>
    %c0_227 = arith.constant 0 : index
    %c0_228 = arith.constant 0 : index
    %457 = vector.load %arg11[%c0_227, %c0_228] : memref<32x128xf32, #tpu.memory_space<vmem>>, vector<32x128xf32>
    %cst_229 = arith.constant dense<0.000000e+00> : vector<8x128xf32>
    %458 = tpu.matmul %456, %457, %cst_229 {dimension_numbers = #tpu.dot_dimension_numbers<[1], [0], [0], [1], [0, 0, 1, 1], [], []>} : vector<8x32xf32>, vector<32x128xf32>, vector<8x128xf32> -> vector<8x128xf32>
    %c0_230 = arith.constant 0 : index
    %c0_231 = arith.constant 0 : index
    %459 = vector.load %arg12[%c0_230, %c0_231] : memref<1x128xf32, #tpu.memory_space<vmem>>, vector<1x128xf32>
    %460 = vector.broadcast %459 : vector<1x128xf32> to vector<8x128xf32>
    %461 = arith.addf %458, %460 : vector<8x128xf32>
    %cst_232 = arith.constant 0.000000e+00 : f32
    %462 = vector.broadcast %cst_232 : f32 to vector<8x128xf32>
    %463 = arith.maximumf %461, %462 : vector<8x128xf32>
    %c0_233 = arith.constant 0 : index
    %c0_234 = arith.constant 0 : index
    %464 = vector.load %arg13[%c0_233, %c0_234] : memref<128x32xf32, #tpu.memory_space<vmem>>, vector<128x32xf32>
    %cst_235 = arith.constant dense<0.000000e+00> : vector<8x32xf32>
    %465 = tpu.matmul %463, %464, %cst_235 {dimension_numbers = #tpu.dot_dimension_numbers<[1], [0], [0], [1], [0, 0, 1, 1], [], []>} : vector<8x128xf32>, vector<128x32xf32>, vector<8x32xf32> -> vector<8x32xf32>
    %c0_236 = arith.constant 0 : index
    %c0_237 = arith.constant 0 : index
    %466 = vector.load %arg14[%c0_236, %c0_237] : memref<1x32xf32, #tpu.memory_space<vmem>>, vector<1x32xf32>
    %467 = vector.broadcast %466 : vector<1x32xf32> to vector<8x32xf32>
    %468 = arith.addf %465, %467 : vector<8x32xf32>
    %469 = arith.addf %456, %468 : vector<8x32xf32>
    %cst_238 = arith.constant dense<0.000000e+00> : vector<8xf32>
    %470 = vector.multi_reduction <add>, %469, %cst_238 [1] : vector<8x32xf32> to vector<8xf32>
    %471 = vector.shape_cast %470 : vector<8xf32> to vector<8x1xf32>
    %cst_239 = arith.constant 3.200000e+01 : f32
    %472 = vector.broadcast %cst_239 : f32 to vector<8x1xf32>
    %473 = arith.divf %471, %472 : vector<8x1xf32>
    %474 = vector.broadcast %473 : vector<8x1xf32> to vector<8x32xf32>
    %475 = arith.subf %469, %474 : vector<8x32xf32>
    %476 = arith.mulf %475, %475 : vector<8x32xf32>
    %cst_240 = arith.constant dense<0.000000e+00> : vector<8xf32>
    %477 = vector.multi_reduction <add>, %476, %cst_240 [1] : vector<8x32xf32> to vector<8xf32>
    %478 = vector.shape_cast %477 : vector<8xf32> to vector<8x1xf32>
    %cst_241 = arith.constant 3.200000e+01 : f32
    %479 = vector.broadcast %cst_241 : f32 to vector<8x1xf32>
    %480 = arith.divf %478, %479 : vector<8x1xf32>
    %481 = vector.broadcast %473 : vector<8x1xf32> to vector<8x32xf32>
    %482 = arith.subf %469, %481 : vector<8x32xf32>
    %cst_242 = arith.constant 9.99999974E-6 : f32
    %483 = vector.broadcast %cst_242 : f32 to vector<8x1xf32>
    %484 = arith.addf %480, %483 : vector<8x1xf32>
    %485 = math.rsqrt %484 : vector<8x1xf32>
    %486 = vector.broadcast %485 : vector<8x1xf32> to vector<8x32xf32>
    %487 = arith.mulf %482, %486 : vector<8x32xf32>
    %c0_243 = arith.constant 0 : index
    %c0_244 = arith.constant 0 : index
    %488 = vector.load %arg15[%c0_243, %c0_244] : memref<1x32xf32, #tpu.memory_space<vmem>>, vector<1x32xf32>
    %489 = vector.broadcast %488 : vector<1x32xf32> to vector<8x32xf32>
    %490 = arith.mulf %487, %489 : vector<8x32xf32>
    %c0_245 = arith.constant 0 : index
    %c0_246 = arith.constant 0 : index
    %491 = vector.load %arg16[%c0_245, %c0_246] : memref<1x32xf32, #tpu.memory_space<vmem>>, vector<1x32xf32>
    %492 = vector.broadcast %491 : vector<1x32xf32> to vector<8x32xf32>
    %493 = arith.addf %490, %492 : vector<8x32xf32>
    %c3_247 = arith.constant 3 : index
    %494 = memref.load %arg1[%c3_247] : memref<4xi32, #tpu.memory_space<smem>>
    %495 = vector.broadcast %494 : i32 to vector<1x8xi32>
    %496 = arith.cmpi eq, %0, %495 : vector<1x8xi32>
    %497 = arith.extui %496 : vector<1x8xi1> to vector<1x8xi32>
    %498 = arith.sitofp %497 : vector<1x8xi32> to vector<1x8xf32>
    %cst_248 = arith.constant dense<0.000000e+00> : vector<1x32xf32>
    %499 = tpu.matmul %498, %493, %cst_248 {dimension_numbers = #tpu.dot_dimension_numbers<[1], [0], [0], [1], [0, 0, 1, 1], [], []>} : vector<1x8xf32>, vector<8x32xf32>, vector<1x32xf32> -> vector<1x32xf32>
    %c3_249 = arith.constant 3 : index
    %c0_250 = arith.constant 0 : index
    %500 = vector.load %arg18[%c3_249, %c0_250] : memref<4x32xf32, #tpu.memory_space<vmem>>, vector<1x32xf32>
    tpu.vector_store %arg18[%c3_249, %c0_250], %499 {strides = array<i32>} : memref<4x32xf32, #tpu.memory_space<vmem>>, vector<1x32xf32>,
    return
  }
  func.func @transform_0(%arg0: i32, %arg1: memref<4xi32, #tpu.memory_space<smem>>) -> (i32, i32, i32) {
    %c0_i32 = arith.constant 0 : i32
    %c0_i32_0 = arith.constant 0 : i32
    %c0_i32_1 = arith.constant 0 : i32
    %c0_i32_2 = arith.constant 0 : i32
    return %c0_i32, %c0_i32_0, %c0_i32_1 : i32, i32, i32
  }
  func.func @transform_1(%arg0: i32, %arg1: memref<4xi32, #tpu.memory_space<smem>>) -> (i32, i32) {
    %c0_i32 = arith.constant 0 : i32
    %c0_i32_0 = arith.constant 0 : i32
    %c0_i32_1 = arith.constant 0 : i32
    return %c0_i32, %c0_i32_0 : i32, i32
  }
  func.func @transform_2(%arg0: i32, %arg1: memref<4xi32, #tpu.memory_space<smem>>) -> (i32, i32) {
    %c0_i32 = arith.constant 0 : i32
    %c0_i32_0 = arith.constant 0 : i32
    %c0_i32_1 = arith.constant 0 : i32
    return %c0_i32, %c0_i32_0 : i32, i32
  }
  func.func @transform_3(%arg0: i32, %arg1: memref<4xi32, #tpu.memory_space<smem>>) -> (i32, i32) {
    %c0_i32 = arith.constant 0 : i32
    %c0_i32_0 = arith.constant 0 : i32
    %c0_i32_1 = arith.constant 0 : i32
    return %c0_i32, %c0_i32_0 : i32, i32
  }
  func.func @transform_4(%arg0: i32, %arg1: memref<4xi32, #tpu.memory_space<smem>>) -> (i32, i32) {
    %c0_i32 = arith.constant 0 : i32
    %c0_i32_0 = arith.constant 0 : i32
    %c0_i32_1 = arith.constant 0 : i32
    return %c0_i32, %c0_i32_0 : i32, i32
  }
  func.func @transform_5(%arg0: i32, %arg1: memref<4xi32, #tpu.memory_space<smem>>) -> (i32, i32) {
    %c0_i32 = arith.constant 0 : i32
    %c0_i32_0 = arith.constant 0 : i32
    %c0_i32_1 = arith.constant 0 : i32
    return %c0_i32, %c0_i32_0 : i32, i32
  }
  func.func @transform_6(%arg0: i32, %arg1: memref<4xi32, #tpu.memory_space<smem>>) -> (i32, i32) {
    %c0_i32 = arith.constant 0 : i32
    %c0_i32_0 = arith.constant 0 : i32
    %c0_i32_1 = arith.constant 0 : i32
    return %c0_i32, %c0_i32_0 : i32, i32
  }
  func.func @transform_7(%arg0: i32, %arg1: memref<4xi32, #tpu.memory_space<smem>>) -> (i32, i32) {
    %c0_i32 = arith.constant 0 : i32
    %c0_i32_0 = arith.constant 0 : i32
    %c0_i32_1 = arith.constant 0 : i32
    return %c0_i32, %c0_i32_0 : i32, i32
  }
  func.func @transform_8(%arg0: i32, %arg1: memref<4xi32, #tpu.memory_space<smem>>) -> (i32, i32) {
    %c0_i32 = arith.constant 0 : i32
    %c0_i32_0 = arith.constant 0 : i32
    %c0_i32_1 = arith.constant 0 : i32
    return %c0_i32, %c0_i32_0 : i32, i32
  }
  func.func @transform_9(%arg0: i32, %arg1: memref<4xi32, #tpu.memory_space<smem>>) -> (i32, i32) {
    %c0_i32 = arith.constant 0 : i32
    %c0_i32_0 = arith.constant 0 : i32
    %c0_i32_1 = arith.constant 0 : i32
    return %c0_i32, %c0_i32_0 : i32, i32
  }
  func.func @transform_10(%arg0: i32, %arg1: memref<4xi32, #tpu.memory_space<smem>>) -> (i32, i32) {
    %c0_i32 = arith.constant 0 : i32
    %c0_i32_0 = arith.constant 0 : i32
    %c0_i32_1 = arith.constant 0 : i32
    return %c0_i32, %c0_i32_0 : i32, i32
  }
  func.func @transform_11(%arg0: i32, %arg1: memref<4xi32, #tpu.memory_space<smem>>) -> (i32, i32) {
    %c0_i32 = arith.constant 0 : i32
    %c0_i32_0 = arith.constant 0 : i32
    %c0_i32_1 = arith.constant 0 : i32
    return %c0_i32, %c0_i32_0 : i32, i32
  }
  func.func @transform_12(%arg0: i32, %arg1: memref<4xi32, #tpu.memory_space<smem>>) -> (i32, i32) {
    %c0_i32 = arith.constant 0 : i32
    %c0_i32_0 = arith.constant 0 : i32
    %c0_i32_1 = arith.constant 0 : i32
    return %c0_i32, %c0_i32_0 : i32, i32
  }
  func.func @transform_13(%arg0: i32, %arg1: memref<4xi32, #tpu.memory_space<smem>>) -> (i32, i32) {
    %c0_i32 = arith.constant 0 : i32
    %c0_i32_0 = arith.constant 0 : i32
    %c0_i32_1 = arith.constant 0 : i32
    return %c0_i32, %c0_i32_0 : i32, i32
  }
  func.func @transform_14(%arg0: i32, %arg1: memref<4xi32, #tpu.memory_space<smem>>) -> (i32, i32) {
    %c0_i32 = arith.constant 0 : i32
    %c0_i32_0 = arith.constant 0 : i32
    %c0_i32_1 = arith.constant 0 : i32
    return %c0_i32, %c0_i32_0 : i32, i32
  }
  func.func @transform_15(%arg0: i32, %arg1: memref<4xi32, #tpu.memory_space<smem>>) -> (i32, i32, i32) {
    %c0_i32 = arith.constant 0 : i32
    %c0_i32_0 = arith.constant 0 : i32
    %c0_i32_1 = arith.constant 0 : i32
    %c0_i32_2 = arith.constant 0 : i32
    return %c0_i32, %c0_i32_0, %c0_i32_1 : i32, i32, i32
  }
  func.func @transform_16(%arg0: i32, %arg1: memref<4xi32, #tpu.memory_space<smem>>) -> (i32, i32) {
    %c0_i32 = arith.constant 0 : i32
    %c0_i32_0 = arith.constant 0 : i32
    %c0_i32_1 = arith.constant 0 : i32
    return %c0_i32, %c0_i32_0 : i32, i32
  }
}

</mosaic_0001>

<llo_original>
// kernel: tpu_custom_call.1
$region0: #{tpu_custom_call.1}
  #allocation0 [shape = 'u32[]', space=smem, size = 0x4, offset = 0x4, fixed_abs, tag = 'smem constant byte address 0x4 - core index']
  #allocation1 [shape = 'u32[144,128]{1,0:T(1,128)}', space=vmem, size = 0x12000, scoped, tag = 'internal scratch']
  #allocation2 [shape = 's32[1]{0}', space=sflag, size = 0x4, scoped, tag = 'scoped memory for tpu_custom_call.1']
  #allocation3 [shape = 'u8[512]{0}', space=smem, size = 0x200, scoped, tag = 'prefetched SMEM operand 0']
  %s0 = inlined_call_operand.hbm [shape: s32[4], index: 0, kind: input, shape index: {}]
  %s1 = inlined_call_operand.vmem [shape: f32[4,8,32], index: 1, kind: input, shape index: {}]
  %s2 = inlined_call_operand.vmem [shape: f32[32,32], index: 2, kind: input, shape index: {}]
  %s3 = inlined_call_operand.vmem [shape: f32[1,32], index: 3, kind: input, shape index: {}]
  %s4 = inlined_call_operand.vmem [shape: f32[32,96], index: 4, kind: input, shape index: {}]
  %s5 = inlined_call_operand.vmem [shape: f32[1,96], index: 5, kind: input, shape index: {}]
  %s6 = inlined_call_operand.vmem [shape: f32[32,32], index: 6, kind: input, shape index: {}]
  %s7 = inlined_call_operand.vmem [shape: f32[1,32], index: 7, kind: input, shape index: {}]
  %s8 = inlined_call_operand.vmem [shape: f32[1,32], index: 8, kind: input, shape index: {}]
  %s9 = inlined_call_operand.vmem [shape: f32[1,32], index: 9, kind: input, shape index: {}]
  %s10 = inlined_call_operand.vmem [shape: f32[32,128], index: 10, kind: input, shape index: {}]
  %s11 = inlined_call_operand.vmem [shape: f32[1,128], index: 11, kind: input, shape index: {}]
  %s12 = inlined_call_operand.vmem [shape: f32[128,32], index: 12, kind: input, shape index: {}]
  %s13 = inlined_call_operand.vmem [shape: f32[1,32], index: 13, kind: input, shape index: {}]
  %s14 = inlined_call_operand.vmem [shape: f32[1,32], index: 14, kind: input, shape index: {}]
  %s15 = inlined_call_operand.vmem [shape: f32[1,32], index: 15, kind: input, shape index: {}]
  %s16 = inlined_call_operand.hbm [shape: f32[4,8,32], index: 16, kind: output, shape index: {0}]
  %s17 = inlined_call_operand.hbm [shape: f32[4,32], index: 17, kind: output, shape index: {1}]
  %18 = xla_tuple %s16, %s17
  %s19 = sld [smem:[#allocation0]]
  $region78: #{tpu_custom_call.1} parent=0
    _
  %s21 = ssub.s32 1, %s19
  %s22 = scalar_select 0, %s21, %s19
  %24 = dma.hbm_to_smem %s0, 16, [#allocation3], [#allocation2]
  %25 = dma.done [#allocation2], 16
  %26 = sfence
  $region1: #{tpu_custom_call.1} parent=0
    #allocation4 [shape = 'u8[16384]{0}', space=vmem, size = 0x4000, scoped, tag = 'output window, operand 0, single buffered']
    #allocation5 [shape = 's32[1]{0}', space=sflag, size = 0x4, scoped, tag = 'scoped memory for tpu_custom_call.1']
    #allocation6 [shape = 'u8[2048]{0}', space=vmem, size = 0x800, scoped, tag = 'output window, operand 1, single buffered']
    #allocation7 [shape = 's32[1]{0}', space=sflag, size = 0x4, scoped, tag = 'scoped memory for tpu_custom_call.1']
    %27 = vsyncpa [#allocation5], 0
    %28 = vsyncpa [#allocation7], 0
    // Predicated region
    $region2: #{tpu_custom_call.1} parent=1 // pred_check
      _
    $region3: #{tpu_custom_call.1} parent=1 // pred_check_branch
      %30 = sbr.rel (0) target = $region5
    $region4: #{tpu_custom_call.1} parent=1 // pred_region
      _
    $region5: #{tpu_custom_call.1} parent=1 // pred_fallthru
      _
    // Predicated region
    $region6: #{tpu_custom_call.1} parent=1 // pred_check
      _
    $region7: #{tpu_custom_call.1} parent=1 // pred_check_branch
      %32 = sbr.rel (0) target = $region9
    $region8: #{tpu_custom_call.1} parent=1 // pred_region
      _
    $region9: #{tpu_custom_call.1} parent=1 // pred_fallthru
      _
    // Predicated region
    $region10: #{tpu_custom_call.1} parent=1 // pred_check
      _
    $region11: #{tpu_custom_call.1} parent=1 // pred_check_branch
      %34 = sbr.rel (0) target = $region13
    $region12: #{tpu_custom_call.1} parent=1 // pred_region
      _
    $region13: #{tpu_custom_call.1} parent=1 // pred_fallthru
      _
    // Predicated region
    $region14: #{tpu_custom_call.1} parent=1 // pred_check
      _
    $region15: #{tpu_custom_call.1} parent=1 // pred_check_branch
      %36 = sbr.rel (0) target = $region17
    $region16: #{tpu_custom_call.1} parent=1 // pred_region
      _
    $region17: #{tpu_custom_call.1} parent=1 // pred_fallthru
      _
    // Predicated region
    $region18: #{tpu_custom_call.1} parent=1 // pred_check
      _
    $region19: #{tpu_custom_call.1} parent=1 // pred_check_branch
      %38 = sbr.rel (0) target = $region21
    $region20: #{tpu_custom_call.1} parent=1 // pred_region
      _
    $region21: #{tpu_custom_call.1} parent=1 // pred_fallthru
      _
    // Predicated region
    $region22: #{tpu_custom_call.1} parent=1 // pred_check
      _
    $region23: #{tpu_custom_call.1} parent=1 // pred_check_branch
      %40 = sbr.rel (0) target = $region25
    $region24: #{tpu_custom_call.1} parent=1 // pred_region
      _
    $region25: #{tpu_custom_call.1} parent=1 // pred_fallthru
      _
    // Predicated region
    $region26: #{tpu_custom_call.1} parent=1 // pred_check
      _
    $region27: #{tpu_custom_call.1} parent=1 // pred_check_branch
      %42 = sbr.rel (0) target = $region29
    $region28: #{tpu_custom_call.1} parent=1 // pred_region
      _
    $region29: #{tpu_custom_call.1} parent=1 // pred_fallthru
      _
    // Predicated region
    $region30: #{tpu_custom_call.1} parent=1 // pred_check
      _
    $region31: #{tpu_custom_call.1} parent=1 // pred_check_branch
      %44 = sbr.rel (0) target = $region33
    $region32: #{tpu_custom_call.1} parent=1 // pred_region
      _
    $region33: #{tpu_custom_call.1} parent=1 // pred_fallthru
      _
    // Predicated region
    $region34: #{tpu_custom_call.1} parent=1 // pred_check
      _
    $region35: #{tpu_custom_call.1} parent=1 // pred_check_branch
      %46 = sbr.rel (0) target = $region37
    $region36: #{tpu_custom_call.1} parent=1 // pred_region
      _
    $region37: #{tpu_custom_call.1} parent=1 // pred_fallthru
      _
    // Predicated region
    $region38: #{tpu_custom_call.1} parent=1 // pred_check
      _
    $region39: #{tpu_custom_call.1} parent=1 // pred_check_branch
      %48 = sbr.rel (0) target = $region41
    $region40: #{tpu_custom_call.1} parent=1 // pred_region
      _
    $region41: #{tpu_custom_call.1} parent=1 // pred_fallthru
      _
    // Predicated region
    $region42: #{tpu_custom_call.1} parent=1 // pred_check
      _
    $region43: #{tpu_custom_call.1} parent=1 // pred_check_branch
      %50 = sbr.rel (0) target = $region45
    $region44: #{tpu_custom_call.1} parent=1 // pred_region
      _
    $region45: #{tpu_custom_call.1} parent=1 // pred_fallthru
      _
    // Predicated region
    $region46: #{tpu_custom_call.1} parent=1 // pred_check
      _
    $region47: #{tpu_custom_call.1} parent=1 // pred_check_branch
      %52 = sbr.rel (0) target = $region49
    $region48: #{tpu_custom_call.1} parent=1 // pred_region
      _
    $region49: #{tpu_custom_call.1} parent=1 // pred_fallthru
      _
    // Predicated region
    $region50: #{tpu_custom_call.1} parent=1 // pred_check
      _
    $region51: #{tpu_custom_call.1} parent=1 // pred_check_branch
      %54 = sbr.rel (0) target = $region53
    $region52: #{tpu_custom_call.1} parent=1 // pred_region
      _
    $region53: #{tpu_custom_call.1} parent=1 // pred_fallthru
      _
    // Predicated region
    $region54: #{tpu_custom_call.1} parent=1 // pred_check
      _
    $region55: #{tpu_custom_call.1} parent=1 // pred_check_branch
      %56 = sbr.rel (0) target = $region57
    $region56: #{tpu_custom_call.1} parent=1 // pred_region
      _
    $region57: #{tpu_custom_call.1} parent=1 // pred_fallthru
      _
    // Predicated region
    $region58: #{tpu_custom_call.1} parent=1 // pred_check
      _
    $region59: #{tpu_custom_call.1} parent=1 // pred_check_branch
      %58 = sbr.rel (0) target = $region61
    $region60: #{tpu_custom_call.1} parent=1 // pred_region
      _
    $region61: #{tpu_custom_call.1} parent=1 // pred_fallthru
      _
    %v59 = vlaneseq
    %v60 = vand.u32 %v59, 127
    %v61 = vld [vmem:[%s1] sm:$0xff]
    %v62 = vld [vmem:[%s2] sm:$0xff]
    %v63 = vld [vmem:[%s2 + $0x8] sm:$0xff]
    %v64 = vld [vmem:[%s2 + $0x10] sm:$0xff]
    %v65 = vld [vmem:[%s2 + $0x18] sm:$0xff]
    %v66 = vld [vmem:[%s3] sm:$0x1]
    %v68 = vlaneseq
    %v69 = vshrl.u32 %v68, 7
    %v70 = vsub.s32 0, %v69
    %v71 = vrot.slane %v66, %v70
    %vm73 = vcmask 261120
    %v75 = vsel %vm73, %v61, 0
    %77 = vmatprep.subr.mxu0 0.0
    %78 = vmatpush1.msra.mxu0 0.0
    %79 = vmatprep.subr.mxu0 0.0
    %80 = vmatpush1.msra.mxu0 0.0
    %81 = vmatprep.subr.mxu0 0.0
    %82 = vmatpush1.msra.mxu0 0.0
    %83 = vmatprep.subr.mxu0 0.0
    %84 = vmatpush1.msra.mxu0 0.0
    %85 = vmatprep.subr.mxu0 0.0
    %86 = vmatpush1.msra.mxu0 0.0
    %87 = vmatprep.subr.mxu0 0.0
    %88 = vmatpush1.msra.mxu0 0.0
    %89 = vmatprep.subr.mxu0 0.0
    %90 = vmatpush1.msra.mxu0 0.0
    %91 = vmatprep.subr.mxu0 0.0
    %92 = vmatpush1.msra.mxu0 0.0
    %93 = vmatprep.subr.mxu0 0.0
    %94 = vmatpush1.msra.mxu0 0.0
    %95 = vmatprep.subr.mxu0 0.0
    %96 = vmatpush1.msra.mxu0 0.0
    %97 = vmatprep.subr.mxu0 0.0
    %98 = vmatpush1.msra.mxu0 0.0
    %99 = vmatprep.subr.mxu0 0.0
    %100 = vmatpush1.msra.mxu0 0.0
    %101 = vmatprep.subr.mxu0 0.0
    %102 = vmatpush1.msra.mxu0 %v65
    %103 = vmatprep.subr.mxu0 0.0
    %104 = vmatpush1.msra.mxu0 %v64
    %105 = vmatprep.subr.mxu0 0.0
    %106 = vmatpush1.msra.mxu0 %v63
    %107 = vmatprep.subr.mxu0 0.0
    %108 = vmatpush1.msra.mxu0 %v62
    %109 = vmatprep.subr.mxu0 0.0
    %110 = vmatpush2.msra.mxu0 0.0
    %111 = vmatprep.subr.mxu0 0.0
    %112 = vmatpush2.msra.mxu0 0.0
    %113 = vmatprep.subr.mxu0 0.0
    %114 = vmatpush2.msra.mxu0 0.0
    %115 = vmatprep.subr.mxu0 0.0
    %116 = vmatpush2.msra.mxu0 0.0
    %117 = vmatprep.subr.mxu0 0.0
    %118 = vmatpush2.msra.mxu0 0.0
    %119 = vmatprep.subr.mxu0 0.0
    %120 = vmatpush2.msra.mxu0 0.0
    %121 = vmatprep.subr.mxu0 0.0
    %122 = vmatpush2.msra.mxu0 0.0
    %123 = vmatprep.subr.mxu0 0.0
    %124 = vmatpush2.msra.mxu0 0.0
    %125 = vmatprep.subr.mxu0 0.0
    %126 = vmatpush2.msra.mxu0 0.0
    %127 = vmatprep.subr.mxu0 0.0
    %128 = vmatpush2.msra.mxu0 0.0
    %129 = vmatprep.subr.mxu0 0.0
    %130 = vmatpush2.msra.mxu0 0.0
    %131 = vmatprep.subr.mxu0 0.0
    %132 = vmatpush2.msra.mxu0 0.0
    %133 = vmatprep.subr.mxu0 0.0
    %134 = vmatpush2.msra.mxu0 0.0
    %135 = vmatprep.subr.mxu0 0.0
    %136 = vmatpush2.msra.mxu0 0.0
    %137 = vmatprep.subr.mxu0 0.0
    %138 = vmatpush2.msra.mxu0 0.0
    %139 = vmatprep.subr.mxu0 0.0
    %140 = vmatpush2.msra.mxu0 0.0
    %141 = vmatprep.mubr.f32.mxu0 0.0
    %142 = vmatmul.mubr.f32.gmra.mxu0 %v75
    %v143 = vpop.f32.mrf.mxu0
    %v144 = vadd.f32 %v71, %v143
    %v145 = vpop.f32.mrf.mxu0
    %146 = vdwg.mxu0
    %v147 = vtanh.pop %v144
    %148 = vst.msk [vmem:[#allocation4] sm:$0xff] %vm73, %v147
    %v149 = vld [vmem:[%s4] sm:$0xff]
    %v150 = vld [vmem:[%s4 + $0x8] sm:$0xff]
    %v151 = vld [vmem:[%s4 + $0x10] sm:$0xff]
    %v152 = vld [vmem:[%s4 + $0x18] sm:$0xff]
    %v153 = vld [vmem:[%s5] sm:$0x1]
    %v155 = vlaneseq
    %v156 = vshrl.u32 %v155, 7
    %v157 = vsub.s32 0, %v156
    %v158 = vrot.slane %v153, %v157
    %v161 = vsel %vm73, %v147, 0
    %163 = vmatprep.subr.mxu0 0.0
    %164 = vmatpush1.msra.mxu0 0.0
    %165 = vmatprep.subr.mxu0 0.0
    %166 = vmatpush1.msra.mxu0 0.0
    %167 = vmatprep.subr.mxu0 0.0
    %168 = vmatpush1.msra.mxu0 0.0
    %169 = vmatprep.subr.mxu0 0.0
    %170 = vmatpush1.msra.mxu0 0.0
    %171 = vmatprep.subr.mxu0 0.0
    %172 = vmatpush1.msra.mxu0 0.0
    %173 = vmatprep.subr.mxu0 0.0
    %174 = vmatpush1.msra.mxu0 0.0
    %175 = vmatprep.subr.mxu0 0.0
    %176 = vmatpush1.msra.mxu0 0.0
    %177 = vmatprep.subr.mxu0 0.0
    %178 = vmatpush1.msra.mxu0 0.0
    %179 = vmatprep.subr.mxu0 0.0
    %180 = vmatpush1.msra.mxu0 0.0
    %181 = vmatprep.subr.mxu0 0.0
    %182 = vmatpush1.msra.mxu0 0.0
    %183 = vmatprep.subr.mxu0 0.0
    %184 = vmatpush1.msra.mxu0 0.0
    %185 = vmatprep.subr.mxu0 0.0
    %186 = vmatpush1.msra.mxu0 0.0
    %187 = vmatprep.subr.mxu0 0.0
    %188 = vmatpush1.msra.mxu0 %v152
    %189 = vmatprep.subr.mxu0 0.0
    %190 = vmatpush1.msra.mxu0 %v151
    %191 = vmatprep.subr.mxu0 0.0
    %192 = vmatpush1.msra.mxu0 %v150
    %193 = vmatprep.subr.mxu0 0.0
    %194 = vmatpush1.msra.mxu0 %v149
    %195 = vmatprep.subr.mxu0 0.0
    %196 = vmatpush2.msra.mxu0 0.0
    %197 = vmatprep.subr.mxu0 0.0
    %198 = vmatpush2.msra.mxu0 0.0
    %199 = vmatprep.subr.mxu0 0.0
    %200 = vmatpush2.msra.mxu0 0.0
    %201 = vmatprep.subr.mxu0 0.0
    %202 = vmatpush2.msra.mxu0 0.0
    %203 = vmatprep.subr.mxu0 0.0
    %204 = vmatpush2.msra.mxu0 0.0
    %205 = vmatprep.subr.mxu0 0.0
    %206 = vmatpush2.msra.mxu0 0.0
    %207 = vmatprep.subr.mxu0 0.0
    %208 = vmatpush2.msra.mxu0 0.0
    %209 = vmatprep.subr.mxu0 0.0
    %210 = vmatpush2.msra.mxu0 0.0
    %211 = vmatprep.subr.mxu0 0.0
    %212 = vmatpush2.msra.mxu0 0.0
    %213 = vmatprep.subr.mxu0 0.0
    %214 = vmatpush2.msra.mxu0 0.0
    %215 = vmatprep.subr.mxu0 0.0
    %216 = vmatpush2.msra.mxu0 0.0
    %217 = vmatprep.subr.mxu0 0.0
    %218 = vmatpush2.msra.mxu0 0.0
    %219 = vmatprep.subr.mxu0 0.0
    %220 = vmatpush2.msra.mxu0 0.0
    %221 = vmatprep.subr.mxu0 0.0
    %222 = vmatpush2.msra.mxu0 0.0
    %223 = vmatprep.subr.mxu0 0.0
    %224 = vmatpush2.msra.mxu0 0.0
    %225 = vmatprep.subr.mxu0 0.0
    %226 = vmatpush2.msra.mxu0 0.0
    %227 = vmatprep.mubr.f32.mxu0 0.0
    %228 = vmatmul.mubr.f32.gmra.mxu0 %v161
    %v229 = vpop.f32.mrf.mxu0
    %v230 = vadd.f32 %v158, %v229
    %v231 = vpop.f32.mrf.mxu0
    %232 = vdwg.mxu0
    %v233 = vmul.f32 %v230, 0.25
    %235 = vrot.lane.b32.xlu0 %v230, 96
    %v236 = vpop.permute.xlu0 %235
    %vm237 = vcmask 130048
    %v239 = vsel %vm237, %v233, 0
    %v241 = vsel %vm237, %v236, 0
    %243 = vmatprep.subr.mxu0 0.0
    %244 = vmatpush1.xpose.msra.mxu0 0.0
    %245 = vmatprep.subr.mxu0 0.0
    %246 = vmatpush1.xpose.msra.mxu0 0.0
    %247 = vmatprep.subr.mxu0 0.0
    %248 = vmatpush1.xpose.msra.mxu0 0.0
    %249 = vmatprep.subr.mxu0 0.0
    %250 = vmatpush1.xpose.msra.mxu0 0.0
    %251 = vmatprep.subr.mxu0 0.0
    %252 = vmatpush1.xpose.msra.mxu0 0.0
    %253 = vmatprep.subr.mxu0 0.0
    %254 = vmatpush1.xpose.msra.mxu0 0.0
    %255 = vmatprep.subr.mxu0 0.0
    %256 = vmatpush1.xpose.msra.mxu0 0.0
    %257 = vmatprep.subr.mxu0 0.0
    %258 = vmatpush1.xpose.msra.mxu0 0.0
    %259 = vmatprep.subr.mxu0 0.0
    %260 = vmatpush1.xpose.msra.mxu0 0.0
    %261 = vmatprep.subr.mxu0 0.0
    %262 = vmatpush1.xpose.msra.mxu0 0.0
    %263 = vmatprep.subr.mxu0 0.0
    %264 = vmatpush1.xpose.msra.mxu0 0.0
    %265 = vmatprep.subr.mxu0 0.0
    %266 = vmatpush1.xpose.msra.mxu0 0.0
    %267 = vmatprep.subr.mxu0 0.0
    %268 = vmatpush1.xpose.msra.mxu0 0.0
    %269 = vmatprep.subr.mxu0 0.0
    %270 = vmatpush1.xpose.msra.mxu0 0.0
    %271 = vmatprep.subr.mxu0 0.0
    %272 = vmatpush1.xpose.msra.mxu0 0.0
    %273 = vmatprep.subr.mxu0 0.0
    %274 = vmatpush1.xpose.msra.mxu0 %v241
    %275 = vmatprep.subr.mxu0 0.0
    %276 = vmatpush2.xpose.msra.mxu0 0.0
    %277 = vmatprep.subr.mxu0 0.0
    %278 = vmatpush2.xpose.msra.mxu0 0.0
    %279 = vmatprep.subr.mxu0 0.0
    %280 = vmatpush2.xpose.msra.mxu0 0.0
    %281 = vmatprep.subr.mxu0 0.0
    %282 = vmatpush2.xpose.msra.mxu0 0.0
    %283 = vmatprep.subr.mxu0 0.0
    %284 = vmatpush2.xpose.msra.mxu0 0.0
    %285 = vmatprep.subr.mxu0 0.0
    %286 = vmatpush2.xpose.msra.mxu0 0.0
    %287 = vmatprep.subr.mxu0 0.0
    %288 = vmatpush2.xpose.msra.mxu0 0.0
    %289 = vmatprep.subr.mxu0 0.0
    %290 = vmatpush2.xpose.msra.mxu0 0.0
    %291 = vmatprep.subr.mxu0 0.0
    %292 = vmatpush2.xpose.msra.mxu0 0.0
    %293 = vmatprep.subr.mxu0 0.0
    %294 = vmatpush2.xpose.msra.mxu0 0.0
    %295 = vmatprep.subr.mxu0 0.0
    %296 = vmatpush2.xpose.msra.mxu0 0.0
    %297 = vmatprep.subr.mxu0 0.0
    %298 = vmatpush2.xpose.msra.mxu0 0.0
    %299 = vmatprep.subr.mxu0 0.0
    %300 = vmatpush2.xpose.msra.mxu0 0.0
    %301 = vmatprep.subr.mxu0 0.0
    %302 = vmatpush2.xpose.msra.mxu0 0.0
    %303 = vmatprep.subr.mxu0 0.0
    %304 = vmatpush2.xpose.msra.mxu0 0.0
    %305 = vmatprep.subr.mxu0 0.0
    %306 = vmatpush2.xpose.msra.mxu0 0.0
    %307 = vmatprep.mubr.f32.mxu0 0.0
    %308 = vmatmul.mubr.f32.gmra.mxu0 %v239
    %v309 = vpop.f32.mrf.mxu0
    %v310 = vadd.f32 0.0, %v309
    %v311 = vpop.f32.mrf.mxu0
    %312 = vdwg.mxu0
    %vm313 = vcmask 64512
    %v314 = vsel %vm313, %v310, -inf
    %315 = vmax.xlane.f32.xlu0 %v314
    %v316 = vpop.xlane.xlu0 %315
    %v317 = vsub.f32 %v310, %v316
    %v318 = vmul.f32 %v317, 1.442695
    %v319 = vpow.pop %v318
    %v320 = vsel %vm313, %v319, 0.0
    %321 = vadd.xlane.f32.xlu0 %v320
    %v322 = vpop.xlane.xlu0 %321
    %v323 = vrcp.pop %v322
    %v324 = vmul.f32 %v319, %v323
    %325 = vrot.lane.b32.xlu0 %v230, 64
    %v326 = vpop.permute.xlu0 %325
    %v329 = vsel %vm313, %v324, 0
    %331 = vmatprep.subr.mxu0 0.0
    %332 = vmatpush1.msra.mxu0 0.0
    %333 = vmatprep.subr.mxu0 0.0
    %334 = vmatpush1.msra.mxu0 0.0
    %335 = vmatprep.subr.mxu0 0.0
    %336 = vmatpush1.msra.mxu0 0.0
    %337 = vmatprep.subr.mxu0 0.0
    %338 = vmatpush1.msra.mxu0 0.0
    %339 = vmatprep.subr.mxu0 0.0
    %340 = vmatpush1.msra.mxu0 0.0
    %341 = vmatprep.subr.mxu0 0.0
    %342 = vmatpush1.msra.mxu0 0.0
    %343 = vmatprep.subr.mxu0 0.0
    %344 = vmatpush1.msra.mxu0 0.0
    %345 = vmatprep.subr.mxu0 0.0
    %346 = vmatpush1.msra.mxu0 0.0
    %347 = vmatprep.subr.mxu0 0.0
    %348 = vmatpush1.msra.mxu0 0.0
    %349 = vmatprep.subr.mxu0 0.0
    %350 = vmatpush1.msra.mxu0 0.0
    %351 = vmatprep.subr.mxu0 0.0
    %352 = vmatpush1.msra.mxu0 0.0
    %353 = vmatprep.subr.mxu0 0.0
    %354 = vmatpush1.msra.mxu0 0.0
    %355 = vmatprep.subr.mxu0 0.0
    %356 = vmatpush1.msra.mxu0 0.0
    %357 = vmatprep.subr.mxu0 0.0
    %358 = vmatpush1.msra.mxu0 0.0
    %359 = vmatprep.subr.mxu0 0.0
    %360 = vmatpush1.msra.mxu0 0.0
    %361 = vmatprep.subr.mxu0 0.0
    %362 = vmatpush1.msra.mxu0 %v326
    %363 = vmatprep.subr.mxu0 0.0
    %364 = vmatpush2.msra.mxu0 0.0
    %365 = vmatprep.subr.mxu0 0.0
    %366 = vmatpush2.msra.mxu0 0.0
    %367 = vmatprep.subr.mxu0 0.0
    %368 = vmatpush2.msra.mxu0 0.0
    %369 = vmatprep.subr.mxu0 0.0
    %370 = vmatpush2.msra.mxu0 0.0
    %371 = vmatprep.subr.mxu0 0.0
    %372 = vmatpush2.msra.mxu0 0.0
    %373 = vmatprep.subr.mxu0 0.0
    %374 = vmatpush2.msra.mxu0 0.0
    %375 = vmatprep.subr.mxu0 0.0
    %376 = vmatpush2.msra.mxu0 0.0
    %377 = vmatprep.subr.mxu0 0.0
    %378 = vmatpush2.msra.mxu0 0.0
    %379 = vmatprep.subr.mxu0 0.0
    %380 = vmatpush2.msra.mxu0 0.0
    %381 = vmatprep.subr.mxu0 0.0
    %382 = vmatpush2.msra.mxu0 0.0
    %383 = vmatprep.subr.mxu0 0.0
    %384 = vmatpush2.msra.mxu0 0.0
    %385 = vmatprep.subr.mxu0 0.0
    %386 = vmatpush2.msra.mxu0 0.0
    %387 = vmatprep.subr.mxu0 0.0
    %388 = vmatpush2.msra.mxu0 0.0
    %389 = vmatprep.subr.mxu0 0.0
    %390 = vmatpush2.msra.mxu0 0.0
    %391 = vmatprep.subr.mxu0 0.0
    %392 = vmatpush2.msra.mxu0 0.0
    %393 = vmatprep.subr.mxu0 0.0
    %394 = vmatpush2.msra.mxu0 0.0
    %395 = vmatprep.mubr.f32.mxu0 0.0
    %396 = vmatmul.mubr.f32.gmra.mxu0 %v329
    %v397 = vpop.f32.mrf.mxu0
    %v398 = vadd.f32 0.0, %v397
    %v399 = vpop.f32.mrf.mxu0
    %400 = vdwg.mxu0
    %401 = vrot.lane.b32.xlu0 %v233, 112
    %v402 = vpop.permute.xlu0 %401
    %403 = vrot.lane.b32.xlu0 %v230, 80
    %v404 = vpop.permute.xlu0 %403
    %v405 = vsel %vm237, %v402, 0
    %v407 = vsel %vm237, %v404, 0
    %409 = vmatprep.subr.mxu0 0.0
    %410 = vmatpush1.xpose.msra.mxu0 0.0
    %411 = vmatprep.subr.mxu0 0.0
    %412 = vmatpush1.xpose.msra.mxu0 0.0
    %413 = vmatprep.subr.mxu0 0.0
    %414 = vmatpush1.xpose.msra.mxu0 0.0
    %415 = vmatprep.subr.mxu0 0.0
    %416 = vmatpush1.xpose.msra.mxu0 0.0
    %417 = vmatprep.subr.mxu0 0.0
    %418 = vmatpush1.xpose.msra.mxu0 0.0
    %419 = vmatprep.subr.mxu0 0.0
    %420 = vmatpush1.xpose.msra.mxu0 0.0
    %421 = vmatprep.subr.mxu0 0.0
    %422 = vmatpush1.xpose.msra.mxu0 0.0
    %423 = vmatprep.subr.mxu0 0.0
    %424 = vmatpush1.xpose.msra.mxu0 0.0
    %425 = vmatprep.subr.mxu0 0.0
    %426 = vmatpush1.xpose.msra.mxu0 0.0
    %427 = vmatprep.subr.mxu0 0.0
    %428 = vmatpush1.xpose.msra.mxu0 0.0
    %429 = vmatprep.subr.mxu0 0.0
    %430 = vmatpush1.xpose.msra.mxu0 0.0
    %431 = vmatprep.subr.mxu0 0.0
    %432 = vmatpush1.xpose.msra.mxu0 0.0
    %433 = vmatprep.subr.mxu0 0.0
    %434 = vmatpush1.xpose.msra.mxu0 0.0
    %435 = vmatprep.subr.mxu0 0.0
    %436 = vmatpush1.xpose.msra.mxu0 0.0
    %437 = vmatprep.subr.mxu0 0.0
    %438 = vmatpush1.xpose.msra.mxu0 0.0
    %439 = vmatprep.subr.mxu0 0.0
    %440 = vmatpush1.xpose.msra.mxu0 %v407
    %441 = vmatprep.subr.mxu0 0.0
    %442 = vmatpush2.xpose.msra.mxu0 0.0
    %443 = vmatprep.subr.mxu0 0.0
    %444 = vmatpush2.xpose.msra.mxu0 0.0
    %445 = vmatprep.subr.mxu0 0.0
    %446 = vmatpush2.xpose.msra.mxu0 0.0
    %447 = vmatprep.subr.mxu0 0.0
    %448 = vmatpush2.xpose.msra.mxu0 0.0
    %449 = vmatprep.subr.mxu0 0.0
    %450 = vmatpush2.xpose.msra.mxu0 0.0
    %451 = vmatprep.subr.mxu0 0.0
    %452 = vmatpush2.xpose.msra.mxu0 0.0
    %453 = vmatprep.subr.mxu0 0.0
    %454 = vmatpush2.xpose.msra.mxu0 0.0
    %455 = vmatprep.subr.mxu0 0.0
    %456 = vmatpush2.xpose.msra.mxu0 0.0
    %457 = vmatprep.subr.mxu0 0.0
    %458 = vmatpush2.xpose.msra.mxu0 0.0
    %459 = vmatprep.subr.mxu0 0.0
    %460 = vmatpush2.xpose.msra.mxu0 0.0
    %461 = vmatprep.subr.mxu0 0.0
    %462 = vmatpush2.xpose.msra.mxu0 0.0
    %463 = vmatprep.subr.mxu0 0.0
    %464 = vmatpush2.xpose.msra.mxu0 0.0
    %465 = vmatprep.subr.mxu0 0.0
    %466 = vmatpush2.xpose.msra.mxu0 0.0
    %467 = vmatprep.subr.mxu0 0.0
    %468 = vmatpush2.xpose.msra.mxu0 0.0
    %469 = vmatprep.subr.mxu0 0.0
    %470 = vmatpush2.xpose.msra.mxu0 0.0
    %471 = vmatprep.subr.mxu0 0.0
    %472 = vmatpush2.xpose.msra.mxu0 0.0
    %473 = vmatprep.mubr.f32.mxu0 0.0
    %474 = vmatmul.mubr.f32.gmra.mxu0 %v405
    %v475 = vpop.f32.mrf.mxu0
    %v476 = vadd.f32 0.0, %v475
    %v477 = vpop.f32.mrf.mxu0
    %478 = vdwg.mxu0
    %v479 = vsel %vm313, %v476, -inf
    %480 = vmax.xlane.f32.xlu0 %v479
    %v481 = vpop.xlane.xlu0 %480
    %v482 = vsub.f32 %v476, %v481
    %v483 = vmul.f32 %v482, 1.442695
    %v484 = vpow.pop %v483
    %v485 = vsel %vm313, %v484, 0.0
    %486 = vadd.xlane.f32.xlu0 %v485
    %v487 = vpop.xlane.xlu0 %486
    %v488 = vrcp.pop %v487
    %v489 = vmul.f32 %v484, %v488
    %490 = vrot.lane.b32.xlu0 %v230, 48
    %v491 = vpop.permute.xlu0 %490
    %v494 = vsel %vm313, %v489, 0
    %496 = vmatprep.subr.mxu0 0.0
    %497 = vmatpush1.msra.mxu0 0.0
    %498 = vmatprep.subr.mxu0 0.0
    %499 = vmatpush1.msra.mxu0 0.0
    %500 = vmatprep.subr.mxu0 0.0
    %501 = vmatpush1.msra.mxu0 0.0
    %502 = vmatprep.subr.mxu0 0.0
    %503 = vmatpush1.msra.mxu0 0.0
    %504 = vmatprep.subr.mxu0 0.0
    %505 = vmatpush1.msra.mxu0 0.0
    %506 = vmatprep.subr.mxu0 0.0
    %507 = vmatpush1.msra.mxu0 0.0
    %508 = vmatprep.subr.mxu0 0.0
    %509 = vmatpush1.msra.mxu0 0.0
    %510 = vmatprep.subr.mxu0 0.0
    %511 = vmatpush1.msra.mxu0 0.0
    %512 = vmatprep.subr.mxu0 0.0
    %513 = vmatpush1.msra.mxu0 0.0
    %514 = vmatprep.subr.mxu0 0.0
    %515 = vmatpush1.msra.mxu0 0.0
    %516 = vmatprep.subr.mxu0 0.0
    %517 = vmatpush1.msra.mxu0 0.0
    %518 = vmatprep.subr.mxu0 0.0
    %519 = vmatpush1.msra.mxu0 0.0
    %520 = vmatprep.subr.mxu0 0.0
    %521 = vmatpush1.msra.mxu0 0.0
    %522 = vmatprep.subr.mxu0 0.0
    %523 = vmatpush1.msra.mxu0 0.0
    %524 = vmatprep.subr.mxu0 0.0
    %525 = vmatpush1.msra.mxu0 0.0
    %526 = vmatprep.subr.mxu0 0.0
    %527 = vmatpush1.msra.mxu0 %v491
    %528 = vmatprep.subr.mxu0 0.0
    %529 = vmatpush2.msra.mxu0 0.0
    %530 = vmatprep.subr.mxu0 0.0
    %531 = vmatpush2.msra.mxu0 0.0
    %532 = vmatprep.subr.mxu0 0.0
    %533 = vmatpush2.msra.mxu0 0.0
    %534 = vmatprep.subr.mxu0 0.0
    %535 = vmatpush2.msra.mxu0 0.0
    %536 = vmatprep.subr.mxu0 0.0
    %537 = vmatpush2.msra.mxu0 0.0
    %538 = vmatprep.subr.mxu0 0.0
    %539 = vmatpush2.msra.mxu0 0.0
    %540 = vmatprep.subr.mxu0 0.0
    %541 = vmatpush2.msra.mxu0 0.0
    %542 = vmatprep.subr.mxu0 0.0
    %543 = vmatpush2.msra.mxu0 0.0
    %544 = vmatprep.subr.mxu0 0.0
    %545 = vmatpush2.msra.mxu0 0.0
    %546 = vmatprep.subr.mxu0 0.0
    %547 = vmatpush2.msra.mxu0 0.0
    %548 = vmatprep.subr.mxu0 0.0
    %549 = vmatpush2.msra.mxu0 0.0
    %550 = vmatprep.subr.mxu0 0.0
    %551 = vmatpush2.msra.mxu0 0.0
    %552 = vmatprep.subr.mxu0 0.0
    %553 = vmatpush2.msra.mxu0 0.0
    %554 = vmatprep.subr.mxu0 0.0
    %555 = vmatpush2.msra.mxu0 0.0
    %556 = vmatprep.subr.mxu0 0.0
    %557 = vmatpush2.msra.mxu0 0.0
    %558 = vmatprep.subr.mxu0 0.0
    %559 = vmatpush2.msra.mxu0 0.0
    %560 = vmatprep.mubr.f32.mxu0 0.0
    %561 = vmatmul.mubr.f32.gmra.mxu0 %v494
    %v562 = vpop.f32.mrf.mxu0
    %v563 = vadd.f32 0.0, %v562
    %v564 = vpop.f32.mrf.mxu0
    %565 = vdwg.mxu0
    %567 = vrot.lane.b32.xlu0 %v563, 16
    %v568 = vpop.permute.xlu0 %567
    %v570 = vsel %vm237, %v398, %v568
    %v571 = vld [vmem:[%s6] sm:$0xff]
    %v572 = vld [vmem:[%s6 + $0x8] sm:$0xff]
    %v573 = vld [vmem:[%s6 + $0x10] sm:$0xff]
    %v574 = vld [vmem:[%s6 + $0x18] sm:$0xff]
    %v575 = vld [vmem:[%s7] sm:$0x1]
    %v577 = vlaneseq
    %v578 = vshrl.u32 %v577, 7
    %v579 = vsub.s32 0, %v578
    %v580 = vrot.slane %v575, %v579
    %v583 = vsel %vm73, %v570, 0
    %585 = vmatprep.subr.mxu0 0.0
    %586 = vmatpush1.msra.mxu0 0.0
    %587 = vmatprep.subr.mxu0 0.0
    %588 = vmatpush1.msra.mxu0 0.0
    %589 = vmatprep.subr.mxu0 0.0
    %590 = vmatpush1.msra.mxu0 0.0
    %591 = vmatprep.subr.mxu0 0.0
    %592 = vmatpush1.msra.mxu0 0.0
    %593 = vmatprep.subr.mxu0 0.0
    %594 = vmatpush1.msra.mxu0 0.0
    %595 = vmatprep.subr.mxu0 0.0
    %596 = vmatpush1.msra.mxu0 0.0
    %597 = vmatprep.subr.mxu0 0.0
    %598 = vmatpush1.msra.mxu0 0.0
    %599 = vmatprep.subr.mxu0 0.0
    %600 = vmatpush1.msra.mxu0 0.0
    %601 = vmatprep.subr.mxu0 0.0
    %602 = vmatpush1.msra.mxu0 0.0
    %603 = vmatprep.subr.mxu0 0.0
    %604 = vmatpush1.msra.mxu0 0.0
    %605 = vmatprep.subr.mxu0 0.0
    %606 = vmatpush1.msra.mxu0 0.0
    %607 = vmatprep.subr.mxu0 0.0
    %608 = vmatpush1.msra.mxu0 0.0
    %609 = vmatprep.subr.mxu0 0.0
    %610 = vmatpush1.msra.mxu0 %v574
    %611 = vmatprep.subr.mxu0 0.0
    %612 = vmatpush1.msra.mxu0 %v573
    %613 = vmatprep.subr.mxu0 0.0
    %614 = vmatpush1.msra.mxu0 %v572
    %615 = vmatprep.subr.mxu0 0.0
    %616 = vmatpush1.msra.mxu0 %v571
    %617 = vmatprep.subr.mxu0 0.0
    %618 = vmatpush2.msra.mxu0 0.0
    %619 = vmatprep.subr.mxu0 0.0
    %620 = vmatpush2.msra.mxu0 0.0
    %621 = vmatprep.subr.mxu0 0.0
    %622 = vmatpush2.msra.mxu0 0.0
    %623 = vmatprep.subr.mxu0 0.0
    %624 = vmatpush2.msra.mxu0 0.0
    %625 = vmatprep.subr.mxu0 0.0
    %626 = vmatpush2.msra.mxu0 0.0
    %627 = vmatprep.subr.mxu0 0.0
    %628 = vmatpush2.msra.mxu0 0.0
    %629 = vmatprep.subr.mxu0 0.0
    %630 = vmatpush2.msra.mxu0 0.0
    %631 = vmatprep.subr.mxu0 0.0
    %632 = vmatpush2.msra.mxu0 0.0
    %633 = vmatprep.subr.mxu0 0.0
    %634 = vmatpush2.msra.mxu0 0.0
    %635 = vmatprep.subr.mxu0 0.0
    %636 = vmatpush2.msra.mxu0 0.0
    %637 = vmatprep.subr.mxu0 0.0
    %638 = vmatpush2.msra.mxu0 0.0
    %639 = vmatprep.subr.mxu0 0.0
    %640 = vmatpush2.msra.mxu0 0.0
    %641 = vmatprep.subr.mxu0 0.0
    %642 = vmatpush2.msra.mxu0 0.0
    %643 = vmatprep.subr.mxu0 0.0
    %644 = vmatpush2.msra.mxu0 0.0
    %645 = vmatprep.subr.mxu0 0.0
    %646 = vmatpush2.msra.mxu0 0.0
    %647 = vmatprep.subr.mxu0 0.0
    %648 = vmatpush2.msra.mxu0 0.0
    %649 = vmatprep.mubr.f32.mxu0 0.0
    %650 = vmatmul.mubr.f32.gmra.mxu0 %v583
    %v651 = vpop.f32.mrf.mxu0
    %v652 = vadd.f32 %v580, %v651
    %v653 = vpop.f32.mrf.mxu0
    %654 = vdwg.mxu0
    %v655 = vadd.f32 %v147, %v652
    %v656 = vsel %vm73, %v655, 0.0
    %657 = vadd.xlane.f32.xlu0 %v656
    %v658 = vpop.xlane.xlu0 %657
    %v659 = vrcp.pop 32.0
    %v660 = vmul.f32 %v658, %v659
    %v661 = vsub.f32 %v655, %v660
    %v662 = vmul.f32 %v661, %v661
    %v663 = vsel %vm73, %v662, 0.0
    %664 = vadd.xlane.f32.xlu0 %v663
    %v665 = vpop.xlane.xlu0 %664
    %v666 = vmul.f32 %v665, %v659
    %v667 = vadd.f32 %v666, 1e-05
    %v668 = vrsqrt.pop %v667
    %v669 = vmul.f32 %v661, %v668
    %v670 = vld [vmem:[%s8] sm:$0x1]
    %v672 = vlaneseq
    %v673 = vshrl.u32 %v672, 7
    %v674 = vsub.s32 0, %v673
    %v675 = vrot.slane %v670, %v674
    %v677 = vmul.f32 %v669, %v675
    %v678 = vld [vmem:[%s9] sm:$0x1]
    %v680 = vlaneseq
    %v681 = vshrl.u32 %v680, 7
    %v682 = vsub.s32 0, %v681
    %v683 = vrot.slane %v678, %v682
    %v685 = vadd.f32 %v677, %v683
    %v686 = vld [vmem:[%s10] sm:$0xff]
    %v687 = vld [vmem:[%s10 + $0x8] sm:$0xff]
    %v688 = vld [vmem:[%s10 + $0x10] sm:$0xff]
    %v689 = vld [vmem:[%s10 + $0x18] sm:$0xff]
    %v690 = vld [vmem:[%s11] sm:$0x1]
    %v692 = vlaneseq
    %v693 = vshrl.u32 %v692, 7
    %v694 = vsub.s32 0, %v693
    %v695 = vrot.slane %v690, %v694
    %v698 = vsel %vm73, %v685, 0
    %700 = vmatprep.subr.mxu0 0.0
    %701 = vmatpush1.msra.mxu0 0.0
    %702 = vmatprep.subr.mxu0 0.0
    %703 = vmatpush1.msra.mxu0 0.0
    %704 = vmatprep.subr.mxu0 0.0
    %705 = vmatpush1.msra.mxu0 0.0
    %706 = vmatprep.subr.mxu0 0.0
    %707 = vmatpush1.msra.mxu0 0.0
    %708 = vmatprep.subr.mxu0 0.0
    %709 = vmatpush1.msra.mxu0 0.0
    %710 = vmatprep.subr.mxu0 0.0
    %711 = vmatpush1.msra.mxu0 0.0
    %712 = vmatprep.subr.mxu0 0.0
    %713 = vmatpush1.msra.mxu0 0.0
    %714 = vmatprep.subr.mxu0 0.0
    %715 = vmatpush1.msra.mxu0 0.0
    %716 = vmatprep.subr.mxu0 0.0
    %717 = vmatpush1.msra.mxu0 0.0
    %718 = vmatprep.subr.mxu0 0.0
    %719 = vmatpush1.msra.mxu0 0.0
    %720 = vmatprep.subr.mxu0 0.0
    %721 = vmatpush1.msra.mxu0 0.0
    %722 = vmatprep.subr.mxu0 0.0
    %723 = vmatpush1.msra.mxu0 0.0
    %724 = vmatprep.subr.mxu0 0.0
    %725 = vmatpush1.msra.mxu0 %v689
    %726 = vmatprep.subr.mxu0 0.0
    %727 = vmatpush1.msra.mxu0 %v688
    %728 = vmatprep.subr.mxu0 0.0
    %729 = vmatpush1.msra.mxu0 %v687
    %730 = vmatprep.subr.mxu0 0.0
    %731 = vmatpush1.msra.mxu0 %v686
    %732 = vmatprep.subr.mxu0 0.0
    %733 = vmatpush2.msra.mxu0 0.0
    %734 = vmatprep.subr.mxu0 0.0
    %735 = vmatpush2.msra.mxu0 0.0
    %736 = vmatprep.subr.mxu0 0.0
    %737 = vmatpush2.msra.mxu0 0.0
    %738 = vmatprep.subr.mxu0 0.0
    %739 = vmatpush2.msra.mxu0 0.0
    %740 = vmatprep.subr.mxu0 0.0
    %741 = vmatpush2.msra.mxu0 0.0
    %742 = vmatprep.subr.mxu0 0.0
    %743 = vmatpush2.msra.mxu0 0.0
    %744 = vmatprep.subr.mxu0 0.0
    %745 = vmatpush2.msra.mxu0 0.0
    %746 = vmatprep.subr.mxu0 0.0
    %747 = vmatpush2.msra.mxu0 0.0
    %748 = vmatprep.subr.mxu0 0.0
    %749 = vmatpush2.msra.mxu0 0.0
    %750 = vmatprep.subr.mxu0 0.0
    %751 = vmatpush2.msra.mxu0 0.0
    %752 = vmatprep.subr.mxu0 0.0
    %753 = vmatpush2.msra.mxu0 0.0
    %754 = vmatprep.subr.mxu0 0.0
    %755 = vmatpush2.msra.mxu0 0.0
    %756 = vmatprep.subr.mxu0 0.0
    %757 = vmatpush2.msra.mxu0 0.0
    %758 = vmatprep.subr.mxu0 0.0
    %759 = vmatpush2.msra.mxu0 0.0
    %760 = vmatprep.subr.mxu0 0.0
    %761 = vmatpush2.msra.mxu0 0.0
    %762 = vmatprep.subr.mxu0 0.0
    %763 = vmatpush2.msra.mxu0 0.0
    %764 = vmatprep.mubr.f32.mxu0 0.0
    %765 = vmatmul.mubr.f32.gmra.mxu0 %v698
    %v766 = vpop.f32.mrf.mxu0
    %v767 = vadd.f32 %v695, %v766
    %v768 = vpop.f32.mrf.mxu0
    %769 = vdwg.mxu0
    %v770 = vmax.f32 %v767, 0.0
    %v771 = vld [vmem:[%s12] sm:$0xff]
    %v772 = vld [vmem:[%s12 + $0x8] sm:$0xff]
    %v773 = vld [vmem:[%s12 + $0x10] sm:$0xff]
    %v774 = vld [vmem:[%s12 + $0x18] sm:$0xff]
    %v775 = vld [vmem:[%s12 + $0x20] sm:$0xff]
    %v776 = vld [vmem:[%s12 + $0x28] sm:$0xff]
    %v777 = vld [vmem:[%s12 + $0x30] sm:$0xff]
    %v778 = vld [vmem:[%s12 + $0x38] sm:$0xff]
    %v779 = vld [vmem:[%s12 + $0x40] sm:$0xff]
    %v780 = vld [vmem:[%s12 + $0x48] sm:$0xff]
    %v781 = vld [vmem:[%s12 + $0x50] sm:$0xff]
    %v782 = vld [vmem:[%s12 + $0x58] sm:$0xff]
    %v783 = vld [vmem:[%s12 + $0x60] sm:$0xff]
    %v784 = vld [vmem:[%s12 + $0x68] sm:$0xff]
    %v785 = vld [vmem:[%s12 + $0x70] sm:$0xff]
    %v786 = vld [vmem:[%s12 + $0x78] sm:$0xff]
    %v787 = vld [vmem:[%s13] sm:$0x1]
    %v789 = vlaneseq
    %v790 = vshrl.u32 %v789, 7
    %v791 = vsub.s32 0, %v790
    %v792 = vrot.slane %v787, %v791
    %794 = vmatprep.subr.mxu0 0.0
    %795 = vmatpush1.msra.mxu0 %v786
    %796 = vmatprep.subr.mxu0 0.0
    %797 = vmatpush1.msra.mxu0 %v785
    %798 = vmatprep.subr.mxu0 0.0
    %799 = vmatpush1.msra.mxu0 %v784
    %800 = vmatprep.subr.mxu0 0.0
    %801 = vmatpush1.msra.mxu0 %v783
    %802 = vmatprep.subr.mxu0 0.0
    %803 = vmatpush1.msra.mxu0 %v782
    %804 = vmatprep.subr.mxu0 0.0
    %805 = vmatpush1.msra.mxu0 %v781
    %806 = vmatprep.subr.mxu0 0.0
    %807 = vmatpush1.msra.mxu0 %v780
    %808 = vmatprep.subr.mxu0 0.0
    %809 = vmatpush1.msra.mxu0 %v779
    %810 = vmatprep.subr.mxu0 0.0
    %811 = vmatpush1.msra.mxu0 %v778
    %812 = vmatprep.subr.mxu0 0.0
    %813 = vmatpush1.msra.mxu0 %v777
    %814 = vmatprep.subr.mxu0 0.0
    %815 = vmatpush1.msra.mxu0 %v776
    %816 = vmatprep.subr.mxu0 0.0
    %817 = vmatpush1.msra.mxu0 %v775
    %818 = vmatprep.subr.mxu0 0.0
    %819 = vmatpush1.msra.mxu0 %v774
    %820 = vmatprep.subr.mxu0 0.0
    %821 = vmatpush1.msra.mxu0 %v773
    %822 = vmatprep.subr.mxu0 0.0
    %823 = vmatpush1.msra.mxu0 %v772
    %824 = vmatprep.subr.mxu0 0.0
    %825 = vmatpush1.msra.mxu0 %v771
    %826 = vmatprep.subr.mxu0 0.0
    %827 = vmatpush2.msra.mxu0 0.0
    %828 = vmatprep.subr.mxu0 0.0
    %829 = vmatpush2.msra.mxu0 0.0
    %830 = vmatprep.subr.mxu0 0.0
    %831 = vmatpush2.msra.mxu0 0.0
    %832 = vmatprep.subr.mxu0 0.0
    %833 = vmatpush2.msra.mxu0 0.0
    %834 = vmatprep.subr.mxu0 0.0
    %835 = vmatpush2.msra.mxu0 0.0
    %836 = vmatprep.subr.mxu0 0.0
    %837 = vmatpush2.msra.mxu0 0.0
    %838 = vmatprep.subr.mxu0 0.0
    %839 = vmatpush2.msra.mxu0 0.0
    %840 = vmatprep.subr.mxu0 0.0
    %841 = vmatpush2.msra.mxu0 0.0
    %842 = vmatprep.subr.mxu0 0.0
    %843 = vmatpush2.msra.mxu0 0.0
    %844 = vmatprep.subr.mxu0 0.0
    %845 = vmatpush2.msra.mxu0 0.0
    %846 = vmatprep.subr.mxu0 0.0
    %847 = vmatpush2.msra.mxu0 0.0
    %848 = vmatprep.subr.mxu0 0.0
    %849 = vmatpush2.msra.mxu0 0.0
    %850 = vmatprep.subr.mxu0 0.0
    %851 = vmatpush2.msra.mxu0 0.0
    %852 = vmatprep.subr.mxu0 0.0
    %853 = vmatpush2.msra.mxu0 0.0
    %854 = vmatprep.subr.mxu0 0.0
    %855 = vmatpush2.msra.mxu0 0.0
    %856 = vmatprep.subr.mxu0 0.0
    %857 = vmatpush2.msra.mxu0 0.0
    %858 = vmatprep.mubr.f32.mxu0 0.0
    %859 = vmatmul.mubr.f32.gmra.mxu0 %v770
    %v860 = vpop.f32.mrf.mxu0
    %v861 = vadd.f32 %v792, %v860
    %v862 = vpop.f32.mrf.mxu0
    %863 = vdwg.mxu0
    %v864 = vadd.f32 %v685, %v861
    %v865 = vsel %vm73, %v864, 0.0
    %866 = vadd.xlane.f32.xlu0 %v865
    %v867 = vpop.xlane.xlu0 %866
    %v868 = vmul.f32 %v867, %v659
    %v869 = vsub.f32 %v864, %v868
    %v870 = vmul.f32 %v869, %v869
    %v871 = vsel %vm73, %v870, 0.0
    %872 = vadd.xlane.f32.xlu0 %v871
    %v873 = vpop.xlane.xlu0 %872
    %v874 = vmul.f32 %v873, %v659
    %v875 = vadd.f32 %v874, 1e-05
    %v876 = vrsqrt.pop %v875
    %v877 = vmul.f32 %v869, %v876
    %v878 = vld [vmem:[%s14] sm:$0x1]
    %v880 = vlaneseq
    %v881 = vshrl.u32 %v880, 7
    %v882 = vsub.s32 0, %v881
    %v883 = vrot.slane %v878, %v882
    %v885 = vmul.f32 %v877, %v883
    %v886 = vld [vmem:[%s15] sm:$0x1]
    %v888 = vlaneseq
    %v889 = vshrl.u32 %v888, 7
    %v890 = vsub.s32 0, %v889
    %v891 = vrot.slane %v886, %v890
    %v893 = vadd.f32 %v885, %v891
    %s894 = sld [smem:[#allocation3]]
    %v895 = vstv %s894
    %vm896 = vcmp.eq.s32.totalorder %v60, %v895
    %v897 = vsel %vm896, 1, 0
    %v898 = vcvt.s32.f32 %v897
    %v900 = vsel %vm313, %v898, 0
    %902 = vmatprep.subr.mxu0 0.0
    %903 = vmatpush1.msra.mxu0 0.0
    %904 = vmatprep.subr.mxu0 0.0
    %905 = vmatpush1.msra.mxu0 0.0
    %906 = vmatprep.subr.mxu0 0.0
    %907 = vmatpush1.msra.mxu0 0.0
    %908 = vmatprep.subr.mxu0 0.0
    %909 = vmatpush1.msra.mxu0 0.0
    %910 = vmatprep.subr.mxu0 0.0
    %911 = vmatpush1.msra.mxu0 0.0
    %912 = vmatprep.subr.mxu0 0.0
    %913 = vmatpush1.msra.mxu0 0.0
    %914 = vmatprep.subr.mxu0 0.0
    %915 = vmatpush1.msra.mxu0 0.0
    %916 = vmatprep.subr.mxu0 0.0
    %917 = vmatpush1.msra.mxu0 0.0
    %918 = vmatprep.subr.mxu0 0.0
    %919 = vmatpush1.msra.mxu0 0.0
    %920 = vmatprep.subr.mxu0 0.0
    %921 = vmatpush1.msra.mxu0 0.0
    %922 = vmatprep.subr.mxu0 0.0
    %923 = vmatpush1.msra.mxu0 0.0
    %924 = vmatprep.subr.mxu0 0.0
    %925 = vmatpush1.msra.mxu0 0.0
    %926 = vmatprep.subr.mxu0 0.0
    %927 = vmatpush1.msra.mxu0 0.0
    %928 = vmatprep.subr.mxu0 0.0
    %929 = vmatpush1.msra.mxu0 0.0
    %930 = vmatprep.subr.mxu0 0.0
    %931 = vmatpush1.msra.mxu0 0.0
    %932 = vmatprep.subr.mxu0 0.0
    %933 = vmatpush1.msra.mxu0 %v893
    %934 = vmatprep.subr.mxu0 0.0
    %935 = vmatpush2.msra.mxu0 0.0
    %936 = vmatprep.subr.mxu0 0.0
    %937 = vmatpush2.msra.mxu0 0.0
    %938 = vmatprep.subr.mxu0 0.0
    %939 = vmatpush2.msra.mxu0 0.0
    %940 = vmatprep.subr.mxu0 0.0
    %941 = vmatpush2.msra.mxu0 0.0
    %942 = vmatprep.subr.mxu0 0.0
    %943 = vmatpush2.msra.mxu0 0.0
    %944 = vmatprep.subr.mxu0 0.0
    %945 = vmatpush2.msra.mxu0 0.0
    %946 = vmatprep.subr.mxu0 0.0
    %947 = vmatpush2.msra.mxu0 0.0
    %948 = vmatprep.subr.mxu0 0.0
    %949 = vmatpush2.msra.mxu0 0.0
    %950 = vmatprep.subr.mxu0 0.0
    %951 = vmatpush2.msra.mxu0 0.0
    %952 = vmatprep.subr.mxu0 0.0
    %953 = vmatpush2.msra.mxu0 0.0
    %954 = vmatprep.subr.mxu0 0.0
    %955 = vmatpush2.msra.mxu0 0.0
    %956 = vmatprep.subr.mxu0 0.0
    %957 = vmatpush2.msra.mxu0 0.0
    %958 = vmatprep.subr.mxu0 0.0
    %959 = vmatpush2.msra.mxu0 0.0
    %960 = vmatprep.subr.mxu0 0.0
    %961 = vmatpush2.msra.mxu0 0.0
    %962 = vmatprep.subr.mxu0 0.0
    %963 = vmatpush2.msra.mxu0 0.0
    %964 = vmatprep.subr.mxu0 0.0
    %965 = vmatpush2.msra.mxu0 0.0
    %966 = vmatprep.mubr.f32.mxu0 0.0
    %967 = vmatmul.mubr.f32.gmra.mxu0 %v900
    %v968 = vpop.f32.mrf.mxu0
    %v969 = vadd.f32 0.0, %v968
    %v970 = vpop.f32.mrf.mxu0
    %971 = vdwg.mxu0
    %vm972 = vcmask 253952
    %973 = vst.msk [vmem:[#allocation6] sm:$0x1] %vm972, %v969
    %s974 = scalar_lea.vmem %s1, 8
    %v975 = vld [vmem:[%s974] sm:$0xff]
    %v976 = vld [vmem:[%s2] sm:$0xff]
    %v977 = vld [vmem:[%s2 + $0x8] sm:$0xff]
    %v978 = vld [vmem:[%s2 + $0x10] sm:$0xff]
    %v979 = vld [vmem:[%s2 + $0x18] sm:$0xff]
    %v980 = vld [vmem:[%s3] sm:$0x1]
    %v982 = vlaneseq
    %v983 = vshrl.u32 %v982, 7
    %v984 = vsub.s32 0, %v983
    %v985 = vrot.slane %v980, %v984
    %v988 = vsel %vm73, %v975, 0
    %990 = vmatprep.subr.mxu0 0.0
    %991 = vmatpush1.msra.mxu0 0.0
    %992 = vmatprep.subr.mxu0 0.0
    %993 = vmatpush1.msra.mxu0 0.0
    %994 = vmatprep.subr.mxu0 0.0
    %995 = vmatpush1.msra.mxu0 0.0
    %996 = vmatprep.subr.mxu0 0.0
    %997 = vmatpush1.msra.mxu0 0.0
    %998 = vmatprep.subr.mxu0 0.0
    %999 = vmatpush1.msra.mxu0 0.0
    %1000 = vmatprep.subr.mxu0 0.0
    %1001 = vmatpush1.msra.mxu0 0.0
    %1002 = vmatprep.subr.mxu0 0.0
    %1003 = vmatpush1.msra.mxu0 0.0
    %1004 = vmatprep.subr.mxu0 0.0
    %1005 = vmatpush1.msra.mxu0 0.0
    %1006 = vmatprep.subr.mxu0 0.0
    %1007 = vmatpush1.msra.mxu0 0.0
    %1008 = vmatprep.subr.mxu0 0.0
    %1009 = vmatpush1.msra.mxu0 0.0
    %1010 = vmatprep.subr.mxu0 0.0
    %1011 = vmatpush1.msra.mxu0 0.0
    %1012 = vmatprep.subr.mxu0 0.0
    %1013 = vmatpush1.msra.mxu0 0.0
    %1014 = vmatprep.subr.mxu0 0.0
    %1015 = vmatpush1.msra.mxu0 %v979
    %1016 = vmatprep.subr.mxu0 0.0
    %1017 = vmatpush1.msra.mxu0 %v978
    %1018 = vmatprep.subr.mxu0 0.0
    %1019 = vmatpush1.msra.mxu0 %v977
    %1020 = vmatprep.subr.mxu0 0.0
    %1021 = vmatpush1.msra.mxu0 %v976
    %1022 = vmatprep.subr.mxu0 0.0
    %1023 = vmatpush2.msra.mxu0 0.0
    %1024 = vmatprep.subr.mxu0 0.0
    %1025 = vmatpush2.msra.mxu0 0.0
    %1026 = vmatprep.subr.mxu0 0.0
    %1027 = vmatpush2.msra.mxu0 0.0
    %1028 = vmatprep.subr.mxu0 0.0
    %1029 = vmatpush2.msra.mxu0 0.0
    %1030 = vmatprep.subr.mxu0 0.0
    %1031 = vmatpush2.msra.mxu0 0.0
    %1032 = vmatprep.subr.mxu0 0.0
    %1033 = vmatpush2.msra.mxu0 0.0
    %1034 = vmatprep.subr.mxu0 0.0
    %1035 = vmatpush2.msra.mxu0 0.0
    %1036 = vmatprep.subr.mxu0 0.0
    %1037 = vmatpush2.msra.mxu0 0.0
    %1038 = vmatprep.subr.mxu0 0.0
    %1039 = vmatpush2.msra.mxu0 0.0
    %1040 = vmatprep.subr.mxu0 0.0
    %1041 = vmatpush2.msra.mxu0 0.0
    %1042 = vmatprep.subr.mxu0 0.0
    %1043 = vmatpush2.msra.mxu0 0.0
    %1044 = vmatprep.subr.mxu0 0.0
    %1045 = vmatpush2.msra.mxu0 0.0
    %1046 = vmatprep.subr.mxu0 0.0
    %1047 = vmatpush2.msra.mxu0 0.0
    %1048 = vmatprep.subr.mxu0 0.0
    %1049 = vmatpush2.msra.mxu0 0.0
    %1050 = vmatprep.subr.mxu0 0.0
    %1051 = vmatpush2.msra.mxu0 0.0
    %1052 = vmatprep.subr.mxu0 0.0
    %1053 = vmatpush2.msra.mxu0 0.0
    %1054 = vmatprep.mubr.f32.mxu0 0.0
    %1055 = vmatmul.mubr.f32.gmra.mxu0 %v988
    %v1056 = vpop.f32.mrf.mxu0
    %v1057 = vadd.f32 %v985, %v1056
    %v1058 = vpop.f32.mrf.mxu0
    %1059 = vdwg.mxu0
    %v1060 = vtanh.pop %v1057
    %s1061 = scalar_lea.vmem [#allocation4], 8
    %1062 = vst.msk [vmem:[%s1061] sm:$0xff] %vm73, %v1060
    %v1063 = vld [vmem:[%s4] sm:$0xff]
    %v1064 = vld [vmem:[%s4 + $0x8] sm:$0xff]
    %v1065 = vld [vmem:[%s4 + $0x10] sm:$0xff]
    %v1066 = vld [vmem:[%s4 + $0x18] sm:$0xff]
    %v1067 = vld [vmem:[%s5] sm:$0x1]
    %v1069 = vlaneseq
    %v1070 = vshrl.u32 %v1069, 7
    %v1071 = vsub.s32 0, %v1070
    %v1072 = vrot.slane %v1067, %v1071
    %v1075 = vsel %vm73, %v1060, 0
    %1077 = vmatprep.subr.mxu0 0.0
    %1078 = vmatpush1.msra.mxu0 0.0
    %1079 = vmatprep.subr.mxu0 0.0
    %1080 = vmatpush1.msra.mxu0 0.0
    %1081 = vmatprep.subr.mxu0 0.0
    %1082 = vmatpush1.msra.mxu0 0.0
    %1083 = vmatprep.subr.mxu0 0.0
    %1084 = vmatpush1.msra.mxu0 0.0
    %1085 = vmatprep.subr.mxu0 0.0
    %1086 = vmatpush1.msra.mxu0 0.0
    %1087 = vmatprep.subr.mxu0 0.0
    %1088 = vmatpush1.msra.mxu0 0.0
    %1089 = vmatprep.subr.mxu0 0.0
    %1090 = vmatpush1.msra.mxu0 0.0
    %1091 = vmatprep.subr.mxu0 0.0
    %1092 = vmatpush1.msra.mxu0 0.0
    %1093 = vmatprep.subr.mxu0 0.0
    %1094 = vmatpush1.msra.mxu0 0.0
    %1095 = vmatprep.subr.mxu0 0.0
    %1096 = vmatpush1.msra.mxu0 0.0
    %1097 = vmatprep.subr.mxu0 0.0
    %1098 = vmatpush1.msra.mxu0 0.0
    %1099 = vmatprep.subr.mxu0 0.0
    %1100 = vmatpush1.msra.mxu0 0.0
    %1101 = vmatprep.subr.mxu0 0.0
    %1102 = vmatpush1.msra.mxu0 %v1066
    %1103 = vmatprep.subr.mxu0 0.0
    %1104 = vmatpush1.msra.mxu0 %v1065
    %1105 = vmatprep.subr.mxu0 0.0
    %1106 = vmatpush1.msra.mxu0 %v1064
    %1107 = vmatprep.subr.mxu0 0.0
    %1108 = vmatpush1.msra.mxu0 %v1063
    %1109 = vmatprep.subr.mxu0 0.0
    %1110 = vmatpush2.msra.mxu0 0.0
    %1111 = vmatprep.subr.mxu0 0.0
    %1112 = vmatpush2.msra.mxu0 0.0
    %1113 = vmatprep.subr.mxu0 0.0
    %1114 = vmatpush2.msra.mxu0 0.0
    %1115 = vmatprep.subr.mxu0 0.0
    %1116 = vmatpush2.msra.mxu0 0.0
    %1117 = vmatprep.subr.mxu0 0.0
    %1118 = vmatpush2.msra.mxu0 0.0
    %1119 = vmatprep.subr.mxu0 0.0
    %1120 = vmatpush2.msra.mxu0 0.0
    %1121 = vmatprep.subr.mxu0 0.0
    %1122 = vmatpush2.msra.mxu0 0.0
    %1123 = vmatprep.subr.mxu0 0.0
    %1124 = vmatpush2.msra.mxu0 0.0
    %1125 = vmatprep.subr.mxu0 0.0
    %1126 = vmatpush2.msra.mxu0 0.0
    %1127 = vmatprep.subr.mxu0 0.0
    %1128 = vmatpush2.msra.mxu0 0.0
    %1129 = vmatprep.subr.mxu0 0.0
    %1130 = vmatpush2.msra.mxu0 0.0
    %1131 = vmatprep.subr.mxu0 0.0
    %1132 = vmatpush2.msra.mxu0 0.0
    %1133 = vmatprep.subr.mxu0 0.0
    %1134 = vmatpush2.msra.mxu0 0.0
    %1135 = vmatprep.subr.mxu0 0.0
    %1136 = vmatpush2.msra.mxu0 0.0
    %1137 = vmatprep.subr.mxu0 0.0
    %1138 = vmatpush2.msra.mxu0 0.0
    %1139 = vmatprep.subr.mxu0 0.0
    %1140 = vmatpush2.msra.mxu0 0.0
    %1141 = vmatprep.mubr.f32.mxu0 0.0
    %1142 = vmatmul.mubr.f32.gmra.mxu0 %v1075
    %v1143 = vpop.f32.mrf.mxu0
    %v1144 = vadd.f32 %v1072, %v1143
    %v1145 = vpop.f32.mrf.mxu0
    %1146 = vdwg.mxu0
    %v1147 = vmul.f32 %v1144, 0.25
    %1149 = vrot.lane.b32.xlu0 %v1144, 96
    %v1150 = vpop.permute.xlu0 %1149
    %v1152 = vsel %vm237, %v1147, 0
    %v1154 = vsel %vm237, %v1150, 0
    %1156 = vmatprep.subr.mxu0 0.0
    %1157 = vmatpush1.xpose.msra.mxu0 0.0
    %1158 = vmatprep.subr.mxu0 0.0
    %1159 = vmatpush1.xpose.msra.mxu0 0.0
    %1160 = vmatprep.subr.mxu0 0.0
    %1161 = vmatpush1.xpose.msra.mxu0 0.0
    %1162 = vmatprep.subr.mxu0 0.0
    %1163 = vmatpush1.xpose.msra.mxu0 0.0
    %1164 = vmatprep.subr.mxu0 0.0
    %1165 = vmatpush1.xpose.msra.mxu0 0.0
    %1166 = vmatprep.subr.mxu0 0.0
    %1167 = vmatpush1.xpose.msra.mxu0 0.0
    %1168 = vmatprep.subr.mxu0 0.0
    %1169 = vmatpush1.xpose.msra.mxu0 0.0
    %1170 = vmatprep.subr.mxu0 0.0
    %1171 = vmatpush1.xpose.msra.mxu0 0.0
    %1172 = vmatprep.subr.mxu0 0.0
    %1173 = vmatpush1.xpose.msra.mxu0 0.0
    %1174 = vmatprep.subr.mxu0 0.0
    %1175 = vmatpush1.xpose.msra.mxu0 0.0
    %1176 = vmatprep.subr.mxu0 0.0
    %1177 = vmatpush1.xpose.msra.mxu0 0.0
    %1178 = vmatprep.subr.mxu0 0.0
    %1179 = vmatpush1.xpose.msra.mxu0 0.0
    %1180 = vmatprep.subr.mxu0 0.0
    %1181 = vmatpush1.xpose.msra.mxu0 0.0
    %1182 = vmatprep.subr.mxu0 0.0
    %1183 = vmatpush1.xpose.msra.mxu0 0.0
    %1184 = vmatprep.subr.mxu0 0.0
    %1185 = vmatpush1.xpose.msra.mxu0 0.0
    %1186 = vmatprep.subr.mxu0 0.0
    %1187 = vmatpush1.xpose.msra.mxu0 %v1154
    %1188 = vmatprep.subr.mxu0 0.0
    %1189 = vmatpush2.xpose.msra.mxu0 0.0
    %1190 = vmatprep.subr.mxu0 0.0
    %1191 = vmatpush2.xpose.msra.mxu0 0.0
    %1192 = vmatprep.subr.mxu0 0.0
    %1193 = vmatpush2.xpose.msra.mxu0 0.0
    %1194 = vmatprep.subr.mxu0 0.0
    %1195 = vmatpush2.xpose.msra.mxu0 0.0
    %1196 = vmatprep.subr.mxu0 0.0
    %1197 = vmatpush2.xpose.msra.mxu0 0.0
    %1198 = vmatprep.subr.mxu0 0.0
    %1199 = vmatpush2.xpose.msra.mxu0 0.0
    %1200 = vmatprep.subr.mxu0 0.0
    %1201 = vmatpush2.xpose.msra.mxu0 0.0
    %1202 = vmatprep.subr.mxu0 0.0
    %1203 = vmatpush2.xpose.msra.mxu0 0.0
    %1204 = vmatprep.subr.mxu0 0.0
    %1205 = vmatpush2.xpose.msra.mxu0 0.0
    %1206 = vmatprep.subr.mxu0 0.0
    %1207 = vmatpush2.xpose.msra.mxu0 0.0
    %1208 = vmatprep.subr.mxu0 0.0
    %1209 = vmatpush2.xpose.msra.mxu0 0.0
    %1210 = vmatprep.subr.mxu0 0.0
    %1211 = vmatpush2.xpose.msra.mxu0 0.0
    %1212 = vmatprep.subr.mxu0 0.0
    %1213 = vmatpush2.xpose.msra.mxu0 0.0
    %1214 = vmatprep.subr.mxu0 0.0
    %1215 = vmatpush2.xpose.msra.mxu0 0.0
    %1216 = vmatprep.subr.mxu0 0.0
    %1217 = vmatpush2.xpose.msra.mxu0 0.0
    %1218 = vmatprep.subr.mxu0 0.0
    %1219 = vmatpush2.xpose.msra.mxu0 0.0
    %1220 = vmatprep.mubr.f32.mxu0 0.0
    %1221 = vmatmul.mubr.f32.gmra.mxu0 %v1152
    %v1222 = vpop.f32.mrf.mxu0
    %v1223 = vadd.f32 0.0, %v1222
    %v1224 = vpop.f32.mrf.mxu0
    %1225 = vdwg.mxu0
    %v1226 = vsel %vm313, %v1223, -inf
    %1227 = vmax.xlane.f32.xlu0 %v1226
    %v1228 = vpop.xlane.xlu0 %1227
    %v1229 = vsub.f32 %v1223, %v1228
    %v1230 = vmul.f32 %v1229, 1.442695
    %v1231 = vpow.pop %v1230
    %v1232 = vsel %vm313, %v1231, 0.0
    %1233 = vadd.xlane.f32.xlu0 %v1232
    %v1234 = vpop.xlane.xlu0 %1233
    %v1235 = vrcp.pop %v1234
    %v1236 = vmul.f32 %v1231, %v1235
    %1237 = vrot.lane.b32.xlu0 %v1144, 64
    %v1238 = vpop.permute.xlu0 %1237
    %v1241 = vsel %vm313, %v1236, 0
    %1243 = vmatprep.subr.mxu0 0.0
    %1244 = vmatpush1.msra.mxu0 0.0
    %1245 = vmatprep.subr.mxu0 0.0
    %1246 = vmatpush1.msra.mxu0 0.0
    %1247 = vmatprep.subr.mxu0 0.0
    %1248 = vmatpush1.msra.mxu0 0.0
    %1249 = vmatprep.subr.mxu0 0.0
    %1250 = vmatpush1.msra.mxu0 0.0
    %1251 = vmatprep.subr.mxu0 0.0
    %1252 = vmatpush1.msra.mxu0 0.0
    %1253 = vmatprep.subr.mxu0 0.0
    %1254 = vmatpush1.msra.mxu0 0.0
    %1255 = vmatprep.subr.mxu0 0.0
    %1256 = vmatpush1.msra.mxu0 0.0
    %1257 = vmatprep.subr.mxu0 0.0
    %1258 = vmatpush1.msra.mxu0 0.0
    %1259 = vmatprep.subr.mxu0 0.0
    %1260 = vmatpush1.msra.mxu0 0.0
    %1261 = vmatprep.subr.mxu0 0.0
    %1262 = vmatpush1.msra.mxu0 0.0
    %1263 = vmatprep.subr.mxu0 0.0
    %1264 = vmatpush1.msra.mxu0 0.0
    %1265 = vmatprep.subr.mxu0 0.0
    %1266 = vmatpush1.msra.mxu0 0.0
    %1267 = vmatprep.subr.mxu0 0.0
    %1268 = vmatpush1.msra.mxu0 0.0
    %1269 = vmatprep.subr.mxu0 0.0
    %1270 = vmatpush1.msra.mxu0 0.0
    %1271 = vmatprep.subr.mxu0 0.0
    %1272 = vmatpush1.msra.mxu0 0.0
    %1273 = vmatprep.subr.mxu0 0.0
    %1274 = vmatpush1.msra.mxu0 %v1238
    %1275 = vmatprep.subr.mxu0 0.0
    %1276 = vmatpush2.msra.mxu0 0.0
    %1277 = vmatprep.subr.mxu0 0.0
    %1278 = vmatpush2.msra.mxu0 0.0
    %1279 = vmatprep.subr.mxu0 0.0
    %1280 = vmatpush2.msra.mxu0 0.0
    %1281 = vmatprep.subr.mxu0 0.0
    %1282 = vmatpush2.msra.mxu0 0.0
    %1283 = vmatprep.subr.mxu0 0.0
    %1284 = vmatpush2.msra.mxu0 0.0
    %1285 = vmatprep.subr.mxu0 0.0
    %1286 = vmatpush2.msra.mxu0 0.0
    %1287 = vmatprep.subr.mxu0 0.0
    %1288 = vmatpush2.msra.mxu0 0.0
    %1289 = vmatprep.subr.mxu0 0.0
    %1290 = vmatpush2.msra.mxu0 0.0
    %1291 = vmatprep.subr.mxu0 0.0
    %1292 = vmatpush2.msra.mxu0 0.0
    %1293 = vmatprep.subr.mxu0 0.0
    %1294 = vmatpush2.msra.mxu0 0.0
    %1295 = vmatprep.subr.mxu0 0.0
    %1296 = vmatpush2.msra.mxu0 0.0
    %1297 = vmatprep.subr.mxu0 0.0
    %1298 = vmatpush2.msra.mxu0 0.0
    %1299 = vmatprep.subr.mxu0 0.0
    %1300 = vmatpush2.msra.mxu0 0.0
    %1301 = vmatprep.subr.mxu0 0.0
    %1302 = vmatpush2.msra.mxu0 0.0
    %1303 = vmatprep.subr.mxu0 0.0
    %1304 = vmatpush2.msra.mxu0 0.0
    %1305 = vmatprep.subr.mxu0 0.0
    %1306 = vmatpush2.msra.mxu0 0.0
    %1307 = vmatprep.mubr.f32.mxu0 0.0
    %1308 = vmatmul.mubr.f32.gmra.mxu0 %v1241
    %v1309 = vpop.f32.mrf.mxu0
    %v1310 = vadd.f32 0.0, %v1309
    %v1311 = vpop.f32.mrf.mxu0
    %1312 = vdwg.mxu0
    %1313 = vrot.lane.b32.xlu0 %v1147, 112
    %v1314 = vpop.permute.xlu0 %1313
    %1315 = vrot.lane.b32.xlu0 %v1144, 80
    %v1316 = vpop.permute.xlu0 %1315
    %v1317 = vsel %vm237, %v1314, 0
    %v1319 = vsel %vm237, %v1316, 0
    %1321 = vmatprep.subr.mxu0 0.0
    %1322 = vmatpush1.xpose.msra.mxu0 0.0
    %1323 = vmatprep.subr.mxu0 0.0
    %1324 = vmatpush1.xpose.msra.mxu0 0.0
    %1325 = vmatprep.subr.mxu0 0.0
    %1326 = vmatpush1.xpose.msra.mxu0 0.0
    %1327 = vmatprep.subr.mxu0 0.0
    %1328 = vmatpush1.xpose.msra.mxu0 0.0
    %1329 = vmatprep.subr.mxu0 0.0
    %1330 = vmatpush1.xpose.msra.mxu0 0.0
    %1331 = vmatprep.subr.mxu0 0.0
    %1332 = vmatpush1.xpose.msra.mxu0 0.0
    %1333 = vmatprep.subr.mxu0 0.0
    %1334 = vmatpush1.xpose.msra.mxu0 0.0
    %1335 = vmatprep.subr.mxu0 0.0
    %1336 = vmatpush1.xpose.msra.mxu0 0.0
    %1337 = vmatprep.subr.mxu0 0.0
    %1338 = vmatpush1.xpose.msra.mxu0 0.0
    %1339 = vmatprep.subr.mxu0 0.0
    %1340 = vmatpush1.xpose.msra.mxu0 0.0
    %1341 = vmatprep.subr.mxu0 0.0
    %1342 = vmatpush1.xpose.msra.mxu0 0.0
    %1343 = vmatprep.subr.mxu0 0.0
    %1344 = vmatpush1.xpose.msra.mxu0 0.0
    %1345 = vmatprep.subr.mxu0 0.0
    %1346 = vmatpush1.xpose.msra.mxu0 0.0
    %1347 = vmatprep.subr.mxu0 0.0
    %1348 = vmatpush1.xpose.msra.mxu0 0.0
    %1349 = vmatprep.subr.mxu0 0.0
    %1350 = vmatpush1.xpose.msra.mxu0 0.0
    %1351 = vmatprep.subr.mxu0 0.0
    %1352 = vmatpush1.xpose.msra.mxu0 %v1319
    %1353 = vmatprep.subr.mxu0 0.0
    %1354 = vmatpush2.xpose.msra.mxu0 0.0
    %1355 = vmatprep.subr.mxu0 0.0
    %1356 = vmatpush2.xpose.msra.mxu0 0.0
    %1357 = vmatprep.subr.mxu0 0.0
    %1358 = vmatpush2.xpose.msra.mxu0 0.0
    %1359 = vmatprep.subr.mxu0 0.0
    %1360 = vmatpush2.xpose.msra.mxu0 0.0
    %1361 = vmatprep.subr.mxu0 0.0
    %1362 = vmatpush2.xpose.msra.mxu0 0.0
    %1363 = vmatprep.subr.mxu0 0.0
    %1364 = vmatpush2.xpose.msra.mxu0 0.0
    %1365 = vmatprep.subr.mxu0 0.0
    %1366 = vmatpush2.xpose.msra.mxu0 0.0
    %1367 = vmatprep.subr.mxu0 0.0
    %1368 = vmatpush2.xpose.msra.mxu0 0.0
    %1369 = vmatprep.subr.mxu0 0.0
    %1370 = vmatpush2.xpose.msra.mxu0 0.0
    %1371 = vmatprep.subr.mxu0 0.0
    %1372 = vmatpush2.xpose.msra.mxu0 0.0
    %1373 = vmatprep.subr.mxu0 0.0
    %1374 = vmatpush2.xpose.msra.mxu0 0.0
    %1375 = vmatprep.subr.mxu0 0.0
    %1376 = vmatpush2.xpose.msra.mxu0 0.0
    %1377 = vmatprep.subr.mxu0 0.0
    %1378 = vmatpush2.xpose.msra.mxu0 0.0
    %1379 = vmatprep.subr.mxu0 0.0
    %1380 = vmatpush2.xpose.msra.mxu0 0.0
    %1381 = vmatprep.subr.mxu0 0.0
    %1382 = vmatpush2.xpose.msra.mxu0 0.0
    %1383 = vmatprep.subr.mxu0 0.0
    %1384 = vmatpush2.xpose.msra.mxu0 0.0
    %1385 = vmatprep.mubr.f32.mxu0 0.0
    %1386 = vmatmul.mubr.f32.gmra.mxu0 %v1317
    %v1387 = vpop.f32.mrf.mxu0
    %v1388 = vadd.f32 0.0, %v1387
    %v1389 = vpop.f32.mrf.mxu0
    %1390 = vdwg.mxu0
    %v1391 = vsel %vm313, %v1388, -inf
    %1392 = vmax.xlane.f32.xlu0 %v1391
    %v1393 = vpop.xlane.xlu0 %1392
    %v1394 = vsub.f32 %v1388, %v1393
    %v1395 = vmul.f32 %v1394, 1.442695
    %v1396 = vpow.pop %v1395
    %v1397 = vsel %vm313, %v1396, 0.0
    %1398 = vadd.xlane.f32.xlu0 %v1397
    %v1399 = vpop.xlane.xlu0 %1398
    %v1400 = vrcp.pop %v1399
    %v1401 = vmul.f32 %v1396, %v1400
    %1402 = vrot.lane.b32.xlu0 %v1144, 48
    %v1403 = vpop.permute.xlu0 %1402
    %v1406 = vsel %vm313, %v1401, 0
    %1408 = vmatprep.subr.mxu0 0.0
    %1409 = vmatpush1.msra.mxu0 0.0
    %1410 = vmatprep.subr.mxu0 0.0
    %1411 = vmatpush1.msra.mxu0 0.0
    %1412 = vmatprep.subr.mxu0 0.0
    %1413 = vmatpush1.msra.mxu0 0.0
    %1414 = vmatprep.subr.mxu0 0.0
    %1415 = vmatpush1.msra.mxu0 0.0
    %1416 = vmatprep.subr.mxu0 0.0
    %1417 = vmatpush1.msra.mxu0 0.0
    %1418 = vmatprep.subr.mxu0 0.0
    %1419 = vmatpush1.msra.mxu0 0.0
    %1420 = vmatprep.subr.mxu0 0.0
    %1421 = vmatpush1.msra.mxu0 0.0
    %1422 = vmatprep.subr.mxu0 0.0
    %1423 = vmatpush1.msra.mxu0 0.0
    %1424 = vmatprep.subr.mxu0 0.0
    %1425 = vmatpush1.msra.mxu0 0.0
    %1426 = vmatprep.subr.mxu0 0.0
    %1427 = vmatpush1.msra.mxu0 0.0
    %1428 = vmatprep.subr.mxu0 0.0
    %1429 = vmatpush1.msra.mxu0 0.0
    %1430 = vmatprep.subr.mxu0 0.0
    %1431 = vmatpush1.msra.mxu0 0.0
    %1432 = vmatprep.subr.mxu0 0.0
    %1433 = vmatpush1.msra.mxu0 0.0
    %1434 = vmatprep.subr.mxu0 0.0
    %1435 = vmatpush1.msra.mxu0 0.0
    %1436 = vmatprep.subr.mxu0 0.0
    %1437 = vmatpush1.msra.mxu0 0.0
    %1438 = vmatprep.subr.mxu0 0.0
    %1439 = vmatpush1.msra.mxu0 %v1403
    %1440 = vmatprep.subr.mxu0 0.0
    %1441 = vmatpush2.msra.mxu0 0.0
    %1442 = vmatprep.subr.mxu0 0.0
    %1443 = vmatpush2.msra.mxu0 0.0
    %1444 = vmatprep.subr.mxu0 0.0
    %1445 = vmatpush2.msra.mxu0 0.0
    %1446 = vmatprep.subr.mxu0 0.0
    %1447 = vmatpush2.msra.mxu0 0.0
    %1448 = vmatprep.subr.mxu0 0.0
    %1449 = vmatpush2.msra.mxu0 0.0
    %1450 = vmatprep.subr.mxu0 0.0
    %1451 = vmatpush2.msra.mxu0 0.0
    %1452 = vmatprep.subr.mxu0 0.0
    %1453 = vmatpush2.msra.mxu0 0.0
    %1454 = vmatprep.subr.mxu0 0.0
    %1455 = vmatpush2.msra.mxu0 0.0
    %1456 = vmatprep.subr.mxu0 0.0
    %1457 = vmatpush2.msra.mxu0 0.0
    %1458 = vmatprep.subr.mxu0 0.0
    %1459 = vmatpush2.msra.mxu0 0.0
    %1460 = vmatprep.subr.mxu0 0.0
    %1461 = vmatpush2.msra.mxu0 0.0
    %1462 = vmatprep.subr.mxu0 0.0
    %1463 = vmatpush2.msra.mxu0 0.0
    %1464 = vmatprep.subr.mxu0 0.0
    %1465 = vmatpush2.msra.mxu0 0.0
    %1466 = vmatprep.subr.mxu0 0.0
    %1467 = vmatpush2.msra.mxu0 0.0
    %1468 = vmatprep.subr.mxu0 0.0
    %1469 = vmatpush2.msra.mxu0 0.0
    %1470 = vmatprep.subr.mxu0 0.0
    %1471 = vmatpush2.msra.mxu0 0.0
    %1472 = vmatprep.mubr.f32.mxu0 0.0
    %1473 = vmatmul.mubr.f32.gmra.mxu0 %v1406
    %v1474 = vpop.f32.mrf.mxu0
    %v1475 = vadd.f32 0.0, %v1474
    %v1476 = vpop.f32.mrf.mxu0
    %1477 = vdwg.mxu0
    %1479 = vrot.lane.b32.xlu0 %v1475, 16
    %v1480 = vpop.permute.xlu0 %1479
    %v1482 = vsel %vm237, %v1310, %v1480
    %v1483 = vld [vmem:[%s6] sm:$0xff]
    %v1484 = vld [vmem:[%s6 + $0x8] sm:$0xff]
    %v1485 = vld [vmem:[%s6 + $0x10] sm:$0xff]
    %v1486 = vld [vmem:[%s6 + $0x18] sm:$0xff]
    %v1487 = vld [vmem:[%s7] sm:$0x1]
    %v1489 = vlaneseq
    %v1490 = vshrl.u32 %v1489, 7
    %v1491 = vsub.s32 0, %v1490
    %v1492 = vrot.slane %v1487, %v1491
    %v1495 = vsel %vm73, %v1482, 0
    %1497 = vmatprep.subr.mxu0 0.0
    %1498 = vmatpush1.msra.mxu0 0.0
    %1499 = vmatprep.subr.mxu0 0.0
    %1500 = vmatpush1.msra.mxu0 0.0
    %1501 = vmatprep.subr.mxu0 0.0
    %1502 = vmatpush1.msra.mxu0 0.0
    %1503 = vmatprep.subr.mxu0 0.0
    %1504 = vmatpush1.msra.mxu0 0.0
    %1505 = vmatprep.subr.mxu0 0.0
    %1506 = vmatpush1.msra.mxu0 0.0
    %1507 = vmatprep.subr.mxu0 0.0
    %1508 = vmatpush1.msra.mxu0 0.0
    %1509 = vmatprep.subr.mxu0 0.0
    %1510 = vmatpush1.msra.mxu0 0.0
    %1511 = vmatprep.subr.mxu0 0.0
    %1512 = vmatpush1.msra.mxu0 0.0
    %1513 = vmatprep.subr.mxu0 0.0
    %1514 = vmatpush1.msra.mxu0 0.0
    %1515 = vmatprep.subr.mxu0 0.0
    %1516 = vmatpush1.msra.mxu0 0.0
    %1517 = vmatprep.subr.mxu0 0.0
    %1518 = vmatpush1.msra.mxu0 0.0
    %1519 = vmatprep.subr.mxu0 0.0
    %1520 = vmatpush1.msra.mxu0 0.0
    %1521 = vmatprep.subr.mxu0 0.0
    %1522 = vmatpush1.msra.mxu0 %v1486
    %1523 = vmatprep.subr.mxu0 0.0
    %1524 = vmatpush1.msra.mxu0 %v1485
    %1525 = vmatprep.subr.mxu0 0.0
    %1526 = vmatpush1.msra.mxu0 %v1484
    %1527 = vmatprep.subr.mxu0 0.0
    %1528 = vmatpush1.msra.mxu0 %v1483
    %1529 = vmatprep.subr.mxu0 0.0
    %1530 = vmatpush2.msra.mxu0 0.0
    %1531 = vmatprep.subr.mxu0 0.0
    %1532 = vmatpush2.msra.mxu0 0.0
    %1533 = vmatprep.subr.mxu0 0.0
    %1534 = vmatpush2.msra.mxu0 0.0
    %1535 = vmatprep.subr.mxu0 0.0
    %1536 = vmatpush2.msra.mxu0 0.0
    %1537 = vmatprep.subr.mxu0 0.0
    %1538 = vmatpush2.msra.mxu0 0.0
    %1539 = vmatprep.subr.mxu0 0.0
    %1540 = vmatpush2.msra.mxu0 0.0
    %1541 = vmatprep.subr.mxu0 0.0
    %1542 = vmatpush2.msra.mxu0 0.0
    %1543 = vmatprep.subr.mxu0 0.0
    %1544 = vmatpush2.msra.mxu0 0.0
    %1545 = vmatprep.subr.mxu0 0.0
    %1546 = vmatpush2.msra.mxu0 0.0
    %1547 = vmatprep.subr.mxu0 0.0
    %1548 = vmatpush2.msra.mxu0 0.0
    %1549 = vmatprep.subr.mxu0 0.0
    %1550 = vmatpush2.msra.mxu0 0.0
    %1551 = vmatprep.subr.mxu0 0.0
    %1552 = vmatpush2.msra.mxu0 0.0
    %1553 = vmatprep.subr.mxu0 0.0
    %1554 = vmatpush2.msra.mxu0 0.0
    %1555 = vmatprep.subr.mxu0 0.0
    %1556 = vmatpush2.msra.mxu0 0.0
    %1557 = vmatprep.subr.mxu0 0.0
    %1558 = vmatpush2.msra.mxu0 0.0
    %1559 = vmatprep.subr.mxu0 0.0
    %1560 = vmatpush2.msra.mxu0 0.0
    %1561 = vmatprep.mubr.f32.mxu0 0.0
    %1562 = vmatmul.mubr.f32.gmra.mxu0 %v1495
    %v1563 = vpop.f32.mrf.mxu0
    %v1564 = vadd.f32 %v1492, %v1563
    %v1565 = vpop.f32.mrf.mxu0
    %1566 = vdwg.mxu0
    %v1567 = vadd.f32 %v1060, %v1564
    %v1568 = vsel %vm73, %v1567, 0.0
    %1569 = vadd.xlane.f32.xlu0 %v1568
    %v1570 = vpop.xlane.xlu0 %1569
    %v1571 = vmul.f32 %v1570, %v659
    %v1572 = vsub.f32 %v1567, %v1571
    %v1573 = vmul.f32 %v1572, %v1572
    %v1574 = vsel %vm73, %v1573, 0.0
    %1575 = vadd.xlane.f32.xlu0 %v1574
    %v1576 = vpop.xlane.xlu0 %1575
    %v1577 = vmul.f32 %v1576, %v659
    %v1578 = vadd.f32 %v1577, 1e-05
    %v1579 = vrsqrt.pop %v1578
    %v1580 = vmul.f32 %v1572, %v1579
    %v1581 = vld [vmem:[%s8] sm:$0x1]
    %v1583 = vlaneseq
    %v1584 = vshrl.u32 %v1583, 7
    %v1585 = vsub.s32 0, %v1584
    %v1586 = vrot.slane %v1581, %v1585
    %v1588 = vmul.f32 %v1580, %v1586
    %v1589 = vld [vmem:[%s9] sm:$0x1]
    %v1591 = vlaneseq
    %v1592 = vshrl.u32 %v1591, 7
    %v1593 = vsub.s32 0, %v1592
    %v1594 = vrot.slane %v1589, %v1593
    %v1596 = vadd.f32 %v1588, %v1594
    %v1597 = vld [vmem:[%s10] sm:$0xff]
    %v1598 = vld [vmem:[%s10 + $0x8] sm:$0xff]
    %v1599 = vld [vmem:[%s10 + $0x10] sm:$0xff]
    %v1600 = vld [vmem:[%s10 + $0x18] sm:$0xff]
    %v1601 = vld [vmem:[%s11] sm:$0x1]
    %v1603 = vlaneseq
    %v1604 = vshrl.u32 %v1603, 7
    %v1605 = vsub.s32 0, %v1604
    %v1606 = vrot.slane %v1601, %v1605
    %v1609 = vsel %vm73, %v1596, 0
    %1611 = vmatprep.subr.mxu0 0.0
    %1612 = vmatpush1.msra.mxu0 0.0
    %1613 = vmatprep.subr.mxu0 0.0
    %1614 = vmatpush1.msra.mxu0 0.0
    %1615 = vmatprep.subr.mxu0 0.0
    %1616 = vmatpush1.msra.mxu0 0.0
    %1617 = vmatprep.subr.mxu0 0.0
    %1618 = vmatpush1.msra.mxu0 0.0
    %1619 = vmatprep.subr.mxu0 0.0
    %1620 = vmatpush1.msra.mxu0 0.0
    %1621 = vmatprep.subr.mxu0 0.0
    %1622 = vmatpush1.msra.mxu0 0.0
    %1623 = vmatprep.subr.mxu0 0.0
    %1624 = vmatpush1.msra.mxu0 0.0
    %1625 = vmatprep.subr.mxu0 0.0
    %1626 = vmatpush1.msra.mxu0 0.0
    %1627 = vmatprep.subr.mxu0 0.0
    %1628 = vmatpush1.msra.mxu0 0.0
    %1629 = vmatprep.subr.mxu0 0.0
    %1630 = vmatpush1.msra.mxu0 0.0
    %1631 = vmatprep.subr.mxu0 0.0
    %1632 = vmatpush1.msra.mxu0 0.0
    %1633 = vmatprep.subr.mxu0 0.0
    %1634 = vmatpush1.msra.mxu0 0.0
    %1635 = vmatprep.subr.mxu0 0.0
    %1636 = vmatpush1.msra.mxu0 %v1600
    %1637 = vmatprep.subr.mxu0 0.0
    %1638 = vmatpush1.msra.mxu0 %v1599
    %1639 = vmatprep.subr.mxu0 0.0
    %1640 = vmatpush1.msra.mxu0 %v1598
    %1641 = vmatprep.subr.mxu0 0.0
    %1642 = vmatpush1.msra.mxu0 %v1597
    %1643 = vmatprep.subr.mxu0 0.0
    %1644 = vmatpush2.msra.mxu0 0.0
    %1645 = vmatprep.subr.mxu0 0.0
    %1646 = vmatpush2.msra.mxu0 0.0
    %1647 = vmatprep.subr.mxu0 0.0
    %1648 = vmatpush2.msra.mxu0 0.0
    %1649 = vmatprep.subr.mxu0 0.0
    %1650 = vmatpush2.msra.mxu0 0.0
    %1651 = vmatprep.subr.mxu0 0.0
    %1652 = vmatpush2.msra.mxu0 0.0
    %1653 = vmatprep.subr.mxu0 0.0
    %1654 = vmatpush2.msra.mxu0 0.0
    %1655 = vmatprep.subr.mxu0 0.0
    %1656 = vmatpush2.msra.mxu0 0.0
    %1657 = vmatprep.subr.mxu0 0.0
    %1658 = vmatpush2.msra.mxu0 0.0
    %1659 = vmatprep.subr.mxu0 0.0
    %1660 = vmatpush2.msra.mxu0 0.0
    %1661 = vmatprep.subr.mxu0 0.0
    %1662 = vmatpush2.msra.mxu0 0.0
    %1663 = vmatprep.subr.mxu0 0.0
    %1664 = vmatpush2.msra.mxu0 0.0
    %1665 = vmatprep.subr.mxu0 0.0
    %1666 = vmatpush2.msra.mxu0 0.0
    %1667 = vmatprep.subr.mxu0 0.0
    %1668 = vmatpush2.msra.mxu0 0.0
    %1669 = vmatprep.subr.mxu0 0.0
    %1670 = vmatpush2.msra.mxu0 0.0
    %1671 = vmatprep.subr.mxu0 0.0
    %1672 = vmatpush2.msra.mxu0 0.0
    %1673 = vmatprep.subr.mxu0 0.0
    %1674 = vmatpush2.msra.mxu0 0.0
    %1675 = vmatprep.mubr.f32.mxu0 0.0
    %1676 = vmatmul.mubr.f32.gmra.mxu0 %v1609
    %v1677 = vpop.f32.mrf.mxu0
    %v1678 = vadd.f32 %v1606, %v1677
    %v1679 = vpop.f32.mrf.mxu0
    %1680 = vdwg.mxu0
    %v1681 = vmax.f32 %v1678, 0.0
    %v1682 = vld [vmem:[%s12] sm:$0xff]
    %v1683 = vld [vmem:[%s12 + $0x8] sm:$0xff]
    %v1684 = vld [vmem:[%s12 + $0x10] sm:$0xff]
    %v1685 = vld [vmem:[%s12 + $0x18] sm:$0xff]
    %v1686 = vld [vmem:[%s12 + $0x20] sm:$0xff]
    %v1687 = vld [vmem:[%s12 + $0x28] sm:$0xff]
    %v1688 = vld [vmem:[%s12 + $0x30] sm:$0xff]
    %v1689 = vld [vmem:[%s12 + $0x38] sm:$0xff]
    %v1690 = vld [vmem:[%s12 + $0x40] sm:$0xff]
    %v1691 = vld [vmem:[%s12 + $0x48] sm:$0xff]
    %v1692 = vld [vmem:[%s12 + $0x50] sm:$0xff]
    %v1693 = vld [vmem:[%s12 + $0x58] sm:$0xff]
    %v1694 = vld [vmem:[%s12 + $0x60] sm:$0xff]
    %v1695 = vld [vmem:[%s12 + $0x68] sm:$0xff]
    %v1696 = vld [vmem:[%s12 + $0x70] sm:$0xff]
    %v1697 = vld [vmem:[%s12 + $0x78] sm:$0xff]
    %v1698 = vld [vmem:[%s13] sm:$0x1]
    %v1700 = vlaneseq
    %v1701 = vshrl.u32 %v1700, 7
    %v1702 = vsub.s32 0, %v1701
    %v1703 = vrot.slane %v1698, %v1702
    %1705 = vmatprep.subr.mxu0 0.0
    %1706 = vmatpush1.msra.mxu0 %v1697
    %1707 = vmatprep.subr.mxu0 0.0
    %1708 = vmatpush1.msra.mxu0 %v1696
    %1709 = vmatprep.subr.mxu0 0.0
    %1710 = vmatpush1.msra.mxu0 %v1695
    %1711 = vmatprep.subr.mxu0 0.0
    %1712 = vmatpush1.msra.mxu0 %v1694
    %1713 = vmatprep.subr.mxu0 0.0
    %1714 = vmatpush1.msra.mxu0 %v1693
    %1715 = vmatprep.subr.mxu0 0.0
    %1716 = vmatpush1.msra.mxu0 %v1692
    %1717 = vmatprep.subr.mxu0 0.0
    %1718 = vmatpush1.msra.mxu0 %v1691
    %1719 = vmatprep.subr.mxu0 0.0
    %1720 = vmatpush1.msra.mxu0 %v1690
    %1721 = vmatprep.subr.mxu0 0.0
    %1722 = vmatpush1.msra.mxu0 %v1689
    %1723 = vmatprep.subr.mxu0 0.0
    %1724 = vmatpush1.msra.mxu0 %v1688
    %1725 = vmatprep.subr.mxu0 0.0
    %1726 = vmatpush1.msra.mxu0 %v1687
    %1727 = vmatprep.subr.mxu0 0.0
    %1728 = vmatpush1.msra.mxu0 %v1686
    %1729 = vmatprep.subr.mxu0 0.0
    %1730 = vmatpush1.msra.mxu0 %v1685
    %1731 = vmatprep.subr.mxu0 0.0
    %1732 = vmatpush1.msra.mxu0 %v1684
    %1733 = vmatprep.subr.mxu0 0.0
    %1734 = vmatpush1.msra.mxu0 %v1683
    %1735 = vmatprep.subr.mxu0 0.0
    %1736 = vmatpush1.msra.mxu0 %v1682
    %1737 = vmatprep.subr.mxu0 0.0
    %1738 = vmatpush2.msra.mxu0 0.0
    %1739 = vmatprep.subr.mxu0 0.0
    %1740 = vmatpush2.msra.mxu0 0.0
    %1741 = vmatprep.subr.mxu0 0.0
    %1742 = vmatpush2.msra.mxu0 0.0
    %1743 = vmatprep.subr.mxu0 0.0
    %1744 = vmatpush2.msra.mxu0 0.0
    %1745 = vmatprep.subr.mxu0 0.0
    %1746 = vmatpush2.msra.mxu0 0.0
    %1747 = vmatprep.subr.mxu0 0.0
    %1748 = vmatpush2.msra.mxu0 0.0
    %1749 = vmatprep.subr.mxu0 0.0
    %1750 = vmatpush2.msra.mxu0 0.0
    %1751 = vmatprep.subr.mxu0 0.0
    %1752 = vmatpush2.msra.mxu0 0.0
    %1753 = vmatprep.subr.mxu0 0.0
    %1754 = vmatpush2.msra.mxu0 0.0
    %1755 = vmatprep.subr.mxu0 0.0
    %1756 = vmatpush2.msra.mxu0 0.0
    %1757 = vmatprep.subr.mxu0 0.0
    %1758 = vmatpush2.msra.mxu0 0.0
    %1759 = vmatprep.subr.mxu0 0.0
    %1760 = vmatpush2.msra.mxu0 0.0
    %1761 = vmatprep.subr.mxu0 0.0
    %1762 = vmatpush2.msra.mxu0 0.0
    %1763 = vmatprep.subr.mxu0 0.0
    %1764 = vmatpush2.msra.mxu0 0.0
    %1765 = vmatprep.subr.mxu0 0.0
    %1766 = vmatpush2.msra.mxu0 0.0
    %1767 = vmatprep.subr.mxu0 0.0
    %1768 = vmatpush2.msra.mxu0 0.0
    %1769 = vmatprep.mubr.f32.mxu0 0.0
    %1770 = vmatmul.mubr.f32.gmra.mxu0 %v1681
    %v1771 = vpop.f32.mrf.mxu0
    %v1772 = vadd.f32 %v1703, %v1771
    %v1773 = vpop.f32.mrf.mxu0
    %1774 = vdwg.mxu0
    %v1775 = vadd.f32 %v1596, %v1772
    %v1776 = vsel %vm73, %v1775, 0.0
    %1777 = vadd.xlane.f32.xlu0 %v1776
    %v1778 = vpop.xlane.xlu0 %1777
    %v1779 = vmul.f32 %v1778, %v659
    %v1780 = vsub.f32 %v1775, %v1779
    %v1781 = vmul.f32 %v1780, %v1780
    %v1782 = vsel %vm73, %v1781, 0.0
    %1783 = vadd.xlane.f32.xlu0 %v1782
    %v1784 = vpop.xlane.xlu0 %1783
    %v1785 = vmul.f32 %v1784, %v659
    %v1786 = vadd.f32 %v1785, 1e-05
    %v1787 = vrsqrt.pop %v1786
    %v1788 = vmul.f32 %v1780, %v1787
    %v1789 = vld [vmem:[%s14] sm:$0x1]
    %v1791 = vlaneseq
    %v1792 = vshrl.u32 %v1791, 7
    %v1793 = vsub.s32 0, %v1792
    %v1794 = vrot.slane %v1789, %v1793
    %v1796 = vmul.f32 %v1788, %v1794
    %v1797 = vld [vmem:[%s15] sm:$0x1]
    %v1799 = vlaneseq
    %v1800 = vshrl.u32 %v1799, 7
    %v1801 = vsub.s32 0, %v1800
    %v1802 = vrot.slane %v1797, %v1801
    %v1804 = vadd.f32 %v1796, %v1802
    %s1805 = sld [smem:[#allocation3 + $0x1]]
    %v1806 = vstv %s1805
    %vm1807 = vcmp.eq.s32.totalorder %v60, %v1806
    %v1808 = vsel %vm1807, 1, 0
    %v1809 = vcvt.s32.f32 %v1808
    %v1811 = vsel %vm313, %v1809, 0
    %1813 = vmatprep.subr.mxu0 0.0
    %1814 = vmatpush1.msra.mxu0 0.0
    %1815 = vmatprep.subr.mxu0 0.0
    %1816 = vmatpush1.msra.mxu0 0.0
    %1817 = vmatprep.subr.mxu0 0.0
    %1818 = vmatpush1.msra.mxu0 0.0
    %1819 = vmatprep.subr.mxu0 0.0
    %1820 = vmatpush1.msra.mxu0 0.0
    %1821 = vmatprep.subr.mxu0 0.0
    %1822 = vmatpush1.msra.mxu0 0.0
    %1823 = vmatprep.subr.mxu0 0.0
    %1824 = vmatpush1.msra.mxu0 0.0
    %1825 = vmatprep.subr.mxu0 0.0
    %1826 = vmatpush1.msra.mxu0 0.0
    %1827 = vmatprep.subr.mxu0 0.0
    %1828 = vmatpush1.msra.mxu0 0.0
    %1829 = vmatprep.subr.mxu0 0.0
    %1830 = vmatpush1.msra.mxu0 0.0
    %1831 = vmatprep.subr.mxu0 0.0
    %1832 = vmatpush1.msra.mxu0 0.0
    %1833 = vmatprep.subr.mxu0 0.0
    %1834 = vmatpush1.msra.mxu0 0.0
    %1835 = vmatprep.subr.mxu0 0.0
    %1836 = vmatpush1.msra.mxu0 0.0
    %1837 = vmatprep.subr.mxu0 0.0
    %1838 = vmatpush1.msra.mxu0 0.0
    %1839 = vmatprep.subr.mxu0 0.0
    %1840 = vmatpush1.msra.mxu0 0.0
    %1841 = vmatprep.subr.mxu0 0.0
    %1842 = vmatpush1.msra.mxu0 0.0
    %1843 = vmatprep.subr.mxu0 0.0
    %1844 = vmatpush1.msra.mxu0 %v1804
    %1845 = vmatprep.subr.mxu0 0.0
    %1846 = vmatpush2.msra.mxu0 0.0
    %1847 = vmatprep.subr.mxu0 0.0
    %1848 = vmatpush2.msra.mxu0 0.0
    %1849 = vmatprep.subr.mxu0 0.0
    %1850 = vmatpush2.msra.mxu0 0.0
    %1851 = vmatprep.subr.mxu0 0.0
    %1852 = vmatpush2.msra.mxu0 0.0
    %1853 = vmatprep.subr.mxu0 0.0
    %1854 = vmatpush2.msra.mxu0 0.0
    %1855 = vmatprep.subr.mxu0 0.0
    %1856 = vmatpush2.msra.mxu0 0.0
    %1857 = vmatprep.subr.mxu0 0.0
    %1858 = vmatpush2.msra.mxu0 0.0
    %1859 = vmatprep.subr.mxu0 0.0
    %1860 = vmatpush2.msra.mxu0 0.0
    %1861 = vmatprep.subr.mxu0 0.0
    %1862 = vmatpush2.msra.mxu0 0.0
    %1863 = vmatprep.subr.mxu0 0.0
    %1864 = vmatpush2.msra.mxu0 0.0
    %1865 = vmatprep.subr.mxu0 0.0
    %1866 = vmatpush2.msra.mxu0 0.0
    %1867 = vmatprep.subr.mxu0 0.0
    %1868 = vmatpush2.msra.mxu0 0.0
    %1869 = vmatprep.subr.mxu0 0.0
    %1870 = vmatpush2.msra.mxu0 0.0
    %1871 = vmatprep.subr.mxu0 0.0
    %1872 = vmatpush2.msra.mxu0 0.0
    %1873 = vmatprep.subr.mxu0 0.0
    %1874 = vmatpush2.msra.mxu0 0.0
    %1875 = vmatprep.subr.mxu0 0.0
    %1876 = vmatpush2.msra.mxu0 0.0
    %1877 = vmatprep.mubr.f32.mxu0 0.0
    %1878 = vmatmul.mubr.f32.gmra.mxu0 %v1811
    %v1879 = vpop.f32.mrf.mxu0
    %v1880 = vadd.f32 0.0, %v1879
    %v1881 = vpop.f32.mrf.mxu0
    %1882 = vdwg.mxu0
    %1883 = vst.msk [vmem:[#allocation6 + $0x1] sm:$0x1] %vm972, %v1880
    %s1884 = scalar_lea.vmem %s1, 16
    %v1885 = vld [vmem:[%s1884] sm:$0xff]
    %v1886 = vld [vmem:[%s2] sm:$0xff]
    %v1887 = vld [vmem:[%s2 + $0x8] sm:$0xff]
    %v1888 = vld [vmem:[%s2 + $0x10] sm:$0xff]
    %v1889 = vld [vmem:[%s2 + $0x18] sm:$0xff]
    %v1890 = vld [vmem:[%s3] sm:$0x1]
    %v1892 = vlaneseq
    %v1893 = vshrl.u32 %v1892, 7
    %v1894 = vsub.s32 0, %v1893
    %v1895 = vrot.slane %v1890, %v1894
    %v1898 = vsel %vm73, %v1885, 0
    %1900 = vmatprep.subr.mxu0 0.0
    %1901 = vmatpush1.msra.mxu0 0.0
    %1902 = vmatprep.subr.mxu0 0.0
    %1903 = vmatpush1.msra.mxu0 0.0
    %1904 = vmatprep.subr.mxu0 0.0
    %1905 = vmatpush1.msra.mxu0 0.0
    %1906 = vmatprep.subr.mxu0 0.0
    %1907 = vmatpush1.msra.mxu0 0.0
    %1908 = vmatprep.subr.mxu0 0.0
    %1909 = vmatpush1.msra.mxu0 0.0
    %1910 = vmatprep.subr.mxu0 0.0
    %1911 = vmatpush1.msra.mxu0 0.0
    %1912 = vmatprep.subr.mxu0 0.0
    %1913 = vmatpush1.msra.mxu0 0.0
    %1914 = vmatprep.subr.mxu0 0.0
    %1915 = vmatpush1.msra.mxu0 0.0
    %1916 = vmatprep.subr.mxu0 0.0
    %1917 = vmatpush1.msra.mxu0 0.0
    %1918 = vmatprep.subr.mxu0 0.0
    %1919 = vmatpush1.msra.mxu0 0.0
    %1920 = vmatprep.subr.mxu0 0.0
    %1921 = vmatpush1.msra.mxu0 0.0
    %1922 = vmatprep.subr.mxu0 0.0
    %1923 = vmatpush1.msra.mxu0 0.0
    %1924 = vmatprep.subr.mxu0 0.0
    %1925 = vmatpush1.msra.mxu0 %v1889
    %1926 = vmatprep.subr.mxu0 0.0
    %1927 = vmatpush1.msra.mxu0 %v1888
    %1928 = vmatprep.subr.mxu0 0.0
    %1929 = vmatpush1.msra.mxu0 %v1887
    %1930 = vmatprep.subr.mxu0 0.0
    %1931 = vmatpush1.msra.mxu0 %v1886
    %1932 = vmatprep.subr.mxu0 0.0
    %1933 = vmatpush2.msra.mxu0 0.0
    %1934 = vmatprep.subr.mxu0 0.0
    %1935 = vmatpush2.msra.mxu0 0.0
    %1936 = vmatprep.subr.mxu0 0.0
    %1937 = vmatpush2.msra.mxu0 0.0
    %1938 = vmatprep.subr.mxu0 0.0
    %1939 = vmatpush2.msra.mxu0 0.0
    %1940 = vmatprep.subr.mxu0 0.0
    %1941 = vmatpush2.msra.mxu0 0.0
    %1942 = vmatprep.subr.mxu0 0.0
    %1943 = vmatpush2.msra.mxu0 0.0
    %1944 = vmatprep.subr.mxu0 0.0
    %1945 = vmatpush2.msra.mxu0 0.0
    %1946 = vmatprep.subr.mxu0 0.0
    %1947 = vmatpush2.msra.mxu0 0.0
    %1948 = vmatprep.subr.mxu0 0.0
    %1949 = vmatpush2.msra.mxu0 0.0
    %1950 = vmatprep.subr.mxu0 0.0
    %1951 = vmatpush2.msra.mxu0 0.0
    %1952 = vmatprep.subr.mxu0 0.0
    %1953 = vmatpush2.msra.mxu0 0.0
    %1954 = vmatprep.subr.mxu0 0.0
    %1955 = vmatpush2.msra.mxu0 0.0
    %1956 = vmatprep.subr.mxu0 0.0
    %1957 = vmatpush2.msra.mxu0 0.0
    %1958 = vmatprep.subr.mxu0 0.0
    %1959 = vmatpush2.msra.mxu0 0.0
    %1960 = vmatprep.subr.mxu0 0.0
    %1961 = vmatpush2.msra.mxu0 0.0
    %1962 = vmatprep.subr.mxu0 0.0
    %1963 = vmatpush2.msra.mxu0 0.0
    %1964 = vmatprep.mubr.f32.mxu0 0.0
    %1965 = vmatmul.mubr.f32.gmra.mxu0 %v1898
    %v1966 = vpop.f32.mrf.mxu0
    %v1967 = vadd.f32 %v1895, %v1966
    %v1968 = vpop.f32.mrf.mxu0
    %1969 = vdwg.mxu0
    %v1970 = vtanh.pop %v1967
    %s1971 = scalar_lea.vmem [#allocation4], 16
    %1972 = vst.msk [vmem:[%s1971] sm:$0xff] %vm73, %v1970
    %v1973 = vld [vmem:[%s4] sm:$0xff]
    %v1974 = vld [vmem:[%s4 + $0x8] sm:$0xff]
    %v1975 = vld [vmem:[%s4 + $0x10] sm:$0xff]
    %v1976 = vld [vmem:[%s4 + $0x18] sm:$0xff]
    %v1977 = vld [vmem:[%s5] sm:$0x1]
    %v1979 = vlaneseq
    %v1980 = vshrl.u32 %v1979, 7
    %v1981 = vsub.s32 0, %v1980
    %v1982 = vrot.slane %v1977, %v1981
    %v1985 = vsel %vm73, %v1970, 0
    %1987 = vmatprep.subr.mxu0 0.0
    %1988 = vmatpush1.msra.mxu0 0.0
    %1989 = vmatprep.subr.mxu0 0.0
    %1990 = vmatpush1.msra.mxu0 0.0
    %1991 = vmatprep.subr.mxu0 0.0
    %1992 = vmatpush1.msra.mxu0 0.0
    %1993 = vmatprep.subr.mxu0 0.0
    %1994 = vmatpush1.msra.mxu0 0.0
    %1995 = vmatprep.subr.mxu0 0.0
    %1996 = vmatpush1.msra.mxu0 0.0
    %1997 = vmatprep.subr.mxu0 0.0
    %1998 = vmatpush1.msra.mxu0 0.0
    %1999 = vmatprep.subr.mxu0 0.0
    %2000 = vmatpush1.msra.mxu0 0.0
    %2001 = vmatprep.subr.mxu0 0.0
    %2002 = vmatpush1.msra.mxu0 0.0
    %2003 = vmatprep.subr.mxu0 0.0
    %2004 = vmatpush1.msra.mxu0 0.0
    %2005 = vmatprep.subr.mxu0 0.0
    %2006 = vmatpush1.msra.mxu0 0.0
    %2007 = vmatprep.subr.mxu0 0.0
    %2008 = vmatpush1.msra.mxu0 0.0
    %2009 = vmatprep.subr.mxu0 0.0
    %2010 = vmatpush1.msra.mxu0 0.0
    %2011 = vmatprep.subr.mxu0 0.0
    %2012 = vmatpush1.msra.mxu0 %v1976
    %2013 = vmatprep.subr.mxu0 0.0
    %2014 = vmatpush1.msra.mxu0 %v1975
    %2015 = vmatprep.subr.mxu0 0.0
    %2016 = vmatpush1.msra.mxu0 %v1974
    %2017 = vmatprep.subr.mxu0 0.0
    %2018 = vmatpush1.msra.mxu0 %v1973
    %2019 = vmatprep.subr.mxu0 0.0
    %2020 = vmatpush2.msra.mxu0 0.0
    %2021 = vmatprep.subr.mxu0 0.0
    %2022 = vmatpush2.msra.mxu0 0.0
    %2023 = vmatprep.subr.mxu0 0.0
    %2024 = vmatpush2.msra.mxu0 0.0
    %2025 = vmatprep.subr.mxu0 0.0
    %2026 = vmatpush2.msra.mxu0 0.0
    %2027 = vmatprep.subr.mxu0 0.0
    %2028 = vmatpush2.msra.mxu0 0.0
    %2029 = vmatprep.subr.mxu0 0.0
    %2030 = vmatpush2.msra.mxu0 0.0
    %2031 = vmatprep.subr.mxu0 0.0
    %2032 = vmatpush2.msra.mxu0 0.0
    %2033 = vmatprep.subr.mxu0 0.0
    %2034 = vmatpush2.msra.mxu0 0.0
    %2035 = vmatprep.subr.mxu0 0.0
    %2036 = vmatpush2.msra.mxu0 0.0
    %2037 = vmatprep.subr.mxu0 0.0
    %2038 = vmatpush2.msra.mxu0 0.0
    %2039 = vmatprep.subr.mxu0 0.0
    %2040 = vmatpush2.msra.mxu0 0.0
    %2041 = vmatprep.subr.mxu0 0.0
    %2042 = vmatpush2.msra.mxu0 0.0
    %2043 = vmatprep.subr.mxu0 0.0
    %2044 = vmatpush2.msra.mxu0 0.0
    %2045 = vmatprep.subr.mxu0 0.0
    %2046 = vmatpush2.msra.mxu0 0.0
    %2047 = vmatprep.subr.mxu0 0.0
    %2048 = vmatpush2.msra.mxu0 0.0
    %2049 = vmatprep.subr.mxu0 0.0
    %2050 = vmatpush2.msra.mxu0 0.0
    %2051 = vmatprep.mubr.f32.mxu0 0.0
    %2052 = vmatmul.mubr.f32.gmra.mxu0 %v1985
    %v2053 = vpop.f32.mrf.mxu0
    %v2054 = vadd.f32 %v1982, %v2053
    %v2055 = vpop.f32.mrf.mxu0
    %2056 = vdwg.mxu0
    %v2057 = vmul.f32 %v2054, 0.25
    %2059 = vrot.lane.b32.xlu0 %v2054, 96
    %v2060 = vpop.permute.xlu0 %2059
    %v2062 = vsel %vm237, %v2057, 0
    %v2064 = vsel %vm237, %v2060, 0
    %2066 = vmatprep.subr.mxu0 0.0
    %2067 = vmatpush1.xpose.msra.mxu0 0.0
    %2068 = vmatprep.subr.mxu0 0.0
    %2069 = vmatpush1.xpose.msra.mxu0 0.0
    %2070 = vmatprep.subr.mxu0 0.0
    %2071 = vmatpush1.xpose.msra.mxu0 0.0
    %2072 = vmatprep.subr.mxu0 0.0
    %2073 = vmatpush1.xpose.msra.mxu0 0.0
    %2074 = vmatprep.subr.mxu0 0.0
    %2075 = vmatpush1.xpose.msra.mxu0 0.0
    %2076 = vmatprep.subr.mxu0 0.0
    %2077 = vmatpush1.xpose.msra.mxu0 0.0
    %2078 = vmatprep.subr.mxu0 0.0
    %2079 = vmatpush1.xpose.msra.mxu0 0.0
    %2080 = vmatprep.subr.mxu0 0.0
    %2081 = vmatpush1.xpose.msra.mxu0 0.0
    %2082 = vmatprep.subr.mxu0 0.0
    %2083 = vmatpush1.xpose.msra.mxu0 0.0
    %2084 = vmatprep.subr.mxu0 0.0
    %2085 = vmatpush1.xpose.msra.mxu0 0.0
    %2086 = vmatprep.subr.mxu0 0.0
    %2087 = vmatpush1.xpose.msra.mxu0 0.0
    %2088 = vmatprep.subr.mxu0 0.0
    %2089 = vmatpush1.xpose.msra.mxu0 0.0
    %2090 = vmatprep.subr.mxu0 0.0
    %2091 = vmatpush1.xpose.msra.mxu0 0.0
    %2092 = vmatprep.subr.mxu0 0.0
    %2093 = vmatpush1.xpose.msra.mxu0 0.0
    %2094 = vmatprep.subr.mxu0 0.0
    %2095 = vmatpush1.xpose.msra.mxu0 0.0
    %2096 = vmatprep.subr.mxu0 0.0
    %2097 = vmatpush1.xpose.msra.mxu0 %v2064
    %2098 = vmatprep.subr.mxu0 0.0
    %2099 = vmatpush2.xpose.msra.mxu0 0.0
    %2100 = vmatprep.subr.mxu0 0.0
    %2101 = vmatpush2.xpose.msra.mxu0 0.0
    %2102 = vmatprep.subr.mxu0 0.0
    %2103 = vmatpush2.xpose.msra.mxu0 0.0
    %2104 = vmatprep.subr.mxu0 0.0
    %2105 = vmatpush2.xpose.msra.mxu0 0.0
    %2106 = vmatprep.subr.mxu0 0.0
    %2107 = vmatpush2.xpose.msra.mxu0 0.0
    %2108 = vmatprep.subr.mxu0 0.0
    %2109 = vmatpush2.xpose.msra.mxu0 0.0
    %2110 = vmatprep.subr.mxu0 0.0
    %2111 = vmatpush2.xpose.msra.mxu0 0.0
    %2112 = vmatprep.subr.mxu0 0.0
    %2113 = vmatpush2.xpose.msra.mxu0 0.0
    %2114 = vmatprep.subr.mxu0 0.0
    %2115 = vmatpush2.xpose.msra.mxu0 0.0
    %2116 = vmatprep.subr.mxu0 0.0
    %2117 = vmatpush2.xpose.msra.mxu0 0.0
    %2118 = vmatprep.subr.mxu0 0.0
    %2119 = vmatpush2.xpose.msra.mxu0 0.0
    %2120 = vmatprep.subr.mxu0 0.0
    %2121 = vmatpush2.xpose.msra.mxu0 0.0
    %2122 = vmatprep.subr.mxu0 0.0
    %2123 = vmatpush2.xpose.msra.mxu0 0.0
    %2124 = vmatprep.subr.mxu0 0.0
    %2125 = vmatpush2.xpose.msra.mxu0 0.0
    %2126 = vmatprep.subr.mxu0 0.0
    %2127 = vmatpush2.xpose.msra.mxu0 0.0
    %2128 = vmatprep.subr.mxu0 0.0
    %2129 = vmatpush2.xpose.msra.mxu0 0.0
    %2130 = vmatprep.mubr.f32.mxu0 0.0
    %2131 = vmatmul.mubr.f32.gmra.mxu0 %v2062
    %v2132 = vpop.f32.mrf.mxu0
    %v2133 = vadd.f32 0.0, %v2132
    %v2134 = vpop.f32.mrf.mxu0
    %2135 = vdwg.mxu0
    %v2136 = vsel %vm313, %v2133, -inf
    %2137 = vmax.xlane.f32.xlu0 %v2136
    %v2138 = vpop.xlane.xlu0 %2137
    %v2139 = vsub.f32 %v2133, %v2138
    %v2140 = vmul.f32 %v2139, 1.442695
    %v2141 = vpow.pop %v2140
    %v2142 = vsel %vm313, %v2141, 0.0
    %2143 = vadd.xlane.f32.xlu0 %v2142
    %v2144 = vpop.xlane.xlu0 %2143
    %v2145 = vrcp.pop %v2144
    %v2146 = vmul.f32 %v2141, %v2145
    %2147 = vrot.lane.b32.xlu0 %v2054, 64
    %v2148 = vpop.permute.xlu0 %2147
    %v2151 = vsel %vm313, %v2146, 0
    %2153 = vmatprep.subr.mxu0 0.0
    %2154 = vmatpush1.msra.mxu0 0.0
    %2155 = vmatprep.subr.mxu0 0.0
    %2156 = vmatpush1.msra.mxu0 0.0
    %2157 = vmatprep.subr.mxu0 0.0
    %2158 = vmatpush1.msra.mxu0 0.0
    %2159 = vmatprep.subr.mxu0 0.0
    %2160 = vmatpush1.msra.mxu0 0.0
    %2161 = vmatprep.subr.mxu0 0.0
    %2162 = vmatpush1.msra.mxu0 0.0
    %2163 = vmatprep.subr.mxu0 0.0
    %2164 = vmatpush1.msra.mxu0 0.0
    %2165 = vmatprep.subr.mxu0 0.0
    %2166 = vmatpush1.msra.mxu0 0.0
    %2167 = vmatprep.subr.mxu0 0.0
    %2168 = vmatpush1.msra.mxu0 0.0
    %2169 = vmatprep.subr.mxu0 0.0
    %2170 = vmatpush1.msra.mxu0 0.0
    %2171 = vmatprep.subr.mxu0 0.0
    %2172 = vmatpush1.msra.mxu0 0.0
    %2173 = vmatprep.subr.mxu0 0.0
    %2174 = vmatpush1.msra.mxu0 0.0
    %2175 = vmatprep.subr.mxu0 0.0
    %2176 = vmatpush1.msra.mxu0 0.0
    %2177 = vmatprep.subr.mxu0 0.0
    %2178 = vmatpush1.msra.mxu0 0.0
    %2179 = vmatprep.subr.mxu0 0.0
    %2180 = vmatpush1.msra.mxu0 0.0
    %2181 = vmatprep.subr.mxu0 0.0
    %2182 = vmatpush1.msra.mxu0 0.0
    %2183 = vmatprep.subr.mxu0 0.0
    %2184 = vmatpush1.msra.mxu0 %v2148
    %2185 = vmatprep.subr.mxu0 0.0
    %2186 = vmatpush2.msra.mxu0 0.0
    %2187 = vmatprep.subr.mxu0 0.0
    %2188 = vmatpush2.msra.mxu0 0.0
    %2189 = vmatprep.subr.mxu0 0.0
    %2190 = vmatpush2.msra.mxu0 0.0
    %2191 = vmatprep.subr.mxu0 0.0
    %2192 = vmatpush2.msra.mxu0 0.0
    %2193 = vmatprep.subr.mxu0 0.0
    %2194 = vmatpush2.msra.mxu0 0.0
    %2195 = vmatprep.subr.mxu0 0.0
    %2196 = vmatpush2.msra.mxu0 0.0
    %2197 = vmatprep.subr.mxu0 0.0
    %2198 = vmatpush2.msra.mxu0 0.0
    %2199 = vmatprep.subr.mxu0 0.0
    %2200 = vmatpush2.msra.mxu0 0.0
    %2201 = vmatprep.subr.mxu0 0.0
    %2202 = vmatpush2.msra.mxu0 0.0
    %2203 = vmatprep.subr.mxu0 0.0
    %2204 = vmatpush2.msra.mxu0 0.0
    %2205 = vmatprep.subr.mxu0 0.0
    %2206 = vmatpush2.msra.mxu0 0.0
    %2207 = vmatprep.subr.mxu0 0.0
    %2208 = vmatpush2.msra.mxu0 0.0
    %2209 = vmatprep.subr.mxu0 0.0
    %2210 = vmatpush2.msra.mxu0 0.0
    %2211 = vmatprep.subr.mxu0 0.0
    %2212 = vmatpush2.msra.mxu0 0.0
    %2213 = vmatprep.subr.mxu0 0.0
    %2214 = vmatpush2.msra.mxu0 0.0
    %2215 = vmatprep.subr.mxu0 0.0
    %2216 = vmatpush2.msra.mxu0 0.0
    %2217 = vmatprep.mubr.f32.mxu0 0.0
    %2218 = vmatmul.mubr.f32.gmra.mxu0 %v2151
    %v2219 = vpop.f32.mrf.mxu0
    %v2220 = vadd.f32 0.0, %v2219
    %v2221 = vpop.f32.mrf.mxu0
    %2222 = vdwg.mxu0
    %2223 = vrot.lane.b32.xlu0 %v2057, 112
    %v2224 = vpop.permute.xlu0 %2223
    %2225 = vrot.lane.b32.xlu0 %v2054, 80
    %v2226 = vpop.permute.xlu0 %2225
    %v2227 = vsel %vm237, %v2224, 0
    %v2229 = vsel %vm237, %v2226, 0
    %2231 = vmatprep.subr.mxu0 0.0
    %2232 = vmatpush1.xpose.msra.mxu0 0.0
    %2233 = vmatprep.subr.mxu0 0.0
    %2234 = vmatpush1.xpose.msra.mxu0 0.0
    %2235 = vmatprep.subr.mxu0 0.0
    %2236 = vmatpush1.xpose.msra.mxu0 0.0
    %2237 = vmatprep.subr.mxu0 0.0
    %2238 = vmatpush1.xpose.msra.mxu0 0.0
    %2239 = vmatprep.subr.mxu0 0.0
    %2240 = vmatpush1.xpose.msra.mxu0 0.0
    %2241 = vmatprep.subr.mxu0 0.0
    %2242 = vmatpush1.xpose.msra.mxu0 0.0
    %2243 = vmatprep.subr.mxu0 0.0
    %2244 = vmatpush1.xpose.msra.mxu0 0.0
    %2245 = vmatprep.subr.mxu0 0.0
    %2246 = vmatpush1.xpose.msra.mxu0 0.0
    %2247 = vmatprep.subr.mxu0 0.0
    %2248 = vmatpush1.xpose.msra.mxu0 0.0
    %2249 = vmatprep.subr.mxu0 0.0
    %2250 = vmatpush1.xpose.msra.mxu0 0.0
    %2251 = vmatprep.subr.mxu0 0.0
    %2252 = vmatpush1.xpose.msra.mxu0 0.0
    %2253 = vmatprep.subr.mxu0 0.0
    %2254 = vmatpush1.xpose.msra.mxu0 0.0
    %2255 = vmatprep.subr.mxu0 0.0
    %2256 = vmatpush1.xpose.msra.mxu0 0.0
    %2257 = vmatprep.subr.mxu0 0.0
    %2258 = vmatpush1.xpose.msra.mxu0 0.0
    %2259 = vmatprep.subr.mxu0 0.0
    %2260 = vmatpush1.xpose.msra.mxu0 0.0
    %2261 = vmatprep.subr.mxu0 0.0
    %2262 = vmatpush1.xpose.msra.mxu0 %v2229
    %2263 = vmatprep.subr.mxu0 0.0
    %2264 = vmatpush2.xpose.msra.mxu0 0.0
    %2265 = vmatprep.subr.mxu0 0.0
    %2266 = vmatpush2.xpose.msra.mxu0 0.0
    %2267 = vmatprep.subr.mxu0 0.0
    %2268 = vmatpush2.xpose.msra.mxu0 0.0
    %2269 = vmatprep.subr.mxu0 0.0
    %2270 = vmatpush2.xpose.msra.mxu0 0.0
    %2271 = vmatprep.subr.mxu0 0.0
    %2272 = vmatpush2.xpose.msra.mxu0 0.0
    %2273 = vmatprep.subr.mxu0 0.0
    %2274 = vmatpush2.xpose.msra.mxu0 0.0
    %2275 = vmatprep.subr.mxu0 0.0
    %2276 = vmatpush2.xpose.msra.mxu0 0.0
    %2277 = vmatprep.subr.mxu0 0.0
    %2278 = vmatpush2.xpose.msra.mxu0 0.0
    %2279 = vmatprep.subr.mxu0 0.0
    %2280 = vmatpush2.xpose.msra.mxu0 0.0
    %2281 = vmatprep.subr.mxu0 0.0
    %2282 = vmatpush2.xpose.msra.mxu0 0.0
    %2283 = vmatprep.subr.mxu0 0.0
    %2284 = vmatpush2.xpose.msra.mxu0 0.0
    %2285 = vmatprep.subr.mxu0 0.0
    %2286 = vmatpush2.xpose.msra.mxu0 0.0
    %2287 = vmatprep.subr.mxu0 0.0
    %2288 = vmatpush2.xpose.msra.mxu0 0.0
    %2289 = vmatprep.subr.mxu0 0.0
    %2290 = vmatpush2.xpose.msra.mxu0 0.0
    %2291 = vmatprep.subr.mxu0 0.0
    %2292 = vmatpush2.xpose.msra.mxu0 0.0
    %2293 = vmatprep.subr.mxu0 0.0
    %2294 = vmatpush2.xpose.msra.mxu0 0.0
    %2295 = vmatprep.mubr.f32.mxu0 0.0
    %2296 = vmatmul.mubr.f32.gmra.mxu0 %v2227
    %v2297 = vpop.f32.mrf.mxu0
    %v2298 = vadd.f32 0.0, %v2297
    %v2299 = vpop.f32.mrf.mxu0
    %2300 = vdwg.mxu0
    %v2301 = vsel %vm313, %v2298, -inf
    %2302 = vmax.xlane.f32.xlu0 %v2301
    %v2303 = vpop.xlane.xlu0 %2302
    %v2304 = vsub.f32 %v2298, %v2303
    %v2305 = vmul.f32 %v2304, 1.442695
    %v2306 = vpow.pop %v2305
    %v2307 = vsel %vm313, %v2306, 0.0
    %2308 = vadd.xlane.f32.xlu0 %v2307
    %v2309 = vpop.xlane.xlu0 %2308
    %v2310 = vrcp.pop %v2309
    %v2311 = vmul.f32 %v2306, %v2310
    %2312 = vrot.lane.b32.xlu0 %v2054, 48
    %v2313 = vpop.permute.xlu0 %2312
    %v2316 = vsel %vm313, %v2311, 0
    %2318 = vmatprep.subr.mxu0 0.0
    %2319 = vmatpush1.msra.mxu0 0.0
    %2320 = vmatprep.subr.mxu0 0.0
    %2321 = vmatpush1.msra.mxu0 0.0
    %2322 = vmatprep.subr.mxu0 0.0
    %2323 = vmatpush1.msra.mxu0 0.0
    %2324 = vmatprep.subr.mxu0 0.0
    %2325 = vmatpush1.msra.mxu0 0.0
    %2326 = vmatprep.subr.mxu0 0.0
    %2327 = vmatpush1.msra.mxu0 0.0
    %2328 = vmatprep.subr.mxu0 0.0
    %2329 = vmatpush1.msra.mxu0 0.0
    %2330 = vmatprep.subr.mxu0 0.0
    %2331 = vmatpush1.msra.mxu0 0.0
    %2332 = vmatprep.subr.mxu0 0.0
    %2333 = vmatpush1.msra.mxu0 0.0
    %2334 = vmatprep.subr.mxu0 0.0
    %2335 = vmatpush1.msra.mxu0 0.0
    %2336 = vmatprep.subr.mxu0 0.0
    %2337 = vmatpush1.msra.mxu0 0.0
    %2338 = vmatprep.subr.mxu0 0.0
    %2339 = vmatpush1.msra.mxu0 0.0
    %2340 = vmatprep.subr.mxu0 0.0
    %2341 = vmatpush1.msra.mxu0 0.0
    %2342 = vmatprep.subr.mxu0 0.0
    %2343 = vmatpush1.msra.mxu0 0.0
    %2344 = vmatprep.subr.mxu0 0.0
    %2345 = vmatpush1.msra.mxu0 0.0
    %2346 = vmatprep.subr.mxu0 0.0
    %2347 = vmatpush1.msra.mxu0 0.0
    %2348 = vmatprep.subr.mxu0 0.0
    %2349 = vmatpush1.msra.mxu0 %v2313
    %2350 = vmatprep.subr.mxu0 0.0
    %2351 = vmatpush2.msra.mxu0 0.0
    %2352 = vmatprep.subr.mxu0 0.0
    %2353 = vmatpush2.msra.mxu0 0.0
    %2354 = vmatprep.subr.mxu0 0.0
    %2355 = vmatpush2.msra.mxu0 0.0
    %2356 = vmatprep.subr.mxu0 0.0
    %2357 = vmatpush2.msra.mxu0 0.0
    %2358 = vmatprep.subr.mxu0 0.0
    %2359 = vmatpush2.msra.mxu0 0.0
    %2360 = vmatprep.subr.mxu0 0.0
    %2361 = vmatpush2.msra.mxu0 0.0
    %2362 = vmatprep.subr.mxu0 0.0
    %2363 = vmatpush2.msra.mxu0 0.0
    %2364 = vmatprep.subr.mxu0 0.0
    %2365 = vmatpush2.msra.mxu0 0.0
    %2366 = vmatprep.subr.mxu0 0.0
    %2367 = vmatpush2.msra.mxu0 0.0
    %2368 = vmatprep.subr.mxu0 0.0
    %2369 = vmatpush2.msra.mxu0 0.0
    %2370 = vmatprep.subr.mxu0 0.0
    %2371 = vmatpush2.msra.mxu0 0.0
    %2372 = vmatprep.subr.mxu0 0.0
    %2373 = vmatpush2.msra.mxu0 0.0
    %2374 = vmatprep.subr.mxu0 0.0
    %2375 = vmatpush2.msra.mxu0 0.0
    %2376 = vmatprep.subr.mxu0 0.0
    %2377 = vmatpush2.msra.mxu0 0.0
    %2378 = vmatprep.subr.mxu0 0.0
    %2379 = vmatpush2.msra.mxu0 0.0
    %2380 = vmatprep.subr.mxu0 0.0
    %2381 = vmatpush2.msra.mxu0 0.0
    %2382 = vmatprep.mubr.f32.mxu0 0.0
    %2383 = vmatmul.mubr.f32.gmra.mxu0 %v2316
    %v2384 = vpop.f32.mrf.mxu0
    %v2385 = vadd.f32 0.0, %v2384
    %v2386 = vpop.f32.mrf.mxu0
    %2387 = vdwg.mxu0
    %2389 = vrot.lane.b32.xlu0 %v2385, 16
    %v2390 = vpop.permute.xlu0 %2389
    %v2392 = vsel %vm237, %v2220, %v2390
    %v2393 = vld [vmem:[%s6] sm:$0xff]
    %v2394 = vld [vmem:[%s6 + $0x8] sm:$0xff]
    %v2395 = vld [vmem:[%s6 + $0x10] sm:$0xff]
    %v2396 = vld [vmem:[%s6 + $0x18] sm:$0xff]
    %v2397 = vld [vmem:[%s7] sm:$0x1]
    %v2399 = vlaneseq
    %v2400 = vshrl.u32 %v2399, 7
    %v2401 = vsub.s32 0, %v2400
    %v2402 = vrot.slane %v2397, %v2401
    %v2405 = vsel %vm73, %v2392, 0
    %2407 = vmatprep.subr.mxu0 0.0
    %2408 = vmatpush1.msra.mxu0 0.0
    %2409 = vmatprep.subr.mxu0 0.0
    %2410 = vmatpush1.msra.mxu0 0.0
    %2411 = vmatprep.subr.mxu0 0.0
    %2412 = vmatpush1.msra.mxu0 0.0
    %2413 = vmatprep.subr.mxu0 0.0
    %2414 = vmatpush1.msra.mxu0 0.0
    %2415 = vmatprep.subr.mxu0 0.0
    %2416 = vmatpush1.msra.mxu0 0.0
    %2417 = vmatprep.subr.mxu0 0.0
    %2418 = vmatpush1.msra.mxu0 0.0
    %2419 = vmatprep.subr.mxu0 0.0
    %2420 = vmatpush1.msra.mxu0 0.0
    %2421 = vmatprep.subr.mxu0 0.0
    %2422 = vmatpush1.msra.mxu0 0.0
    %2423 = vmatprep.subr.mxu0 0.0
    %2424 = vmatpush1.msra.mxu0 0.0
    %2425 = vmatprep.subr.mxu0 0.0
    %2426 = vmatpush1.msra.mxu0 0.0
    %2427 = vmatprep.subr.mxu0 0.0
    %2428 = vmatpush1.msra.mxu0 0.0
    %2429 = vmatprep.subr.mxu0 0.0
    %2430 = vmatpush1.msra.mxu0 0.0
    %2431 = vmatprep.subr.mxu0 0.0
    %2432 = vmatpush1.msra.mxu0 %v2396
    %2433 = vmatprep.subr.mxu0 0.0
    %2434 = vmatpush1.msra.mxu0 %v2395
    %2435 = vmatprep.subr.mxu0 0.0
    %2436 = vmatpush1.msra.mxu0 %v2394
    %2437 = vmatprep.subr.mxu0 0.0
    %2438 = vmatpush1.msra.mxu0 %v2393
    %2439 = vmatprep.subr.mxu0 0.0
    %2440 = vmatpush2.msra.mxu0 0.0
    %2441 = vmatprep.subr.mxu0 0.0
    %2442 = vmatpush2.msra.mxu0 0.0
    %2443 = vmatprep.subr.mxu0 0.0
    %2444 = vmatpush2.msra.mxu0 0.0
    %2445 = vmatprep.subr.mxu0 0.0
    %2446 = vmatpush2.msra.mxu0 0.0
    %2447 = vmatprep.subr.mxu0 0.0
    %2448 = vmatpush2.msra.mxu0 0.0
    %2449 = vmatprep.subr.mxu0 0.0
    %2450 = vmatpush2.msra.mxu0 0.0
    %2451 = vmatprep.subr.mxu0 0.0
    %2452 = vmatpush2.msra.mxu0 0.0
    %2453 = vmatprep.subr.mxu0 0.0
    %2454 = vmatpush2.msra.mxu0 0.0
    %2455 = vmatprep.subr.mxu0 0.0
    %2456 = vmatpush2.msra.mxu0 0.0
    %2457 = vmatprep.subr.mxu0 0.0
    %2458 = vmatpush2.msra.mxu0 0.0
    %2459 = vmatprep.subr.mxu0 0.0
    %2460 = vmatpush2.msra.mxu0 0.0
    %2461 = vmatprep.subr.mxu0 0.0
    %2462 = vmatpush2.msra.mxu0 0.0
    %2463 = vmatprep.subr.mxu0 0.0
    %2464 = vmatpush2.msra.mxu0 0.0
    %2465 = vmatprep.subr.mxu0 0.0
    %2466 = vmatpush2.msra.mxu0 0.0
    %2467 = vmatprep.subr.mxu0 0.0
    %2468 = vmatpush2.msra.mxu0 0.0
    %2469 = vmatprep.subr.mxu0 0.0
    %2470 = vmatpush2.msra.mxu0 0.0
    %2471 = vmatprep.mubr.f32.mxu0 0.0
    %2472 = vmatmul.mubr.f32.gmra.mxu0 %v2405
    %v2473 = vpop.f32.mrf.mxu0
    %v2474 = vadd.f32 %v2402, %v2473
    %v2475 = vpop.f32.mrf.mxu0
    %2476 = vdwg.mxu0
    %v2477 = vadd.f32 %v1970, %v2474
    %v2478 = vsel %vm73, %v2477, 0.0
    %2479 = vadd.xlane.f32.xlu0 %v2478
    %v2480 = vpop.xlane.xlu0 %2479
    %v2481 = vmul.f32 %v2480, %v659
    %v2482 = vsub.f32 %v2477, %v2481
    %v2483 = vmul.f32 %v2482, %v2482
    %v2484 = vsel %vm73, %v2483, 0.0
    %2485 = vadd.xlane.f32.xlu0 %v2484
    %v2486 = vpop.xlane.xlu0 %2485
    %v2487 = vmul.f32 %v2486, %v659
    %v2488 = vadd.f32 %v2487, 1e-05
    %v2489 = vrsqrt.pop %v2488
    %v2490 = vmul.f32 %v2482, %v2489
    %v2491 = vld [vmem:[%s8] sm:$0x1]
    %v2493 = vlaneseq
    %v2494 = vshrl.u32 %v2493, 7
    %v2495 = vsub.s32 0, %v2494
    %v2496 = vrot.slane %v2491, %v2495
    %v2498 = vmul.f32 %v2490, %v2496
    %v2499 = vld [vmem:[%s9] sm:$0x1]
    %v2501 = vlaneseq
    %v2502 = vshrl.u32 %v2501, 7
    %v2503 = vsub.s32 0, %v2502
    %v2504 = vrot.slane %v2499, %v2503
    %v2506 = vadd.f32 %v2498, %v2504
    %v2507 = vld [vmem:[%s10] sm:$0xff]
    %v2508 = vld [vmem:[%s10 + $0x8] sm:$0xff]
    %v2509 = vld [vmem:[%s10 + $0x10] sm:$0xff]
    %v2510 = vld [vmem:[%s10 + $0x18] sm:$0xff]
    %v2511 = vld [vmem:[%s11] sm:$0x1]
    %v2513 = vlaneseq
    %v2514 = vshrl.u32 %v2513, 7
    %v2515 = vsub.s32 0, %v2514
    %v2516 = vrot.slane %v2511, %v2515
    %v2519 = vsel %vm73, %v2506, 0
    %2521 = vmatprep.subr.mxu0 0.0
    %2522 = vmatpush1.msra.mxu0 0.0
    %2523 = vmatprep.subr.mxu0 0.0
    %2524 = vmatpush1.msra.mxu0 0.0
    %2525 = vmatprep.subr.mxu0 0.0
    %2526 = vmatpush1.msra.mxu0 0.0
    %2527 = vmatprep.subr.mxu0 0.0
    %2528 = vmatpush1.msra.mxu0 0.0
    %2529 = vmatprep.subr.mxu0 0.0
    %2530 = vmatpush1.msra.mxu0 0.0
    %2531 = vmatprep.subr.mxu0 0.0
    %2532 = vmatpush1.msra.mxu0 0.0
    %2533 = vmatprep.subr.mxu0 0.0
    %2534 = vmatpush1.msra.mxu0 0.0
    %2535 = vmatprep.subr.mxu0 0.0
    %2536 = vmatpush1.msra.mxu0 0.0
    %2537 = vmatprep.subr.mxu0 0.0
    %2538 = vmatpush1.msra.mxu0 0.0
    %2539 = vmatprep.subr.mxu0 0.0
    %2540 = vmatpush1.msra.mxu0 0.0
    %2541 = vmatprep.subr.mxu0 0.0
    %2542 = vmatpush1.msra.mxu0 0.0
    %2543 = vmatprep.subr.mxu0 0.0
    %2544 = vmatpush1.msra.mxu0 0.0
    %2545 = vmatprep.subr.mxu0 0.0
    %2546 = vmatpush1.msra.mxu0 %v2510
    %2547 = vmatprep.subr.mxu0 0.0
    %2548 = vmatpush1.msra.mxu0 %v2509
    %2549 = vmatprep.subr.mxu0 0.0
    %2550 = vmatpush1.msra.mxu0 %v2508
    %2551 = vmatprep.subr.mxu0 0.0
    %2552 = vmatpush1.msra.mxu0 %v2507
    %2553 = vmatprep.subr.mxu0 0.0
    %2554 = vmatpush2.msra.mxu0 0.0
    %2555 = vmatprep.subr.mxu0 0.0
    %2556 = vmatpush2.msra.mxu0 0.0
    %2557 = vmatprep.subr.mxu0 0.0
    %2558 = vmatpush2.msra.mxu0 0.0
    %2559 = vmatprep.subr.mxu0 0.0
    %2560 = vmatpush2.msra.mxu0 0.0
    %2561 = vmatprep.subr.mxu0 0.0
    %2562 = vmatpush2.msra.mxu0 0.0
    %2563 = vmatprep.subr.mxu0 0.0
    %2564 = vmatpush2.msra.mxu0 0.0
    %2565 = vmatprep.subr.mxu0 0.0
    %2566 = vmatpush2.msra.mxu0 0.0
    %2567 = vmatprep.subr.mxu0 0.0
    %2568 = vmatpush2.msra.mxu0 0.0
    %2569 = vmatprep.subr.mxu0 0.0
    %2570 = vmatpush2.msra.mxu0 0.0
    %2571 = vmatprep.subr.mxu0 0.0
    %2572 = vmatpush2.msra.mxu0 0.0
    %2573 = vmatprep.subr.mxu0 0.0
    %2574 = vmatpush2.msra.mxu0 0.0
    %2575 = vmatprep.subr.mxu0 0.0
    %2576 = vmatpush2.msra.mxu0 0.0
    %2577 = vmatprep.subr.mxu0 0.0
    %2578 = vmatpush2.msra.mxu0 0.0
    %2579 = vmatprep.subr.mxu0 0.0
    %2580 = vmatpush2.msra.mxu0 0.0
    %2581 = vmatprep.subr.mxu0 0.0
    %2582 = vmatpush2.msra.mxu0 0.0
    %2583 = vmatprep.subr.mxu0 0.0
    %2584 = vmatpush2.msra.mxu0 0.0
    %2585 = vmatprep.mubr.f32.mxu0 0.0
    %2586 = vmatmul.mubr.f32.gmra.mxu0 %v2519
    %v2587 = vpop.f32.mrf.mxu0
    %v2588 = vadd.f32 %v2516, %v2587
    %v2589 = vpop.f32.mrf.mxu0
    %2590 = vdwg.mxu0
    %v2591 = vmax.f32 %v2588, 0.0
    %v2592 = vld [vmem:[%s12] sm:$0xff]
    %v2593 = vld [vmem:[%s12 + $0x8] sm:$0xff]
    %v2594 = vld [vmem:[%s12 + $0x10] sm:$0xff]
    %v2595 = vld [vmem:[%s12 + $0x18] sm:$0xff]
    %v2596 = vld [vmem:[%s12 + $0x20] sm:$0xff]
    %v2597 = vld [vmem:[%s12 + $0x28] sm:$0xff]
    %v2598 = vld [vmem:[%s12 + $0x30] sm:$0xff]
    %v2599 = vld [vmem:[%s12 + $0x38] sm:$0xff]
    %v2600 = vld [vmem:[%s12 + $0x40] sm:$0xff]
    %v2601 = vld [vmem:[%s12 + $0x48] sm:$0xff]
    %v2602 = vld [vmem:[%s12 + $0x50] sm:$0xff]
    %v2603 = vld [vmem:[%s12 + $0x58] sm:$0xff]
    %v2604 = vld [vmem:[%s12 + $0x60] sm:$0xff]
    %v2605 = vld [vmem:[%s12 + $0x68] sm:$0xff]
    %v2606 = vld [vmem:[%s12 + $0x70] sm:$0xff]
    %v2607 = vld [vmem:[%s12 + $0x78] sm:$0xff]
    %v2608 = vld [vmem:[%s13] sm:$0x1]
    %v2610 = vlaneseq
    %v2611 = vshrl.u32 %v2610, 7
    %v2612 = vsub.s32 0, %v2611
    %v2613 = vrot.slane %v2608, %v2612
    %2615 = vmatprep.subr.mxu0 0.0
    %2616 = vmatpush1.msra.mxu0 %v2607
    %2617 = vmatprep.subr.mxu0 0.0
    %2618 = vmatpush1.msra.mxu0 %v2606
    %2619 = vmatprep.subr.mxu0 0.0
    %2620 = vmatpush1.msra.mxu0 %v2605
    %2621 = vmatprep.subr.mxu0 0.0
    %2622 = vmatpush1.msra.mxu0 %v2604
    %2623 = vmatprep.subr.mxu0 0.0
    %2624 = vmatpush1.msra.mxu0 %v2603
    %2625 = vmatprep.subr.mxu0 0.0
    %2626 = vmatpush1.msra.mxu0 %v2602
    %2627 = vmatprep.subr.mxu0 0.0
    %2628 = vmatpush1.msra.mxu0 %v2601
    %2629 = vmatprep.subr.mxu0 0.0
    %2630 = vmatpush1.msra.mxu0 %v2600
    %2631 = vmatprep.subr.mxu0 0.0
    %2632 = vmatpush1.msra.mxu0 %v2599
    %2633 = vmatprep.subr.mxu0 0.0
    %2634 = vmatpush1.msra.mxu0 %v2598
    %2635 = vmatprep.subr.mxu0 0.0
    %2636 = vmatpush1.msra.mxu0 %v2597
    %2637 = vmatprep.subr.mxu0 0.0
    %2638 = vmatpush1.msra.mxu0 %v2596
    %2639 = vmatprep.subr.mxu0 0.0
    %2640 = vmatpush1.msra.mxu0 %v2595
    %2641 = vmatprep.subr.mxu0 0.0
    %2642 = vmatpush1.msra.mxu0 %v2594
    %2643 = vmatprep.subr.mxu0 0.0
    %2644 = vmatpush1.msra.mxu0 %v2593
    %2645 = vmatprep.subr.mxu0 0.0
    %2646 = vmatpush1.msra.mxu0 %v2592
    %2647 = vmatprep.subr.mxu0 0.0
    %2648 = vmatpush2.msra.mxu0 0.0
    %2649 = vmatprep.subr.mxu0 0.0
    %2650 = vmatpush2.msra.mxu0 0.0
    %2651 = vmatprep.subr.mxu0 0.0
    %2652 = vmatpush2.msra.mxu0 0.0
    %2653 = vmatprep.subr.mxu0 0.0
    %2654 = vmatpush2.msra.mxu0 0.0
    %2655 = vmatprep.subr.mxu0 0.0
    %2656 = vmatpush2.msra.mxu0 0.0
    %2657 = vmatprep.subr.mxu0 0.0
    %2658 = vmatpush2.msra.mxu0 0.0
    %2659 = vmatprep.subr.mxu0 0.0
    %2660 = vmatpush2.msra.mxu0 0.0
    %2661 = vmatprep.subr.mxu0 0.0
    %2662 = vmatpush2.msra.mxu0 0.0
    %2663 = vmatprep.subr.mxu0 0.0
    %2664 = vmatpush2.msra.mxu0 0.0
    %2665 = vmatprep.subr.mxu0 0.0
    %2666 = vmatpush2.msra.mxu0 0.0
    %2667 = vmatprep.subr.mxu0 0.0
    %2668 = vmatpush2.msra.mxu0 0.0
    %2669 = vmatprep.subr.mxu0 0.0
    %2670 = vmatpush2.msra.mxu0 0.0
    %2671 = vmatprep.subr.mxu0 0.0
    %2672 = vmatpush2.msra.mxu0 0.0
    %2673 = vmatprep.subr.mxu0 0.0
    %2674 = vmatpush2.msra.mxu0 0.0
    %2675 = vmatprep.subr.mxu0 0.0
    %2676 = vmatpush2.msra.mxu0 0.0
    %2677 = vmatprep.subr.mxu0 0.0
    %2678 = vmatpush2.msra.mxu0 0.0
    %2679 = vmatprep.mubr.f32.mxu0 0.0
    %2680 = vmatmul.mubr.f32.gmra.mxu0 %v2591
    %v2681 = vpop.f32.mrf.mxu0
    %v2682 = vadd.f32 %v2613, %v2681
    %v2683 = vpop.f32.mrf.mxu0
    %2684 = vdwg.mxu0
    %v2685 = vadd.f32 %v2506, %v2682
    %v2686 = vsel %vm73, %v2685, 0.0
    %2687 = vadd.xlane.f32.xlu0 %v2686
    %v2688 = vpop.xlane.xlu0 %2687
    %v2689 = vmul.f32 %v2688, %v659
    %v2690 = vsub.f32 %v2685, %v2689
    %v2691 = vmul.f32 %v2690, %v2690
    %v2692 = vsel %vm73, %v2691, 0.0
    %2693 = vadd.xlane.f32.xlu0 %v2692
    %v2694 = vpop.xlane.xlu0 %2693
    %v2695 = vmul.f32 %v2694, %v659
    %v2696 = vadd.f32 %v2695, 1e-05
    %v2697 = vrsqrt.pop %v2696
    %v2698 = vmul.f32 %v2690, %v2697
    %v2699 = vld [vmem:[%s14] sm:$0x1]
    %v2701 = vlaneseq
    %v2702 = vshrl.u32 %v2701, 7
    %v2703 = vsub.s32 0, %v2702
    %v2704 = vrot.slane %v2699, %v2703
    %v2706 = vmul.f32 %v2698, %v2704
    %v2707 = vld [vmem:[%s15] sm:$0x1]
    %v2709 = vlaneseq
    %v2710 = vshrl.u32 %v2709, 7
    %v2711 = vsub.s32 0, %v2710
    %v2712 = vrot.slane %v2707, %v2711
    %v2714 = vadd.f32 %v2706, %v2712
    %s2715 = sld [smem:[#allocation3 + $0x2]]
    %v2716 = vstv %s2715
    %vm2717 = vcmp.eq.s32.totalorder %v60, %v2716
    %v2718 = vsel %vm2717, 1, 0
    %v2719 = vcvt.s32.f32 %v2718
    %v2721 = vsel %vm313, %v2719, 0
    %2723 = vmatprep.subr.mxu0 0.0
    %2724 = vmatpush1.msra.mxu0 0.0
    %2725 = vmatprep.subr.mxu0 0.0
    %2726 = vmatpush1.msra.mxu0 0.0
    %2727 = vmatprep.subr.mxu0 0.0
    %2728 = vmatpush1.msra.mxu0 0.0
    %2729 = vmatprep.subr.mxu0 0.0
    %2730 = vmatpush1.msra.mxu0 0.0
    %2731 = vmatprep.subr.mxu0 0.0
    %2732 = vmatpush1.msra.mxu0 0.0
    %2733 = vmatprep.subr.mxu0 0.0
    %2734 = vmatpush1.msra.mxu0 0.0
    %2735 = vmatprep.subr.mxu0 0.0
    %2736 = vmatpush1.msra.mxu0 0.0
    %2737 = vmatprep.subr.mxu0 0.0
    %2738 = vmatpush1.msra.mxu0 0.0
    %2739 = vmatprep.subr.mxu0 0.0
    %2740 = vmatpush1.msra.mxu0 0.0
    %2741 = vmatprep.subr.mxu0 0.0
    %2742 = vmatpush1.msra.mxu0 0.0
    %2743 = vmatprep.subr.mxu0 0.0
    %2744 = vmatpush1.msra.mxu0 0.0
    %2745 = vmatprep.subr.mxu0 0.0
    %2746 = vmatpush1.msra.mxu0 0.0
    %2747 = vmatprep.subr.mxu0 0.0
    %2748 = vmatpush1.msra.mxu0 0.0
    %2749 = vmatprep.subr.mxu0 0.0
    %2750 = vmatpush1.msra.mxu0 0.0
    %2751 = vmatprep.subr.mxu0 0.0
    %2752 = vmatpush1.msra.mxu0 0.0
    %2753 = vmatprep.subr.mxu0 0.0
    %2754 = vmatpush1.msra.mxu0 %v2714
    %2755 = vmatprep.subr.mxu0 0.0
    %2756 = vmatpush2.msra.mxu0 0.0
    %2757 = vmatprep.subr.mxu0 0.0
    %2758 = vmatpush2.msra.mxu0 0.0
    %2759 = vmatprep.subr.mxu0 0.0
    %2760 = vmatpush2.msra.mxu0 0.0
    %2761 = vmatprep.subr.mxu0 0.0
    %2762 = vmatpush2.msra.mxu0 0.0
    %2763 = vmatprep.subr.mxu0 0.0
    %2764 = vmatpush2.msra.mxu0 0.0
    %2765 = vmatprep.subr.mxu0 0.0
    %2766 = vmatpush2.msra.mxu0 0.0
    %2767 = vmatprep.subr.mxu0 0.0
    %2768 = vmatpush2.msra.mxu0 0.0
    %2769 = vmatprep.subr.mxu0 0.0
    %2770 = vmatpush2.msra.mxu0 0.0
    %2771 = vmatprep.subr.mxu0 0.0
    %2772 = vmatpush2.msra.mxu0 0.0
    %2773 = vmatprep.subr.mxu0 0.0
    %2774 = vmatpush2.msra.mxu0 0.0
    %2775 = vmatprep.subr.mxu0 0.0
    %2776 = vmatpush2.msra.mxu0 0.0
    %2777 = vmatprep.subr.mxu0 0.0
    %2778 = vmatpush2.msra.mxu0 0.0
    %2779 = vmatprep.subr.mxu0 0.0
    %2780 = vmatpush2.msra.mxu0 0.0
    %2781 = vmatprep.subr.mxu0 0.0
    %2782 = vmatpush2.msra.mxu0 0.0
    %2783 = vmatprep.subr.mxu0 0.0
    %2784 = vmatpush2.msra.mxu0 0.0
    %2785 = vmatprep.subr.mxu0 0.0
    %2786 = vmatpush2.msra.mxu0 0.0
    %2787 = vmatprep.mubr.f32.mxu0 0.0
    %2788 = vmatmul.mubr.f32.gmra.mxu0 %v2721
    %v2789 = vpop.f32.mrf.mxu0
    %v2790 = vadd.f32 0.0, %v2789
    %v2791 = vpop.f32.mrf.mxu0
    %2792 = vdwg.mxu0
    %2793 = vst.msk [vmem:[#allocation6 + $0x2] sm:$0x1] %vm972, %v2790
    %s2794 = scalar_lea.vmem %s1, 24
    %v2795 = vld [vmem:[%s2794] sm:$0xff]
    %v2796 = vld [vmem:[%s2] sm:$0xff]
    %v2797 = vld [vmem:[%s2 + $0x8] sm:$0xff]
    %v2798 = vld [vmem:[%s2 + $0x10] sm:$0xff]
    %v2799 = vld [vmem:[%s2 + $0x18] sm:$0xff]
    %v2800 = vld [vmem:[%s3] sm:$0x1]
    %v2802 = vlaneseq
    %v2803 = vshrl.u32 %v2802, 7
    %v2804 = vsub.s32 0, %v2803
    %v2805 = vrot.slane %v2800, %v2804
    %v2808 = vsel %vm73, %v2795, 0
    %2810 = vmatprep.subr.mxu0 0.0
    %2811 = vmatpush1.msra.mxu0 0.0
    %2812 = vmatprep.subr.mxu0 0.0
    %2813 = vmatpush1.msra.mxu0 0.0
    %2814 = vmatprep.subr.mxu0 0.0
    %2815 = vmatpush1.msra.mxu0 0.0
    %2816 = vmatprep.subr.mxu0 0.0
    %2817 = vmatpush1.msra.mxu0 0.0
    %2818 = vmatprep.subr.mxu0 0.0
    %2819 = vmatpush1.msra.mxu0 0.0
    %2820 = vmatprep.subr.mxu0 0.0
    %2821 = vmatpush1.msra.mxu0 0.0
    %2822 = vmatprep.subr.mxu0 0.0
    %2823 = vmatpush1.msra.mxu0 0.0
    %2824 = vmatprep.subr.mxu0 0.0
    %2825 = vmatpush1.msra.mxu0 0.0
    %2826 = vmatprep.subr.mxu0 0.0
    %2827 = vmatpush1.msra.mxu0 0.0
    %2828 = vmatprep.subr.mxu0 0.0
    %2829 = vmatpush1.msra.mxu0 0.0
    %2830 = vmatprep.subr.mxu0 0.0
    %2831 = vmatpush1.msra.mxu0 0.0
    %2832 = vmatprep.subr.mxu0 0.0
    %2833 = vmatpush1.msra.mxu0 0.0
    %2834 = vmatprep.subr.mxu0 0.0
    %2835 = vmatpush1.msra.mxu0 %v2799
    %2836 = vmatprep.subr.mxu0 0.0
    %2837 = vmatpush1.msra.mxu0 %v2798
    %2838 = vmatprep.subr.mxu0 0.0
    %2839 = vmatpush1.msra.mxu0 %v2797
    %2840 = vmatprep.subr.mxu0 0.0
    %2841 = vmatpush1.msra.mxu0 %v2796
    %2842 = vmatprep.subr.mxu0 0.0
    %2843 = vmatpush2.msra.mxu0 0.0
    %2844 = vmatprep.subr.mxu0 0.0
    %2845 = vmatpush2.msra.mxu0 0.0
    %2846 = vmatprep.subr.mxu0 0.0
    %2847 = vmatpush2.msra.mxu0 0.0
    %2848 = vmatprep.subr.mxu0 0.0
    %2849 = vmatpush2.msra.mxu0 0.0
    %2850 = vmatprep.subr.mxu0 0.0
    %2851 = vmatpush2.msra.mxu0 0.0
    %2852 = vmatprep.subr.mxu0 0.0
    %2853 = vmatpush2.msra.mxu0 0.0
    %2854 = vmatprep.subr.mxu0 0.0
    %2855 = vmatpush2.msra.mxu0 0.0
    %2856 = vmatprep.subr.mxu0 0.0
    %2857 = vmatpush2.msra.mxu0 0.0
    %2858 = vmatprep.subr.mxu0 0.0
    %2859 = vmatpush2.msra.mxu0 0.0
    %2860 = vmatprep.subr.mxu0 0.0
    %2861 = vmatpush2.msra.mxu0 0.0
    %2862 = vmatprep.subr.mxu0 0.0
    %2863 = vmatpush2.msra.mxu0 0.0
    %2864 = vmatprep.subr.mxu0 0.0
    %2865 = vmatpush2.msra.mxu0 0.0
    %2866 = vmatprep.subr.mxu0 0.0
    %2867 = vmatpush2.msra.mxu0 0.0
    %2868 = vmatprep.subr.mxu0 0.0
    %2869 = vmatpush2.msra.mxu0 0.0
    %2870 = vmatprep.subr.mxu0 0.0
    %2871 = vmatpush2.msra.mxu0 0.0
    %2872 = vmatprep.subr.mxu0 0.0
    %2873 = vmatpush2.msra.mxu0 0.0
    %2874 = vmatprep.mubr.f32.mxu0 0.0
    %2875 = vmatmul.mubr.f32.gmra.mxu0 %v2808
    %v2876 = vpop.f32.mrf.mxu0
    %v2877 = vadd.f32 %v2805, %v2876
    %v2878 = vpop.f32.mrf.mxu0
    %2879 = vdwg.mxu0
    %v2880 = vtanh.pop %v2877
    %s2881 = scalar_lea.vmem [#allocation4], 24
    %2882 = vst.msk [vmem:[%s2881] sm:$0xff] %vm73, %v2880
    %v2883 = vld [vmem:[%s4] sm:$0xff]
    %v2884 = vld [vmem:[%s4 + $0x8] sm:$0xff]
    %v2885 = vld [vmem:[%s4 + $0x10] sm:$0xff]
    %v2886 = vld [vmem:[%s4 + $0x18] sm:$0xff]
    %v2887 = vld [vmem:[%s5] sm:$0x1]
    %v2889 = vlaneseq
    %v2890 = vshrl.u32 %v2889, 7
    %v2891 = vsub.s32 0, %v2890
    %v2892 = vrot.slane %v2887, %v2891
    %v2895 = vsel %vm73, %v2880, 0
    %2897 = vmatprep.subr.mxu0 0.0
    %2898 = vmatpush1.msra.mxu0 0.0
    %2899 = vmatprep.subr.mxu0 0.0
    %2900 = vmatpush1.msra.mxu0 0.0
    %2901 = vmatprep.subr.mxu0 0.0
    %2902 = vmatpush1.msra.mxu0 0.0
    %2903 = vmatprep.subr.mxu0 0.0
    %2904 = vmatpush1.msra.mxu0 0.0
    %2905 = vmatprep.subr.mxu0 0.0
    %2906 = vmatpush1.msra.mxu0 0.0
    %2907 = vmatprep.subr.mxu0 0.0
    %2908 = vmatpush1.msra.mxu0 0.0
    %2909 = vmatprep.subr.mxu0 0.0
    %2910 = vmatpush1.msra.mxu0 0.0
    %2911 = vmatprep.subr.mxu0 0.0
    %2912 = vmatpush1.msra.mxu0 0.0
    %2913 = vmatprep.subr.mxu0 0.0
    %2914 = vmatpush1.msra.mxu0 0.0
    %2915 = vmatprep.subr.mxu0 0.0
    %2916 = vmatpush1.msra.mxu0 0.0
    %2917 = vmatprep.subr.mxu0 0.0
    %2918 = vmatpush1.msra.mxu0 0.0
    %2919 = vmatprep.subr.mxu0 0.0
    %2920 = vmatpush1.msra.mxu0 0.0
    %2921 = vmatprep.subr.mxu0 0.0
    %2922 = vmatpush1.msra.mxu0 %v2886
    %2923 = vmatprep.subr.mxu0 0.0
    %2924 = vmatpush1.msra.mxu0 %v2885
    %2925 = vmatprep.subr.mxu0 0.0
    %2926 = vmatpush1.msra.mxu0 %v2884
    %2927 = vmatprep.subr.mxu0 0.0
    %2928 = vmatpush1.msra.mxu0 %v2883
    %2929 = vmatprep.subr.mxu0 0.0
    %2930 = vmatpush2.msra.mxu0 0.0
    %2931 = vmatprep.subr.mxu0 0.0
    %2932 = vmatpush2.msra.mxu0 0.0
    %2933 = vmatprep.subr.mxu0 0.0
    %2934 = vmatpush2.msra.mxu0 0.0
    %2935 = vmatprep.subr.mxu0 0.0
    %2936 = vmatpush2.msra.mxu0 0.0
    %2937 = vmatprep.subr.mxu0 0.0
    %2938 = vmatpush2.msra.mxu0 0.0
    %2939 = vmatprep.subr.mxu0 0.0
    %2940 = vmatpush2.msra.mxu0 0.0
    %2941 = vmatprep.subr.mxu0 0.0
    %2942 = vmatpush2.msra.mxu0 0.0
    %2943 = vmatprep.subr.mxu0 0.0
    %2944 = vmatpush2.msra.mxu0 0.0
    %2945 = vmatprep.subr.mxu0 0.0
    %2946 = vmatpush2.msra.mxu0 0.0
    %2947 = vmatprep.subr.mxu0 0.0
    %2948 = vmatpush2.msra.mxu0 0.0
    %2949 = vmatprep.subr.mxu0 0.0
    %2950 = vmatpush2.msra.mxu0 0.0
    %2951 = vmatprep.subr.mxu0 0.0
    %2952 = vmatpush2.msra.mxu0 0.0
    %2953 = vmatprep.subr.mxu0 0.0
    %2954 = vmatpush2.msra.mxu0 0.0
    %2955 = vmatprep.subr.mxu0 0.0
    %2956 = vmatpush2.msra.mxu0 0.0
    %2957 = vmatprep.subr.mxu0 0.0
    %2958 = vmatpush2.msra.mxu0 0.0
    %2959 = vmatprep.subr.mxu0 0.0
    %2960 = vmatpush2.msra.mxu0 0.0
    %2961 = vmatprep.mubr.f32.mxu0 0.0
    %2962 = vmatmul.mubr.f32.gmra.mxu0 %v2895
    %v2963 = vpop.f32.mrf.mxu0
    %v2964 = vadd.f32 %v2892, %v2963
    %v2965 = vpop.f32.mrf.mxu0
    %2966 = vdwg.mxu0
    %v2967 = vmul.f32 %v2964, 0.25
    %2969 = vrot.lane.b32.xlu0 %v2964, 96
    %v2970 = vpop.permute.xlu0 %2969
    %v2972 = vsel %vm237, %v2967, 0
    %v2974 = vsel %vm237, %v2970, 0
    %2976 = vmatprep.subr.mxu0 0.0
    %2977 = vmatpush1.xpose.msra.mxu0 0.0
    %2978 = vmatprep.subr.mxu0 0.0
    %2979 = vmatpush1.xpose.msra.mxu0 0.0
    %2980 = vmatprep.subr.mxu0 0.0
    %2981 = vmatpush1.xpose.msra.mxu0 0.0
    %2982 = vmatprep.subr.mxu0 0.0
    %2983 = vmatpush1.xpose.msra.mxu0 0.0
    %2984 = vmatprep.subr.mxu0 0.0
    %2985 = vmatpush1.xpose.msra.mxu0 0.0
    %2986 = vmatprep.subr.mxu0 0.0
    %2987 = vmatpush1.xpose.msra.mxu0 0.0
    %2988 = vmatprep.subr.mxu0 0.0
    %2989 = vmatpush1.xpose.msra.mxu0 0.0
    %2990 = vmatprep.subr.mxu0 0.0
    %2991 = vmatpush1.xpose.msra.mxu0 0.0
    %2992 = vmatprep.subr.mxu0 0.0
    %2993 = vmatpush1.xpose.msra.mxu0 0.0
    %2994 = vmatprep.subr.mxu0 0.0
    %2995 = vmatpush1.xpose.msra.mxu0 0.0
    %2996 = vmatprep.subr.mxu0 0.0
    %2997 = vmatpush1.xpose.msra.mxu0 0.0
    %2998 = vmatprep.subr.mxu0 0.0
    %2999 = vmatpush1.xpose.msra.mxu0 0.0
    %3000 = vmatprep.subr.mxu0 0.0
    %3001 = vmatpush1.xpose.msra.mxu0 0.0
    %3002 = vmatprep.subr.mxu0 0.0
    %3003 = vmatpush1.xpose.msra.mxu0 0.0
    %3004 = vmatprep.subr.mxu0 0.0
    %3005 = vmatpush1.xpose.msra.mxu0 0.0
    %3006 = vmatprep.subr.mxu0 0.0
    %3007 = vmatpush1.xpose.msra.mxu0 %v2974
    %3008 = vmatprep.subr.mxu0 0.0
    %3009 = vmatpush2.xpose.msra.mxu0 0.0
    %3010 = vmatprep.subr.mxu0 0.0
    %3011 = vmatpush2.xpose.msra.mxu0 0.0
    %3012 = vmatprep.subr.mxu0 0.0
    %3013 = vmatpush2.xpose.msra.mxu0 0.0
    %3014 = vmatprep.subr.mxu0 0.0
    %3015 = vmatpush2.xpose.msra.mxu0 0.0
    %3016 = vmatprep.subr.mxu0 0.0
    %3017 = vmatpush2.xpose.msra.mxu0 0.0
    %3018 = vmatprep.subr.mxu0 0.0
    %3019 = vmatpush2.xpose.msra.mxu0 0.0
    %3020 = vmatprep.subr.mxu0 0.0
    %3021 = vmatpush2.xpose.msra.mxu0 0.0
    %3022 = vmatprep.subr.mxu0 0.0
    %3023 = vmatpush2.xpose.msra.mxu0 0.0
    %3024 = vmatprep.subr.mxu0 0.0
    %3025 = vmatpush2.xpose.msra.mxu0 0.0
    %3026 = vmatprep.subr.mxu0 0.0
    %3027 = vmatpush2.xpose.msra.mxu0 0.0
    %3028 = vmatprep.subr.mxu0 0.0
    %3029 = vmatpush2.xpose.msra.mxu0 0.0
    %3030 = vmatprep.subr.mxu0 0.0
    %3031 = vmatpush2.xpose.msra.mxu0 0.0
    %3032 = vmatprep.subr.mxu0 0.0
    %3033 = vmatpush2.xpose.msra.mxu0 0.0
    %3034 = vmatprep.subr.mxu0 0.0
    %3035 = vmatpush2.xpose.msra.mxu0 0.0
    %3036 = vmatprep.subr.mxu0 0.0
    %3037 = vmatpush2.xpose.msra.mxu0 0.0
    %3038 = vmatprep.subr.mxu0 0.0
    %3039 = vmatpush2.xpose.msra.mxu0 0.0
    %3040 = vmatprep.mubr.f32.mxu0 0.0
    %3041 = vmatmul.mubr.f32.gmra.mxu0 %v2972
    %v3042 = vpop.f32.mrf.mxu0
    %v3043 = vadd.f32 0.0, %v3042
    %v3044 = vpop.f32.mrf.mxu0
    %3045 = vdwg.mxu0
    %v3046 = vsel %vm313, %v3043, -inf
    %3047 = vmax.xlane.f32.xlu0 %v3046
    %v3048 = vpop.xlane.xlu0 %3047
    %v3049 = vsub.f32 %v3043, %v3048
    %v3050 = vmul.f32 %v3049, 1.442695
    %v3051 = vpow.pop %v3050
    %v3052 = vsel %vm313, %v3051, 0.0
    %3053 = vadd.xlane.f32.xlu0 %v3052
    %v3054 = vpop.xlane.xlu0 %3053
    %v3055 = vrcp.pop %v3054
    %v3056 = vmul.f32 %v3051, %v3055
    %3057 = vrot.lane.b32.xlu0 %v2964, 64
    %v3058 = vpop.permute.xlu0 %3057
    %v3061 = vsel %vm313, %v3056, 0
    %3063 = vmatprep.subr.mxu0 0.0
    %3064 = vmatpush1.msra.mxu0 0.0
    %3065 = vmatprep.subr.mxu0 0.0
    %3066 = vmatpush1.msra.mxu0 0.0
    %3067 = vmatprep.subr.mxu0 0.0
    %3068 = vmatpush1.msra.mxu0 0.0
    %3069 = vmatprep.subr.mxu0 0.0
    %3070 = vmatpush1.msra.mxu0 0.0
    %3071 = vmatprep.subr.mxu0 0.0
    %3072 = vmatpush1.msra.mxu0 0.0
    %3073 = vmatprep.subr.mxu0 0.0
    %3074 = vmatpush1.msra.mxu0 0.0
    %3075 = vmatprep.subr.mxu0 0.0
    %3076 = vmatpush1.msra.mxu0 0.0
    %3077 = vmatprep.subr.mxu0 0.0
    %3078 = vmatpush1.msra.mxu0 0.0
    %3079 = vmatprep.subr.mxu0 0.0
    %3080 = vmatpush1.msra.mxu0 0.0
    %3081 = vmatprep.subr.mxu0 0.0
    %3082 = vmatpush1.msra.mxu0 0.0
    %3083 = vmatprep.subr.mxu0 0.0
    %3084 = vmatpush1.msra.mxu0 0.0
    %3085 = vmatprep.subr.mxu0 0.0
    %3086 = vmatpush1.msra.mxu0 0.0
    %3087 = vmatprep.subr.mxu0 0.0
    %3088 = vmatpush1.msra.mxu0 0.0
    %3089 = vmatprep.subr.mxu0 0.0
    %3090 = vmatpush1.msra.mxu0 0.0
    %3091 = vmatprep.subr.mxu0 0.0
    %3092 = vmatpush1.msra.mxu0 0.0
    %3093 = vmatprep.subr.mxu0 0.0
    %3094 = vmatpush1.msra.mxu0 %v3058
    %3095 = vmatprep.subr.mxu0 0.0
    %3096 = vmatpush2.msra.mxu0 0.0
    %3097 = vmatprep.subr.mxu0 0.0
    %3098 = vmatpush2.msra.mxu0 0.0
    %3099 = vmatprep.subr.mxu0 0.0
    %3100 = vmatpush2.msra.mxu0 0.0
    %3101 = vmatprep.subr.mxu0 0.0
    %3102 = vmatpush2.msra.mxu0 0.0
    %3103 = vmatprep.subr.mxu0 0.0
    %3104 = vmatpush2.msra.mxu0 0.0
    %3105 = vmatprep.subr.mxu0 0.0
    %3106 = vmatpush2.msra.mxu0 0.0
    %3107 = vmatprep.subr.mxu0 0.0
    %3108 = vmatpush2.msra.mxu0 0.0
    %3109 = vmatprep.subr.mxu0 0.0
    %3110 = vmatpush2.msra.mxu0 0.0
    %3111 = vmatprep.subr.mxu0 0.0
    %3112 = vmatpush2.msra.mxu0 0.0
    %3113 = vmatprep.subr.mxu0 0.0
    %3114 = vmatpush2.msra.mxu0 0.0
    %3115 = vmatprep.subr.mxu0 0.0
    %3116 = vmatpush2.msra.mxu0 0.0
    %3117 = vmatprep.subr.mxu0 0.0
    %3118 = vmatpush2.msra.mxu0 0.0
    %3119 = vmatprep.subr.mxu0 0.0
    %3120 = vmatpush2.msra.mxu0 0.0
    %3121 = vmatprep.subr.mxu0 0.0
    %3122 = vmatpush2.msra.mxu0 0.0
    %3123 = vmatprep.subr.mxu0 0.0
    %3124 = vmatpush2.msra.mxu0 0.0
    %3125 = vmatprep.subr.mxu0 0.0
    %3126 = vmatpush2.msra.mxu0 0.0
    %3127 = vmatprep.mubr.f32.mxu0 0.0
    %3128 = vmatmul.mubr.f32.gmra.mxu0 %v3061
    %v3129 = vpop.f32.mrf.mxu0
    %v3130 = vadd.f32 0.0, %v3129
    %v3131 = vpop.f32.mrf.mxu0
    %3132 = vdwg.mxu0
    %3133 = vrot.lane.b32.xlu0 %v2967, 112
    %v3134 = vpop.permute.xlu0 %3133
    %3135 = vrot.lane.b32.xlu0 %v2964, 80
    %v3136 = vpop.permute.xlu0 %3135
    %v3137 = vsel %vm237, %v3134, 0
    %v3139 = vsel %vm237, %v3136, 0
    %3141 = vmatprep.subr.mxu0 0.0
    %3142 = vmatpush1.xpose.msra.mxu0 0.0
    %3143 = vmatprep.subr.mxu0 0.0
    %3144 = vmatpush1.xpose.msra.mxu0 0.0
    %3145 = vmatprep.subr.mxu0 0.0
    %3146 = vmatpush1.xpose.msra.mxu0 0.0
    %3147 = vmatprep.subr.mxu0 0.0
    %3148 = vmatpush1.xpose.msra.mxu0 0.0
    %3149 = vmatprep.subr.mxu0 0.0
    %3150 = vmatpush1.xpose.msra.mxu0 0.0
    %3151 = vmatprep.subr.mxu0 0.0
    %3152 = vmatpush1.xpose.msra.mxu0 0.0
    %3153 = vmatprep.subr.mxu0 0.0
    %3154 = vmatpush1.xpose.msra.mxu0 0.0
    %3155 = vmatprep.subr.mxu0 0.0
    %3156 = vmatpush1.xpose.msra.mxu0 0.0
    %3157 = vmatprep.subr.mxu0 0.0
    %3158 = vmatpush1.xpose.msra.mxu0 0.0
    %3159 = vmatprep.subr.mxu0 0.0
    %3160 = vmatpush1.xpose.msra.mxu0 0.0
    %3161 = vmatprep.subr.mxu0 0.0
    %3162 = vmatpush1.xpose.msra.mxu0 0.0
    %3163 = vmatprep.subr.mxu0 0.0
    %3164 = vmatpush1.xpose.msra.mxu0 0.0
    %3165 = vmatprep.subr.mxu0 0.0
    %3166 = vmatpush1.xpose.msra.mxu0 0.0
    %3167 = vmatprep.subr.mxu0 0.0
    %3168 = vmatpush1.xpose.msra.mxu0 0.0
    %3169 = vmatprep.subr.mxu0 0.0
    %3170 = vmatpush1.xpose.msra.mxu0 0.0
    %3171 = vmatprep.subr.mxu0 0.0
    %3172 = vmatpush1.xpose.msra.mxu0 %v3139
    %3173 = vmatprep.subr.mxu0 0.0
    %3174 = vmatpush2.xpose.msra.mxu0 0.0
    %3175 = vmatprep.subr.mxu0 0.0
    %3176 = vmatpush2.xpose.msra.mxu0 0.0
    %3177 = vmatprep.subr.mxu0 0.0
    %3178 = vmatpush2.xpose.msra.mxu0 0.0
    %3179 = vmatprep.subr.mxu0 0.0
    %3180 = vmatpush2.xpose.msra.mxu0 0.0
    %3181 = vmatprep.subr.mxu0 0.0
    %3182 = vmatpush2.xpose.msra.mxu0 0.0
    %3183 = vmatprep.subr.mxu0 0.0
    %3184 = vmatpush2.xpose.msra.mxu0 0.0
    %3185 = vmatprep.subr.mxu0 0.0
    %3186 = vmatpush2.xpose.msra.mxu0 0.0
    %3187 = vmatprep.subr.mxu0 0.0
    %3188 = vmatpush2.xpose.msra.mxu0 0.0
    %3189 = vmatprep.subr.mxu0 0.0
    %3190 = vmatpush2.xpose.msra.mxu0 0.0
    %3191 = vmatprep.subr.mxu0 0.0
    %3192 = vmatpush2.xpose.msra.mxu0 0.0
    %3193 = vmatprep.subr.mxu0 0.0
    %3194 = vmatpush2.xpose.msra.mxu0 0.0
    %3195 = vmatprep.subr.mxu0 0.0
    %3196 = vmatpush2.xpose.msra.mxu0 0.0
    %3197 = vmatprep.subr.mxu0 0.0
    %3198 = vmatpush2.xpose.msra.mxu0 0.0
    %3199 = vmatprep.subr.mxu0 0.0
    %3200 = vmatpush2.xpose.msra.mxu0 0.0
    %3201 = vmatprep.subr.mxu0 0.0
    %3202 = vmatpush2.xpose.msra.mxu0 0.0
    %3203 = vmatprep.subr.mxu0 0.0
    %3204 = vmatpush2.xpose.msra.mxu0 0.0
    %3205 = vmatprep.mubr.f32.mxu0 0.0
    %3206 = vmatmul.mubr.f32.gmra.mxu0 %v3137
    %v3207 = vpop.f32.mrf.mxu0
    %v3208 = vadd.f32 0.0, %v3207
    %v3209 = vpop.f32.mrf.mxu0
    %3210 = vdwg.mxu0
    %v3211 = vsel %vm313, %v3208, -inf
    %3212 = vmax.xlane.f32.xlu0 %v3211
    %v3213 = vpop.xlane.xlu0 %3212
    %v3214 = vsub.f32 %v3208, %v3213
    %v3215 = vmul.f32 %v3214, 1.442695
    %v3216 = vpow.pop %v3215
    %v3217 = vsel %vm313, %v3216, 0.0
    %3218 = vadd.xlane.f32.xlu0 %v3217
    %v3219 = vpop.xlane.xlu0 %3218
    %v3220 = vrcp.pop %v3219
    %v3221 = vmul.f32 %v3216, %v3220
    %3222 = vrot.lane.b32.xlu0 %v2964, 48
    %v3223 = vpop.permute.xlu0 %3222
    %v3226 = vsel %vm313, %v3221, 0
    %3228 = vmatprep.subr.mxu0 0.0
    %3229 = vmatpush1.msra.mxu0 0.0
    %3230 = vmatprep.subr.mxu0 0.0
    %3231 = vmatpush1.msra.mxu0 0.0
    %3232 = vmatprep.subr.mxu0 0.0
    %3233 = vmatpush1.msra.mxu0 0.0
    %3234 = vmatprep.subr.mxu0 0.0
    %3235 = vmatpush1.msra.mxu0 0.0
    %3236 = vmatprep.subr.mxu0 0.0
    %3237 = vmatpush1.msra.mxu0 0.0
    %3238 = vmatprep.subr.mxu0 0.0
    %3239 = vmatpush1.msra.mxu0 0.0
    %3240 = vmatprep.subr.mxu0 0.0
    %3241 = vmatpush1.msra.mxu0 0.0
    %3242 = vmatprep.subr.mxu0 0.0
    %3243 = vmatpush1.msra.mxu0 0.0
    %3244 = vmatprep.subr.mxu0 0.0
    %3245 = vmatpush1.msra.mxu0 0.0
    %3246 = vmatprep.subr.mxu0 0.0
    %3247 = vmatpush1.msra.mxu0 0.0
    %3248 = vmatprep.subr.mxu0 0.0
    %3249 = vmatpush1.msra.mxu0 0.0
    %3250 = vmatprep.subr.mxu0 0.0
    %3251 = vmatpush1.msra.mxu0 0.0
    %3252 = vmatprep.subr.mxu0 0.0
    %3253 = vmatpush1.msra.mxu0 0.0
    %3254 = vmatprep.subr.mxu0 0.0
    %3255 = vmatpush1.msra.mxu0 0.0
    %3256 = vmatprep.subr.mxu0 0.0
    %3257 = vmatpush1.msra.mxu0 0.0
    %3258 = vmatprep.subr.mxu0 0.0
    %3259 = vmatpush1.msra.mxu0 %v3223
    %3260 = vmatprep.subr.mxu0 0.0
    %3261 = vmatpush2.msra.mxu0 0.0
    %3262 = vmatprep.subr.mxu0 0.0
    %3263 = vmatpush2.msra.mxu0 0.0
    %3264 = vmatprep.subr.mxu0 0.0
    %3265 = vmatpush2.msra.mxu0 0.0
    %3266 = vmatprep.subr.mxu0 0.0
    %3267 = vmatpush2.msra.mxu0 0.0
    %3268 = vmatprep.subr.mxu0 0.0
    %3269 = vmatpush2.msra.mxu0 0.0
    %3270 = vmatprep.subr.mxu0 0.0
    %3271 = vmatpush2.msra.mxu0 0.0
    %3272 = vmatprep.subr.mxu0 0.0
    %3273 = vmatpush2.msra.mxu0 0.0
    %3274 = vmatprep.subr.mxu0 0.0
    %3275 = vmatpush2.msra.mxu0 0.0
    %3276 = vmatprep.subr.mxu0 0.0
    %3277 = vmatpush2.msra.mxu0 0.0
    %3278 = vmatprep.subr.mxu0 0.0
    %3279 = vmatpush2.msra.mxu0 0.0
    %3280 = vmatprep.subr.mxu0 0.0
    %3281 = vmatpush2.msra.mxu0 0.0
    %3282 = vmatprep.subr.mxu0 0.0
    %3283 = vmatpush2.msra.mxu0 0.0
    %3284 = vmatprep.subr.mxu0 0.0
    %3285 = vmatpush2.msra.mxu0 0.0
    %3286 = vmatprep.subr.mxu0 0.0
    %3287 = vmatpush2.msra.mxu0 0.0
    %3288 = vmatprep.subr.mxu0 0.0
    %3289 = vmatpush2.msra.mxu0 0.0
    %3290 = vmatprep.subr.mxu0 0.0
    %3291 = vmatpush2.msra.mxu0 0.0
    %3292 = vmatprep.mubr.f32.mxu0 0.0
    %3293 = vmatmul.mubr.f32.gmra.mxu0 %v3226
    %v3294 = vpop.f32.mrf.mxu0
    %v3295 = vadd.f32 0.0, %v3294
    %v3296 = vpop.f32.mrf.mxu0
    %3297 = vdwg.mxu0
    %3299 = vrot.lane.b32.xlu0 %v3295, 16
    %v3300 = vpop.permute.xlu0 %3299
    %v3302 = vsel %vm237, %v3130, %v3300
    %v3303 = vld [vmem:[%s6] sm:$0xff]
    %v3304 = vld [vmem:[%s6 + $0x8] sm:$0xff]
    %v3305 = vld [vmem:[%s6 + $0x10] sm:$0xff]
    %v3306 = vld [vmem:[%s6 + $0x18] sm:$0xff]
    %v3307 = vld [vmem:[%s7] sm:$0x1]
    %v3309 = vlaneseq
    %v3310 = vshrl.u32 %v3309, 7
    %v3311 = vsub.s32 0, %v3310
    %v3312 = vrot.slane %v3307, %v3311
    %v3315 = vsel %vm73, %v3302, 0
    %3317 = vmatprep.subr.mxu0 0.0
    %3318 = vmatpush1.msra.mxu0 0.0
    %3319 = vmatprep.subr.mxu0 0.0
    %3320 = vmatpush1.msra.mxu0 0.0
    %3321 = vmatprep.subr.mxu0 0.0
    %3322 = vmatpush1.msra.mxu0 0.0
    %3323 = vmatprep.subr.mxu0 0.0
    %3324 = vmatpush1.msra.mxu0 0.0
    %3325 = vmatprep.subr.mxu0 0.0
    %3326 = vmatpush1.msra.mxu0 0.0
    %3327 = vmatprep.subr.mxu0 0.0
    %3328 = vmatpush1.msra.mxu0 0.0
    %3329 = vmatprep.subr.mxu0 0.0
    %3330 = vmatpush1.msra.mxu0 0.0
    %3331 = vmatprep.subr.mxu0 0.0
    %3332 = vmatpush1.msra.mxu0 0.0
    %3333 = vmatprep.subr.mxu0 0.0
    %3334 = vmatpush1.msra.mxu0 0.0
    %3335 = vmatprep.subr.mxu0 0.0
    %3336 = vmatpush1.msra.mxu0 0.0
    %3337 = vmatprep.subr.mxu0 0.0
    %3338 = vmatpush1.msra.mxu0 0.0
    %3339 = vmatprep.subr.mxu0 0.0
    %3340 = vmatpush1.msra.mxu0 0.0
    %3341 = vmatprep.subr.mxu0 0.0
    %3342 = vmatpush1.msra.mxu0 %v3306
    %3343 = vmatprep.subr.mxu0 0.0
    %3344 = vmatpush1.msra.mxu0 %v3305
    %3345 = vmatprep.subr.mxu0 0.0
    %3346 = vmatpush1.msra.mxu0 %v3304
    %3347 = vmatprep.subr.mxu0 0.0
    %3348 = vmatpush1.msra.mxu0 %v3303
    %3349 = vmatprep.subr.mxu0 0.0
    %3350 = vmatpush2.msra.mxu0 0.0
    %3351 = vmatprep.subr.mxu0 0.0
    %3352 = vmatpush2.msra.mxu0 0.0
    %3353 = vmatprep.subr.mxu0 0.0
    %3354 = vmatpush2.msra.mxu0 0.0
    %3355 = vmatprep.subr.mxu0 0.0
    %3356 = vmatpush2.msra.mxu0 0.0
    %3357 = vmatprep.subr.mxu0 0.0
    %3358 = vmatpush2.msra.mxu0 0.0
    %3359 = vmatprep.subr.mxu0 0.0
    %3360 = vmatpush2.msra.mxu0 0.0
    %3361 = vmatprep.subr.mxu0 0.0
    %3362 = vmatpush2.msra.mxu0 0.0
    %3363 = vmatprep.subr.mxu0 0.0
    %3364 = vmatpush2.msra.mxu0 0.0
    %3365 = vmatprep.subr.mxu0 0.0
    %3366 = vmatpush2.msra.mxu0 0.0
    %3367 = vmatprep.subr.mxu0 0.0
    %3368 = vmatpush2.msra.mxu0 0.0
    %3369 = vmatprep.subr.mxu0 0.0
    %3370 = vmatpush2.msra.mxu0 0.0
    %3371 = vmatprep.subr.mxu0 0.0
    %3372 = vmatpush2.msra.mxu0 0.0
    %3373 = vmatprep.subr.mxu0 0.0
    %3374 = vmatpush2.msra.mxu0 0.0
    %3375 = vmatprep.subr.mxu0 0.0
    %3376 = vmatpush2.msra.mxu0 0.0
    %3377 = vmatprep.subr.mxu0 0.0
    %3378 = vmatpush2.msra.mxu0 0.0
    %3379 = vmatprep.subr.mxu0 0.0
    %3380 = vmatpush2.msra.mxu0 0.0
    %3381 = vmatprep.mubr.f32.mxu0 0.0
    %3382 = vmatmul.mubr.f32.gmra.mxu0 %v3315
    %v3383 = vpop.f32.mrf.mxu0
    %v3384 = vadd.f32 %v3312, %v3383
    %v3385 = vpop.f32.mrf.mxu0
    %3386 = vdwg.mxu0
    %v3387 = vadd.f32 %v2880, %v3384
    %v3388 = vsel %vm73, %v3387, 0.0
    %3389 = vadd.xlane.f32.xlu0 %v3388
    %v3390 = vpop.xlane.xlu0 %3389
    %v3391 = vmul.f32 %v3390, %v659
    %v3392 = vsub.f32 %v3387, %v3391
    %v3393 = vmul.f32 %v3392, %v3392
    %v3394 = vsel %vm73, %v3393, 0.0
    %3395 = vadd.xlane.f32.xlu0 %v3394
    %v3396 = vpop.xlane.xlu0 %3395
    %v3397 = vmul.f32 %v3396, %v659
    %v3398 = vadd.f32 %v3397, 1e-05
    %v3399 = vrsqrt.pop %v3398
    %v3400 = vmul.f32 %v3392, %v3399
    %v3401 = vld [vmem:[%s8] sm:$0x1]
    %v3403 = vlaneseq
    %v3404 = vshrl.u32 %v3403, 7
    %v3405 = vsub.s32 0, %v3404
    %v3406 = vrot.slane %v3401, %v3405
    %v3408 = vmul.f32 %v3400, %v3406
    %v3409 = vld [vmem:[%s9] sm:$0x1]
    %v3411 = vlaneseq
    %v3412 = vshrl.u32 %v3411, 7
    %v3413 = vsub.s32 0, %v3412
    %v3414 = vrot.slane %v3409, %v3413
    %v3416 = vadd.f32 %v3408, %v3414
    %v3417 = vld [vmem:[%s10] sm:$0xff]
    %v3418 = vld [vmem:[%s10 + $0x8] sm:$0xff]
    %v3419 = vld [vmem:[%s10 + $0x10] sm:$0xff]
    %v3420 = vld [vmem:[%s10 + $0x18] sm:$0xff]
    %v3421 = vld [vmem:[%s11] sm:$0x1]
    %v3423 = vlaneseq
    %v3424 = vshrl.u32 %v3423, 7
    %v3425 = vsub.s32 0, %v3424
    %v3426 = vrot.slane %v3421, %v3425
    %v3429 = vsel %vm73, %v3416, 0
    %3431 = vmatprep.subr.mxu0 0.0
    %3432 = vmatpush1.msra.mxu0 0.0
    %3433 = vmatprep.subr.mxu0 0.0
    %3434 = vmatpush1.msra.mxu0 0.0
    %3435 = vmatprep.subr.mxu0 0.0
    %3436 = vmatpush1.msra.mxu0 0.0
    %3437 = vmatprep.subr.mxu0 0.0
    %3438 = vmatpush1.msra.mxu0 0.0
    %3439 = vmatprep.subr.mxu0 0.0
    %3440 = vmatpush1.msra.mxu0 0.0
    %3441 = vmatprep.subr.mxu0 0.0
    %3442 = vmatpush1.msra.mxu0 0.0
    %3443 = vmatprep.subr.mxu0 0.0
    %3444 = vmatpush1.msra.mxu0 0.0
    %3445 = vmatprep.subr.mxu0 0.0
    %3446 = vmatpush1.msra.mxu0 0.0
    %3447 = vmatprep.subr.mxu0 0.0
    %3448 = vmatpush1.msra.mxu0 0.0
    %3449 = vmatprep.subr.mxu0 0.0
    %3450 = vmatpush1.msra.mxu0 0.0
    %3451 = vmatprep.subr.mxu0 0.0
    %3452 = vmatpush1.msra.mxu0 0.0
    %3453 = vmatprep.subr.mxu0 0.0
    %3454 = vmatpush1.msra.mxu0 0.0
    %3455 = vmatprep.subr.mxu0 0.0
    %3456 = vmatpush1.msra.mxu0 %v3420
    %3457 = vmatprep.subr.mxu0 0.0
    %3458 = vmatpush1.msra.mxu0 %v3419
    %3459 = vmatprep.subr.mxu0 0.0
    %3460 = vmatpush1.msra.mxu0 %v3418
    %3461 = vmatprep.subr.mxu0 0.0
    %3462 = vmatpush1.msra.mxu0 %v3417
    %3463 = vmatprep.subr.mxu0 0.0
    %3464 = vmatpush2.msra.mxu0 0.0
    %3465 = vmatprep.subr.mxu0 0.0
    %3466 = vmatpush2.msra.mxu0 0.0
    %3467 = vmatprep.subr.mxu0 0.0
    %3468 = vmatpush2.msra.mxu0 0.0
    %3469 = vmatprep.subr.mxu0 0.0
    %3470 = vmatpush2.msra.mxu0 0.0
    %3471 = vmatprep.subr.mxu0 0.0
    %3472 = vmatpush2.msra.mxu0 0.0
    %3473 = vmatprep.subr.mxu0 0.0
    %3474 = vmatpush2.msra.mxu0 0.0
    %3475 = vmatprep.subr.mxu0 0.0
    %3476 = vmatpush2.msra.mxu0 0.0
    %3477 = vmatprep.subr.mxu0 0.0
    %3478 = vmatpush2.msra.mxu0 0.0
    %3479 = vmatprep.subr.mxu0 0.0
    %3480 = vmatpush2.msra.mxu0 0.0
    %3481 = vmatprep.subr.mxu0 0.0
    %3482 = vmatpush2.msra.mxu0 0.0
    %3483 = vmatprep.subr.mxu0 0.0
    %3484 = vmatpush2.msra.mxu0 0.0
    %3485 = vmatprep.subr.mxu0 0.0
    %3486 = vmatpush2.msra.mxu0 0.0
    %3487 = vmatprep.subr.mxu0 0.0
    %3488 = vmatpush2.msra.mxu0 0.0
    %3489 = vmatprep.subr.mxu0 0.0
    %3490 = vmatpush2.msra.mxu0 0.0
    %3491 = vmatprep.subr.mxu0 0.0
    %3492 = vmatpush2.msra.mxu0 0.0
    %3493 = vmatprep.subr.mxu0 0.0
    %3494 = vmatpush2.msra.mxu0 0.0
    %3495 = vmatprep.mubr.f32.mxu0 0.0
    %3496 = vmatmul.mubr.f32.gmra.mxu0 %v3429
    %v3497 = vpop.f32.mrf.mxu0
    %v3498 = vadd.f32 %v3426, %v3497
    %v3499 = vpop.f32.mrf.mxu0
    %3500 = vdwg.mxu0
    %v3501 = vmax.f32 %v3498, 0.0
    %v3502 = vld [vmem:[%s12] sm:$0xff]
    %v3503 = vld [vmem:[%s12 + $0x8] sm:$0xff]
    %v3504 = vld [vmem:[%s12 + $0x10] sm:$0xff]
    %v3505 = vld [vmem:[%s12 + $0x18] sm:$0xff]
    %v3506 = vld [vmem:[%s12 + $0x20] sm:$0xff]
    %v3507 = vld [vmem:[%s12 + $0x28] sm:$0xff]
    %v3508 = vld [vmem:[%s12 + $0x30] sm:$0xff]
    %v3509 = vld [vmem:[%s12 + $0x38] sm:$0xff]
    %v3510 = vld [vmem:[%s12 + $0x40] sm:$0xff]
    %v3511 = vld [vmem:[%s12 + $0x48] sm:$0xff]
    %v3512 = vld [vmem:[%s12 + $0x50] sm:$0xff]
    %v3513 = vld [vmem:[%s12 + $0x58] sm:$0xff]
    %v3514 = vld [vmem:[%s12 + $0x60] sm:$0xff]
    %v3515 = vld [vmem:[%s12 + $0x68] sm:$0xff]
    %v3516 = vld [vmem:[%s12 + $0x70] sm:$0xff]
    %v3517 = vld [vmem:[%s12 + $0x78] sm:$0xff]
    %v3518 = vld [vmem:[%s13] sm:$0x1]
    %v3520 = vlaneseq
    %v3521 = vshrl.u32 %v3520, 7
    %v3522 = vsub.s32 0, %v3521
    %v3523 = vrot.slane %v3518, %v3522
    %3525 = vmatprep.subr.mxu0 0.0
    %3526 = vmatpush1.msra.mxu0 %v3517
    %3527 = vmatprep.subr.mxu0 0.0
    %3528 = vmatpush1.msra.mxu0 %v3516
    %3529 = vmatprep.subr.mxu0 0.0
    %3530 = vmatpush1.msra.mxu0 %v3515
    %3531 = vmatprep.subr.mxu0 0.0
    %3532 = vmatpush1.msra.mxu0 %v3514
    %3533 = vmatprep.subr.mxu0 0.0
    %3534 = vmatpush1.msra.mxu0 %v3513
    %3535 = vmatprep.subr.mxu0 0.0
    %3536 = vmatpush1.msra.mxu0 %v3512
    %3537 = vmatprep.subr.mxu0 0.0
    %3538 = vmatpush1.msra.mxu0 %v3511
    %3539 = vmatprep.subr.mxu0 0.0
    %3540 = vmatpush1.msra.mxu0 %v3510
    %3541 = vmatprep.subr.mxu0 0.0
    %3542 = vmatpush1.msra.mxu0 %v3509
    %3543 = vmatprep.subr.mxu0 0.0
    %3544 = vmatpush1.msra.mxu0 %v3508
    %3545 = vmatprep.subr.mxu0 0.0
    %3546 = vmatpush1.msra.mxu0 %v3507
    %3547 = vmatprep.subr.mxu0 0.0
    %3548 = vmatpush1.msra.mxu0 %v3506
    %3549 = vmatprep.subr.mxu0 0.0
    %3550 = vmatpush1.msra.mxu0 %v3505
    %3551 = vmatprep.subr.mxu0 0.0
    %3552 = vmatpush1.msra.mxu0 %v3504
    %3553 = vmatprep.subr.mxu0 0.0
    %3554 = vmatpush1.msra.mxu0 %v3503
    %3555 = vmatprep.subr.mxu0 0.0
    %3556 = vmatpush1.msra.mxu0 %v3502
    %3557 = vmatprep.subr.mxu0 0.0
    %3558 = vmatpush2.msra.mxu0 0.0
    %3559 = vmatprep.subr.mxu0 0.0
    %3560 = vmatpush2.msra.mxu0 0.0
    %3561 = vmatprep.subr.mxu0 0.0
    %3562 = vmatpush2.msra.mxu0 0.0
    %3563 = vmatprep.subr.mxu0 0.0
    %3564 = vmatpush2.msra.mxu0 0.0
    %3565 = vmatprep.subr.mxu0 0.0
    %3566 = vmatpush2.msra.mxu0 0.0
    %3567 = vmatprep.subr.mxu0 0.0
    %3568 = vmatpush2.msra.mxu0 0.0
    %3569 = vmatprep.subr.mxu0 0.0
    %3570 = vmatpush2.msra.mxu0 0.0
    %3571 = vmatprep.subr.mxu0 0.0
    %3572 = vmatpush2.msra.mxu0 0.0
    %3573 = vmatprep.subr.mxu0 0.0
    %3574 = vmatpush2.msra.mxu0 0.0
    %3575 = vmatprep.subr.mxu0 0.0
    %3576 = vmatpush2.msra.mxu0 0.0
    %3577 = vmatprep.subr.mxu0 0.0
    %3578 = vmatpush2.msra.mxu0 0.0
    %3579 = vmatprep.subr.mxu0 0.0
    %3580 = vmatpush2.msra.mxu0 0.0
    %3581 = vmatprep.subr.mxu0 0.0
    %3582 = vmatpush2.msra.mxu0 0.0
    %3583 = vmatprep.subr.mxu0 0.0
    %3584 = vmatpush2.msra.mxu0 0.0
    %3585 = vmatprep.subr.mxu0 0.0
    %3586 = vmatpush2.msra.mxu0 0.0
    %3587 = vmatprep.subr.mxu0 0.0
    %3588 = vmatpush2.msra.mxu0 0.0
    %3589 = vmatprep.mubr.f32.mxu0 0.0
    %3590 = vmatmul.mubr.f32.gmra.mxu0 %v3501
    %v3591 = vpop.f32.mrf.mxu0
    %v3592 = vadd.f32 %v3523, %v3591
    %v3593 = vpop.f32.mrf.mxu0
    %3594 = vdwg.mxu0
    %v3595 = vadd.f32 %v3416, %v3592
    %v3596 = vsel %vm73, %v3595, 0.0
    %3597 = vadd.xlane.f32.xlu0 %v3596
    %v3598 = vpop.xlane.xlu0 %3597
    %v3599 = vmul.f32 %v3598, %v659
    %v3600 = vsub.f32 %v3595, %v3599
    %v3601 = vmul.f32 %v3600, %v3600
    %v3602 = vsel %vm73, %v3601, 0.0
    %3603 = vadd.xlane.f32.xlu0 %v3602
    %v3604 = vpop.xlane.xlu0 %3603
    %v3605 = vmul.f32 %v3604, %v659
    %v3606 = vadd.f32 %v3605, 1e-05
    %v3607 = vrsqrt.pop %v3606
    %v3608 = vmul.f32 %v3600, %v3607
    %v3609 = vld [vmem:[%s14] sm:$0x1]
    %v3611 = vlaneseq
    %v3612 = vshrl.u32 %v3611, 7
    %v3613 = vsub.s32 0, %v3612
    %v3614 = vrot.slane %v3609, %v3613
    %v3616 = vmul.f32 %v3608, %v3614
    %v3617 = vld [vmem:[%s15] sm:$0x1]
    %v3619 = vlaneseq
    %v3620 = vshrl.u32 %v3619, 7
    %v3621 = vsub.s32 0, %v3620
    %v3622 = vrot.slane %v3617, %v3621
    %v3624 = vadd.f32 %v3616, %v3622
    %s3625 = sld [smem:[#allocation3 + $0x3]]
    %v3626 = vstv %s3625
    %vm3627 = vcmp.eq.s32.totalorder %v60, %v3626
    %v3628 = vsel %vm3627, 1, 0
    %v3629 = vcvt.s32.f32 %v3628
    %v3631 = vsel %vm313, %v3629, 0
    %3633 = vmatprep.subr.mxu0 0.0
    %3634 = vmatpush1.msra.mxu0 0.0
    %3635 = vmatprep.subr.mxu0 0.0
    %3636 = vmatpush1.msra.mxu0 0.0
    %3637 = vmatprep.subr.mxu0 0.0
    %3638 = vmatpush1.msra.mxu0 0.0
    %3639 = vmatprep.subr.mxu0 0.0
    %3640 = vmatpush1.msra.mxu0 0.0
    %3641 = vmatprep.subr.mxu0 0.0
    %3642 = vmatpush1.msra.mxu0 0.0
    %3643 = vmatprep.subr.mxu0 0.0
    %3644 = vmatpush1.msra.mxu0 0.0
    %3645 = vmatprep.subr.mxu0 0.0
    %3646 = vmatpush1.msra.mxu0 0.0
    %3647 = vmatprep.subr.mxu0 0.0
    %3648 = vmatpush1.msra.mxu0 0.0
    %3649 = vmatprep.subr.mxu0 0.0
    %3650 = vmatpush1.msra.mxu0 0.0
    %3651 = vmatprep.subr.mxu0 0.0
    %3652 = vmatpush1.msra.mxu0 0.0
    %3653 = vmatprep.subr.mxu0 0.0
    %3654 = vmatpush1.msra.mxu0 0.0
    %3655 = vmatprep.subr.mxu0 0.0
    %3656 = vmatpush1.msra.mxu0 0.0
    %3657 = vmatprep.subr.mxu0 0.0
    %3658 = vmatpush1.msra.mxu0 0.0
    %3659 = vmatprep.subr.mxu0 0.0
    %3660 = vmatpush1.msra.mxu0 0.0
    %3661 = vmatprep.subr.mxu0 0.0
    %3662 = vmatpush1.msra.mxu0 0.0
    %3663 = vmatprep.subr.mxu0 0.0
    %3664 = vmatpush1.msra.mxu0 %v3624
    %3665 = vmatprep.subr.mxu0 0.0
    %3666 = vmatpush2.msra.mxu0 0.0
    %3667 = vmatprep.subr.mxu0 0.0
    %3668 = vmatpush2.msra.mxu0 0.0
    %3669 = vmatprep.subr.mxu0 0.0
    %3670 = vmatpush2.msra.mxu0 0.0
    %3671 = vmatprep.subr.mxu0 0.0
    %3672 = vmatpush2.msra.mxu0 0.0
    %3673 = vmatprep.subr.mxu0 0.0
    %3674 = vmatpush2.msra.mxu0 0.0
    %3675 = vmatprep.subr.mxu0 0.0
    %3676 = vmatpush2.msra.mxu0 0.0
    %3677 = vmatprep.subr.mxu0 0.0
    %3678 = vmatpush2.msra.mxu0 0.0
    %3679 = vmatprep.subr.mxu0 0.0
    %3680 = vmatpush2.msra.mxu0 0.0
    %3681 = vmatprep.subr.mxu0 0.0
    %3682 = vmatpush2.msra.mxu0 0.0
    %3683 = vmatprep.subr.mxu0 0.0
    %3684 = vmatpush2.msra.mxu0 0.0
    %3685 = vmatprep.subr.mxu0 0.0
    %3686 = vmatpush2.msra.mxu0 0.0
    %3687 = vmatprep.subr.mxu0 0.0
    %3688 = vmatpush2.msra.mxu0 0.0
    %3689 = vmatprep.subr.mxu0 0.0
    %3690 = vmatpush2.msra.mxu0 0.0
    %3691 = vmatprep.subr.mxu0 0.0
    %3692 = vmatpush2.msra.mxu0 0.0
    %3693 = vmatprep.subr.mxu0 0.0
    %3694 = vmatpush2.msra.mxu0 0.0
    %3695 = vmatprep.subr.mxu0 0.0
    %3696 = vmatpush2.msra.mxu0 0.0
    %3697 = vmatprep.mubr.f32.mxu0 0.0
    %3698 = vmatmul.mubr.f32.gmra.mxu0 %v3631
    %v3699 = vpop.f32.mrf.mxu0
    %v3700 = vadd.f32 0.0, %v3699
    %v3701 = vpop.f32.mrf.mxu0
    %3702 = vdwg.mxu0
    %3703 = vst.msk [vmem:[#allocation6 + $0x3] sm:$0x1] %vm972, %v3700
    // Predicated region
    $region62: #{tpu_custom_call.1} parent=1 // pred_check
      _
    $region63: #{tpu_custom_call.1} parent=1 // pred_check_branch
      %3705 = sbr.rel (0) target = $region65
    $region64: #{tpu_custom_call.1} parent=1 // pred_region
      %s3707 = ssub.s32 512, 512
      %3708 = vsyncadd [#allocation5], %s3707
      %s3709 = sshll.u32 [#allocation4], 4
      %s3710 = int_to_ptr.vmem [resolvable:$true] %s3709
      %3715 = dma.vmem_to_hbm [thread:$0]  %s3710, 512, %s16, [#allocation5], 128, 128, 8
    $region65: #{tpu_custom_call.1} parent=1 // pred_fallthru
      _
    // Predicated region
    $region66: #{tpu_custom_call.1} parent=1 // pred_check
      _
    $region67: #{tpu_custom_call.1} parent=1 // pred_check_branch
      %3717 = sbr.rel (0) target = $region69
    $region68: #{tpu_custom_call.1} parent=1 // pred_region
      %s3719 = ssub.s32 64, 64
      %3720 = vsyncadd [#allocation7], %s3719
      %s3722 = sshll.u32 [#allocation6], 4
      %s3723 = int_to_ptr.vmem [resolvable:$true] %s3722
      %3725 = dma.vmem_to_hbm [thread:$0]  %s3723, 64, %s17, [#allocation7]
    $region69: #{tpu_custom_call.1} parent=1 // pred_fallthru
      _
    // Predicated region
    $region70: #{tpu_custom_call.1} parent=1 // pred_check
      _
    $region71: #{tpu_custom_call.1} parent=1 // pred_check_branch
      %3727 = sbr.rel (0) target = $region73
    $region72: #{tpu_custom_call.1} parent=1 // pred_region
      %3728 = dma.done [#allocation5], 512
    $region73: #{tpu_custom_call.1} parent=1 // pred_fallthru
      _
    // Predicated region
    $region74: #{tpu_custom_call.1} parent=1 // pred_check
      _
    $region75: #{tpu_custom_call.1} parent=1 // pred_check_branch
      %3730 = sbr.rel (0) target = $region77
    $region76: #{tpu_custom_call.1} parent=1 // pred_region
      %3731 = dma.done [#allocation7], 64
    $region77: #{tpu_custom_call.1} parent=1 // pred_fallthru
      _
    %3732 = vsyncpa [#allocation5], 1
    %3733 = vsyncpa [#allocation7], 1

</llo_original>
